<compile_context>
chip_gen: v5e
topology: v5e:2x2
jax: 0.10.0
libtpu: 0.0.40
codegen_flags: <defaults>
</compile_context>

<pallas_src>
import functools

import jax
import jax.numpy as jnp
from jax.experimental import pallas as pl
from jax.experimental.pallas import tpu as pltpu

# ---- model dimensions (padding is zero-fill and numerically exact) ----
HIDDEN    = 32          # LSTM hidden size per direction
SEQ       = 8           # sequence length
FEAT      = 61          # feat_size
FEAT_PAD  = 64
D3_IN     = 50          # Dense3 input
D3_PAD    = 64
D4_IN     = 768         # Dense4 input
D4_HID    = 192
PROJ      = 64          # AttFeat projection size (== Task input size)
EMB_DIM   = 300
EMB_PAD   = 384
VOCAB     = 50
VOCAB_PAD = 64
N_VIEWS   = 4


# ============================================================================
# The single fused kernel
# ============================================================================
def _la_kernel(tok_ref, emb_ref, fe_ref, w0_ref, wu_ref, d4w1_ref,
               headw_ref, vecs_ref, out_ref, xp_scr, lstm_scr, *, L, B, H):
    f32 = jnp.float32
    bf16 = jnp.bfloat16
    H2 = 2 * H          # 64  (bidirectional hidden width)
    G = 8 * H           # 256 (fused gate width, both directions)

    # ---------------- packed bias / vector slab ----------------
    b0       = vecs_ref[0:1, :]                 # (1, 256) layer-0 fused LSTM bias
    b1       = vecs_ref[1:2, :]                 # (1, 256) layer-1 fused LSTM bias
    bn_scale = vecs_ref[2:3, 0:H2]              # (1, 64)  gamma / sqrt(var+eps)
    bn_shift = vecs_ref[3:4, 0:H2]              # (1, 64)  beta - mean*scale
    d1_b     = vecs_ref[4:5, 0:64]
    d3_b     = vecs_ref[4:5, 64:128]
    d4_b2    = vecs_ref[4:5, 128:192]
    att_br   = vecs_ref[4:5, 192:256]
    d4_b1    = vecs_ref[5:6, 0:D4_HID]
    att_wa   = vecs_ref[6:7, 0:PROJ]
    t12_b    = vecs_ref[7:8, 0:64]

    # ---------------- embedding gather (one-hot matmul; dropout==identity) ---
    vpad = emb_ref.shape[0]
    tok = tok_ref[...]                                        # (L*B, 1) int32
    lane_v = jax.lax.broadcasted_iota(jnp.int32, (L * B, vpad), 1)
    onehot = (lane_v == tok).astype(f32)                      # (L*B, Vpad)
    x0 = jnp.dot(onehot, emb_ref[...], preferred_element_type=f32)  # (L*B, Epad)

    # lane mask over the fused gate width: True where the lane belongs to the
    # forward direction (lane % 2H < H; H is a power of two here).
    glane = jax.lax.broadcasted_iota(jnp.int32, (B, G), 1)
    fwd_mask = (glane & H) == 0                               # (B, 256) bool

    def run_layer(u, *, store_out):
        """Fully unrolled L-step bidirectional recurrence.

        Gate inputs are read from xp_scr (time-major, fused gate layout).
        If store_out: per-time outputs [h_f(t) | h_b(t)] are written to
        lstm_scr.  Otherwise returns running per-channel (max, min) of h.
        """
        h = jnp.zeros((B, H2), f32)
        c = jnp.zeros((B, H2), f32)
        track = not store_out
        hmax = jnp.full((B, H2), -jnp.inf, f32) if track else None
        hmin = jnp.full((B, H2), jnp.inf, f32) if track else None
        for s in range(L):
            tb = L - 1 - s                                    # bwd consumes time L-1-s
            # one fused recurrent matmul for both directions (block-diag U)
            g_lin = jnp.dot(h, u, preferred_element_type=f32)           # (B, 256)
            xs = xp_scr[s * B:(s + 1) * B, :]                 # fwd gate inputs @ time s
            xt = xp_scr[tb * B:(tb + 1) * B, :]               # bwd gate inputs @ time tb
            gates = g_lin + jnp.where(fwd_mask, xs, xt)
            # full-tile activations (2 EUP pushes), then contiguous 64-lane gates
            sg = jax.nn.sigmoid(gates)
            th = jnp.tanh(gates)
            i_g = sg[:, 0:H2]            # [i_f | i_b]
            f_g = sg[:, H2:2 * H2]       # [f_f | f_b]
            g_g = th[:, 2 * H2:3 * H2]   # [g_f | g_b]
            o_g = sg[:, 3 * H2:4 * H2]   # [o_f | o_b]
            c = f_g * c + i_g * g_g
            h = o_g * jnp.tanh(c)
            if store_out:
                # forward half belongs to time s, backward half to time tb
                lstm_scr[s * B:(s + 1) * B, 0:H] = h[:, 0:H]
                lstm_scr[tb * B:(tb + 1) * B, H:H2] = h[:, H:H2]
            else:
                hmax = jnp.maximum(hmax, h)
                hmin = jnp.minimum(hmin, h)
        return (hmax, hmin) if track else None

    # ---------------- LSTM layer 0 ----------------
    w1 = wu_ref[0:H2, :]                 # (64, 256) layer-1 input weights
    u0 = wu_ref[H2:2 * H2, :]            # (64, 256) layer-0 recurrent (block-diag)
    u1 = wu_ref[2 * H2:3 * H2, :]        # (64, 256) layer-1 recurrent (block-diag)

    xp_scr[...] = (jnp.dot(x0.astype(bf16), w0_ref[...],
                           preferred_element_type=f32) + b0)
    run_layer(u0, store_out=True)

    # ---------------- LSTM layer 1 ----------------
    x1 = lstm_scr[...]                                        # (L*B, 2H) layer-0 output
    xp_scr[...] = jnp.dot(x1, w1, preferred_element_type=f32) + b1
    hmax, hmin = run_layer(u1, store_out=False)

    # ---- BatchNorm (eval) + max over sequence, computed exactly from the
    #      per-channel running extrema:  max_t(a*x_t + b) = a*max (a>=0) / a*min (a<0)
    pooled = jnp.where(bn_scale >= 0.0,
                       bn_scale * hmax + bn_shift,
                       bn_scale * hmin + bn_shift)            # (B, 2H)

    def dense(x, w, b, relu=True):
        y = jnp.dot(x, w, preferred_element_type=f32) + b
        return jnp.maximum(y, 0.0) if relu else y

    d1_w   = headw_ref[0:64, :]          # (64, 64)   Dense1
    d3_w   = headw_ref[64:128, :]        # (64, 64)   Dense3
    d4_w2  = headw_ref[128:320, :]       # (192, 64)  Dense4 second layer
    att_wr = headw_ref[320:384, :]       # (64, 64)   AttFeat.R
    t12_w  = headw_ref[384:448, :]       # (64, 64)   Task1 cols 0:2, Task2 cols 2:4

    y_v = dense(pooled, d1_w, d1_b)                           # Dense1 view  (B, 64)
    fe1 = fe_ref[:, 0:FEAT_PAD]                               # raw-feature view
    fe2 = dense(fe_ref[:, FEAT_PAD:FEAT_PAD + D3_PAD], d3_w, d3_b)
    h4  = dense(fe_ref[:, FEAT_PAD + D3_PAD:FEAT_PAD + D3_PAD + D4_IN].astype(bf16),
                d4w1_ref[...], d4_b1)                         # (B, 192) bf16 matmul
    fe3 = dense(h4, d4_w2, d4_b2)                             # (B, 64)

    # ---- AttFeat over the 4 views: one batched projection + lane-reduced logits
    views = jnp.concatenate([y_v, fe1, fe2, fe3], axis=0)     # (4B, 64)
    r = dense(views, att_wr, att_br)                          # (4B, PROJ)  (ReLU'd, as in reference)
    logits = jnp.sum(jnp.tanh(r) * att_wa, axis=-1, keepdims=True)   # (4B, 1)
    a = jnp.concatenate([logits[v * B:(v + 1) * B, :] for v in range(N_VIEWS)],
                        axis=-1)                              # (B, 4)
    a = a - jnp.max(a, axis=-1, keepdims=True)
    e = jnp.exp(a)
    a = e / jnp.sum(e, axis=-1, keepdims=True)                # softmax over views
    s = jnp.zeros((B, PROJ), f32)
    for v in range(N_VIEWS):
        s = s + a[:, v:v + 1] * r[v * B:(v + 1) * B, :]
    s = jnp.maximum(s, 0.0)                                   # F.relu in AttFeat

    # Task1 / Task2 fused into one matmul: cols 0:2 -> y1, cols 2:4 -> y2.
    out_ref[...] = dense(s, t12_w, t12_b, relu=False)         # (B, 64)


# ============================================================================
# Wrapper: one pallas_call for the whole forward pass
# ============================================================================
def la_model_forward(packed, X_tokens, Fe):
    B, L = X_tokens.shape
    H = HIDDEN

    # time-major token ids (row = t*B + b)
    tok = jnp.transpose(X_tokens).reshape(L * B, 1).astype(jnp.int32)

    # feature slab: [fe1 pad->64 | Dense3 input pad->64 | Dense4 input (768)]
    fe1 = Fe[:, :FEAT]
    fed3 = Fe[:, FEAT:FEAT + D3_IN]
    fed4 = Fe[:, FEAT + D3_IN:]
    fe_slab = jnp.concatenate(
        [jnp.pad(fe1, ((0, 0), (0, FEAT_PAD - FEAT))),
         jnp.pad(fed3, ((0, 0), (0, D3_PAD - D3_IN))),
         fed4], axis=-1)                                      # (B, 896)

    out = pl.pallas_call(
        functools.partial(_la_kernel, L=L, B=B, H=H),
        out_shape=jax.ShapeDtypeStruct((B, 64), jnp.float32),
        scratch_shapes=[
            pltpu.VMEM((L * B, 8 * H), jnp.float32),   # xp_scr: hoisted gate inputs
            pltpu.VMEM((L * B, 2 * H), jnp.float32),   # lstm_scr: layer-0 outputs
        ],
    )(tok, packed["emb"], fe_slab, packed["w0"], packed["wu"],
      packed["d4w1"], packed["headw"], packed["vecs"])

    y1 = out[:, 0:2]
    y2 = out[:, 2:4]
    return jnp.squeeze(y1), jnp.squeeze(y2)   # .squeeze() mirrors the PyTorch module


# ============================================================================
# Parameter packing: logical (PyTorch-like) params -> kernel slabs (one-time)
# ============================================================================
def _interleave_gate_cols(m_f, m_b, H):
    """(Din,4H)+(Din,4H) gate order i|f|g|o -> (Din,8H) columns
    [i_f i_b | f_f f_b | g_f g_b | o_f o_b]."""
    parts = []
    for k in range(4):
        parts.append(m_f[:, k * H:(k + 1) * H])
        parts.append(m_b[:, k * H:(k + 1) * H])
    return jnp.concatenate(parts, axis=-1)


def _block_diag_recurrent(u_f, u_b, H):
    """(H,4H)+(H,4H) -> (2H,8H) block-diagonal recurrent weight so that
    [h_f|h_b] @ U produces the interleaved fused gate layout."""
    z = jnp.zeros((H, H), jnp.float32)
    top, bot = [], []
    for k in range(4):
        top += [u_f[:, k * H:(k + 1) * H], z]
        bot += [z, u_b[:, k * H:(k + 1) * H]]
    return jnp.concatenate([jnp.concatenate(top, axis=-1),
                            jnp.concatenate(bot, axis=-1)], axis=0)


def pack_params(p):
    H = HIDDEN
    f32 = jnp.float32
    G = 8 * H

    (w0f, u0f, b0f), (w0b, u0b, b0b) = p["lstm"][0]
    (w1f, u1f, b1f), (w1b, u1b, b1b) = p["lstm"][1]

    w0 = jnp.pad(_interleave_gate_cols(w0f, w0b, H),
                 ((0, EMB_PAD - EMB_DIM), (0, 0)))            # (384, 256)
    w1 = _interleave_gate_cols(w1f, w1b, H)                   # (64, 256)
    u0 = _block_diag_recurrent(u0f, u0b, H)                   # (64, 256)
    u1 = _block_diag_recurrent(u1f, u1b, H)                   # (64, 256)
    b0 = _interleave_gate_cols(b0f, b0b, H).reshape(-1)       # (256,)
    b1 = _interleave_gate_cols(b1f, b1b, H).reshape(-1)

    emb = jnp.pad(p["emb"], ((0, VOCAB_PAD - VOCAB), (0, EMB_PAD - EMB_DIM)))

    bn_scale = p["bn_gamma"] * jax.lax.rsqrt(p["bn_var"] + 1e-5)
    bn_shift = p["bn_beta"] - p["bn_mean"] * bn_scale

    def padc(m, cols):
        return jnp.pad(m, ((0, 0), (0, cols - m.shape[1])))

    def padr(m, rows):
        return jnp.pad(m, ((0, rows - m.shape[0]), (0, 0)))

    d1_w = padc(p["d1_w"], FEAT_PAD)                          # (64, 64)
    d3_w = padr(padc(p["d3_w"], FEAT_PAD), D3_PAD)            # (64, 64)
    d4_w2 = padc(p["d4_w2"], FEAT_PAD)                        # (192, 64)
    att_wr = padr(p["att_wr"], FEAT_PAD)                      # (64, 64)
    t12_w = jnp.zeros((PROJ, 64), f32)
    t12_w = t12_w.at[:, 0:2].set(p["t1_w"]).at[:, 2:4].set(p["t2_w"])
    headw = jnp.concatenate([d1_w, d3_w, d4_w2, att_wr, t12_w], axis=0)  # (448, 64)

    def vec_row(entries):
        r = jnp.zeros((G,), f32)
        for v, off in entries:
            r = r.at[off:off + v.shape[0]].set(v)
        return r

    vecs = jnp.stack([
        b0, b1,
        vec_row([(bn_scale, 0)]),
        vec_row([(bn_shift, 0)]),
        vec_row([(p["d1_b"], 0), (p["d3_b"], 64), (p["d4_b2"], 128),
                 (p["att_br"], 192)]),
        vec_row([(p["d4_b1"], 0)]),
        vec_row([(p["att_wa"], 0)]),
        vec_row([(p["t1_b"], 0), (p["t2_b"], 2)]),
    ], axis=0)                                                # (8, 256)

    return dict(
        emb=emb.astype(f32),
        w0=w0.astype(jnp.bfloat16),                           # big projection -> bf16
        wu=jnp.concatenate([w1, u0, u1], axis=0).astype(f32), # recurrence stays f32
        d4w1=p["d4_w1"].astype(jnp.bfloat16),                 # K=768 projection -> bf16
        headw=headw.astype(f32),
        vecs=vecs.astype(f32),
    )


# ============================================================================
# Deterministic synthetic parameters (logical layout, PyTorch-like)
# ============================================================================
def init_params(key):
    H = HIDDEN
    keys = iter(jax.random.split(key, 64))

    def w(shape, scale=0.1):
        return scale * jax.random.normal(next(keys), shape, dtype=jnp.float32)

    lstm = []
    din = EMB_DIM
    for _layer in range(2):
        dirs = []
        for _d in range(2):
            # (Din,4H) input weights, (H,4H) recurrent, (1,4H) fused bias; gates i|f|g|o
            dirs.append((w((din, 4 * H)), w((H, 4 * H)), w((1, 4 * H))))
        lstm.append(tuple(dirs))
        din = 2 * H

    return dict(
        emb=w((VOCAB, EMB_DIM), 1.0),
        lstm=lstm,
        bn_gamma=1.0 + w((2 * H,)), bn_beta=w((2 * H,)),
        bn_mean=w((2 * H,)), bn_var=1.0 + jnp.abs(w((2 * H,))),
        d1_w=w((2 * H, FEAT)), d1_b=w((FEAT,)),
        d3_w=w((D3_IN, FEAT)), d3_b=w((FEAT,)),
        d4_w1=w((D4_IN, D4_HID)), d4_b1=w((D4_HID,)),
        d4_w2=w((D4_HID, FEAT)), d4_b2=w((FEAT,)),
        att_wr=w((FEAT, PROJ)), att_br=w((PROJ,)),
        att_wa=w((PROJ,)),                  # AttFeat.A: Linear(64, 1, bias=False)
        t1_w=w((PROJ, 2)), t1_b=w((2,)),
        t2_w=w((PROJ, 2)), t2_b=w((2,)),
    )


if __name__ == "__main__":
    B, L = 2, SEQ
    root = jax.random.PRNGKey(0)
    kp, kx, kf = jax.random.split(root, 3)

    params = init_params(kp)
    packed = pack_params(params)   # one-time weight re-layout (outside jit)

    X = jax.random.randint(kx, (B, L), 0, VOCAB, dtype=jnp.int32)
    Fe = jax.random.normal(kf, (B, FEAT + D3_IN + D4_IN), dtype=jnp.float32)

    fwd = jax.jit(la_model_forward)
    y1, y2 = fwd(packed, X, Fe)
    jax.block_until_ready((y1, y2))

    assert y1.shape == (B, 2) and y2.shape == (B, 2)
    assert bool(jnp.all(jnp.isfinite(y1))) and bool(jnp.all(jnp.isfinite(y2)))
    print("KERNEL_OK")
</pallas_src>

<mosaic_0001>
module attributes {stable_mosaic.version = 11 : i64} {
  func.func @_la_kernel(%arg0: memref<16x1xi32, #tpu.memory_space<vmem>>, %arg1: memref<64x384xf32, #tpu.memory_space<vmem>>, %arg2: memref<2x896xf32, #tpu.memory_space<vmem>>, %arg3: memref<384x256xbf16, #tpu.memory_space<vmem>>, %arg4: memref<192x256xf32, #tpu.memory_space<vmem>>, %arg5: memref<768x192xbf16, #tpu.memory_space<vmem>>, %arg6: memref<448x64xf32, #tpu.memory_space<vmem>>, %arg7: memref<8x256xf32, #tpu.memory_space<vmem>>, %arg8: memref<2x64xf32, #tpu.memory_space<vmem>>, %arg9: memref<16x256xf32, #tpu.memory_space<vmem>>, %arg10: memref<16x64xf32, #tpu.memory_space<vmem>>) attributes {dimension_semantics = [], scalar_prefetch = 0 : i64, scratch_operands = 2 : i64, tpu.core_type = #tpu.core_type<tc>} {
    %c0 = arith.constant 0 : index
    %c0_0 = arith.constant 0 : index
    %0 = vector.load %arg7[%c0, %c0_0] : memref<8x256xf32, #tpu.memory_space<vmem>>, vector<1x256xf32>
    %c1 = arith.constant 1 : index
    %c0_1 = arith.constant 0 : index
    %1 = vector.load %arg7[%c1, %c0_1] : memref<8x256xf32, #tpu.memory_space<vmem>>, vector<1x256xf32>
    %c2 = arith.constant 2 : index
    %c0_2 = arith.constant 0 : index
    %2 = vector.load %arg7[%c2, %c0_2] : memref<8x256xf32, #tpu.memory_space<vmem>>, vector<1x64xf32>
    %c3 = arith.constant 3 : index
    %c0_3 = arith.constant 0 : index
    %3 = vector.load %arg7[%c3, %c0_3] : memref<8x256xf32, #tpu.memory_space<vmem>>, vector<1x64xf32>
    %c4 = arith.constant 4 : index
    %c0_4 = arith.constant 0 : index
    %4 = vector.load %arg7[%c4, %c0_4] : memref<8x256xf32, #tpu.memory_space<vmem>>, vector<1x64xf32>
    %c4_5 = arith.constant 4 : index
    %c64 = arith.constant 64 : index
    %5 = vector.load %arg7[%c4_5, %c64] : memref<8x256xf32, #tpu.memory_space<vmem>>, vector<1x64xf32>
    %c4_6 = arith.constant 4 : index
    %c128 = arith.constant 128 : index
    %6 = vector.load %arg7[%c4_6, %c128] : memref<8x256xf32, #tpu.memory_space<vmem>>, vector<1x64xf32>
    %c4_7 = arith.constant 4 : index
    %c192 = arith.constant 192 : index
    %7 = vector.load %arg7[%c4_7, %c192] : memref<8x256xf32, #tpu.memory_space<vmem>>, vector<1x64xf32>
    %c5 = arith.constant 5 : index
    %c0_8 = arith.constant 0 : index
    %8 = vector.load %arg7[%c5, %c0_8] : memref<8x256xf32, #tpu.memory_space<vmem>>, vector<1x192xf32>
    %c6 = arith.constant 6 : index
    %c0_9 = arith.constant 0 : index
    %9 = vector.load %arg7[%c6, %c0_9] : memref<8x256xf32, #tpu.memory_space<vmem>>, vector<1x64xf32>
    %c7 = arith.constant 7 : index
    %c0_10 = arith.constant 0 : index
    %10 = vector.load %arg7[%c7, %c0_10] : memref<8x256xf32, #tpu.memory_space<vmem>>, vector<1x64xf32>
    %c0_11 = arith.constant 0 : index
    %c0_12 = arith.constant 0 : index
    %11 = vector.load %arg0[%c0_11, %c0_12] : memref<16x1xi32, #tpu.memory_space<vmem>>, vector<16x1xi32>
    %12 = tpu.iota {dimensions = array<i32: 1>} : vector<16x64xi32>
    %13 = vector.broadcast %11 : vector<16x1xi32> to vector<16x64xi32>
    %14 = arith.cmpi eq, %12, %13 : vector<16x64xi32>
    %15 = arith.extui %14 : vector<16x64xi1> to vector<16x64xi32>
    %16 = arith.sitofp %15 : vector<16x64xi32> to vector<16x64xf32>
    %c0_13 = arith.constant 0 : index
    %c0_14 = arith.constant 0 : index
    %17 = vector.load %arg1[%c0_13, %c0_14] : memref<64x384xf32, #tpu.memory_space<vmem>>, vector<64x384xf32>
    %cst = arith.constant dense<0.000000e+00> : vector<16x384xf32>
    %18 = tpu.matmul %16, %17, %cst {dimension_numbers = #tpu.dot_dimension_numbers<[1], [0], [0], [1], [0, 0, 1, 1], [], []>} : vector<16x64xf32>, vector<64x384xf32>, vector<16x384xf32> -> vector<16x384xf32>
    %19 = tpu.iota {dimensions = array<i32: 1>} : vector<2x256xi32>
    %c32_i32 = arith.constant 32 : i32
    %20 = vector.broadcast %c32_i32 : i32 to vector<2x256xi32>
    %21 = arith.andi %19, %20 : vector<2x256xi32>
    %c0_i32 = arith.constant 0 : i32
    %22 = vector.broadcast %c0_i32 : i32 to vector<2x256xi32>
    %23 = arith.cmpi eq, %21, %22 : vector<2x256xi32>
    %c0_15 = arith.constant 0 : index
    %c0_16 = arith.constant 0 : index
    %24 = vector.load %arg4[%c0_15, %c0_16] : memref<192x256xf32, #tpu.memory_space<vmem>>, vector<64x256xf32>
    %c64_17 = arith.constant 64 : index
    %c0_18 = arith.constant 0 : index
    %25 = vector.load %arg4[%c64_17, %c0_18] : memref<192x256xf32, #tpu.memory_space<vmem>>, vector<64x256xf32>
    %c128_19 = arith.constant 128 : index
    %c0_20 = arith.constant 0 : index
    %26 = vector.load %arg4[%c128_19, %c0_20] : memref<192x256xf32, #tpu.memory_space<vmem>>, vector<64x256xf32>
    %27 = arith.truncf %18 : vector<16x384xf32> to vector<16x384xbf16>
    %c0_21 = arith.constant 0 : index
    %c0_22 = arith.constant 0 : index
    %28 = vector.load %arg3[%c0_21, %c0_22] : memref<384x256xbf16, #tpu.memory_space<vmem>>, vector<384x256xbf16>
    %cst_23 = arith.constant dense<0.000000e+00> : vector<16x256xf32>
    %29 = tpu.matmul %27, %28, %cst_23 {dimension_numbers = #tpu.dot_dimension_numbers<[1], [0], [0], [1], [0, 0, 1, 1], [], []>} : vector<16x384xbf16>, vector<384x256xbf16>, vector<16x256xf32> -> vector<16x256xf32>
    %30 = vector.broadcast %0 : vector<1x256xf32> to vector<16x256xf32>
    %31 = arith.addf %29, %30 : vector<16x256xf32>
    %c0_24 = arith.constant 0 : index
    %c0_25 = arith.constant 0 : index
    %32 = vector.load %arg9[%c0_24, %c0_25] : memref<16x256xf32, #tpu.memory_space<vmem>>, vector<16x256xf32>
    tpu.vector_store %arg9[%c0_24, %c0_25], %31 {strides = array<i32>} : memref<16x256xf32, #tpu.memory_space<vmem>>, vector<16x256xf32>,
    %cst_26 = arith.constant 0.000000e+00 : f32
    %33 = vector.broadcast %cst_26 : f32 to vector<2x64xf32>
    %cst_27 = arith.constant 0.000000e+00 : f32
    %34 = vector.broadcast %cst_27 : f32 to vector<2x64xf32>
    %cst_28 = arith.constant dense<0.000000e+00> : vector<2x256xf32>
    %35 = tpu.matmul %33, %25, %cst_28 {dimension_numbers = #tpu.dot_dimension_numbers<[1], [0], [0], [1], [0, 0, 1, 1], [], []>} : vector<2x64xf32>, vector<64x256xf32>, vector<2x256xf32> -> vector<2x256xf32>
    %c0_29 = arith.constant 0 : index
    %c0_30 = arith.constant 0 : index
    %36 = vector.load %arg9[%c0_29, %c0_30] : memref<16x256xf32, #tpu.memory_space<vmem>>, vector<2x256xf32>
    %c14 = arith.constant 14 : index
    %c0_31 = arith.constant 0 : index
    %37 = vector.load %arg9[%c14, %c0_31] : memref<16x256xf32, #tpu.memory_space<vmem>>, vector<2x256xf32>
    %38 = arith.select %23, %36, %37 : vector<2x256xi1>, vector<2x256xf32>
    %39 = arith.addf %35, %38 : vector<2x256xf32>
    %40 = arith.negf %39 : vector<2x256xf32>
    %41 = math.exp %40 : vector<2x256xf32>
    %cst_32 = arith.constant 1.000000e+00 : f32
    %42 = vector.broadcast %cst_32 : f32 to vector<2x256xf32>
    %43 = arith.addf %42, %41 : vector<2x256xf32>
    %44 = arith.divf %42, %43 : vector<2x256xf32>
    %45 = math.tanh %39 : vector<2x256xf32>
    %46 = vector.extract_strided_slice %44 {offsets = [0, 0], sizes = [2, 64], strides = [1, 1]} : vector<2x256xf32> to vector<2x64xf32>
    %47 = vector.extract_strided_slice %44 {offsets = [0, 64], sizes = [2, 64], strides = [1, 1]} : vector<2x256xf32> to vector<2x64xf32>
    %48 = vector.extract_strided_slice %45 {offsets = [0, 128], sizes = [2, 64], strides = [1, 1]} : vector<2x256xf32> to vector<2x64xf32>
    %49 = vector.extract_strided_slice %44 {offsets = [0, 192], sizes = [2, 64], strides = [1, 1]} : vector<2x256xf32> to vector<2x64xf32>
    %50 = arith.mulf %47, %34 : vector<2x64xf32>
    %51 = arith.mulf %46, %48 : vector<2x64xf32>
    %52 = arith.addf %50, %51 : vector<2x64xf32>
    %53 = math.tanh %52 : vector<2x64xf32>
    %54 = arith.mulf %49, %53 : vector<2x64xf32>
    %55 = vector.extract_strided_slice %54 {offsets = [0, 0], sizes = [2, 32], strides = [1, 1]} : vector<2x64xf32> to vector<2x32xf32>
    %c0_33 = arith.constant 0 : index
    %c0_34 = arith.constant 0 : index
    %56 = vector.load %arg10[%c0_33, %c0_34] : memref<16x64xf32, #tpu.memory_space<vmem>>, vector<2x32xf32>
    tpu.vector_store %arg10[%c0_33, %c0_34], %55 {strides = array<i32>} : memref<16x64xf32, #tpu.memory_space<vmem>>, vector<2x32xf32>,
    %57 = vector.extract_strided_slice %54 {offsets = [0, 32], sizes = [2, 32], strides = [1, 1]} : vector<2x64xf32> to vector<2x32xf32>
    %c14_35 = arith.constant 14 : index
    %c32 = arith.constant 32 : index
    %58 = vector.load %arg10[%c14_35, %c32] : memref<16x64xf32, #tpu.memory_space<vmem>>, vector<2x32xf32>
    tpu.vector_store %arg10[%c14_35, %c32], %57 {strides = array<i32>} : memref<16x64xf32, #tpu.memory_space<vmem>>, vector<2x32xf32>,
    %cst_36 = arith.constant dense<0.000000e+00> : vector<2x256xf32>
    %59 = tpu.matmul %54, %25, %cst_36 {dimension_numbers = #tpu.dot_dimension_numbers<[1], [0], [0], [1], [0, 0, 1, 1], [], []>} : vector<2x64xf32>, vector<64x256xf32>, vector<2x256xf32> -> vector<2x256xf32>
    %c2_37 = arith.constant 2 : index
    %c0_38 = arith.constant 0 : index
    %60 = vector.load %arg9[%c2_37, %c0_38] : memref<16x256xf32, #tpu.memory_space<vmem>>, vector<2x256xf32>
    %c12 = arith.constant 12 : index
    %c0_39 = arith.constant 0 : index
    %61 = vector.load %arg9[%c12, %c0_39] : memref<16x256xf32, #tpu.memory_space<vmem>>, vector<2x256xf32>
    %62 = arith.select %23, %60, %61 : vector<2x256xi1>, vector<2x256xf32>
    %63 = arith.addf %59, %62 : vector<2x256xf32>
    %64 = arith.negf %63 : vector<2x256xf32>
    %65 = math.exp %64 : vector<2x256xf32>
    %cst_40 = arith.constant 1.000000e+00 : f32
    %66 = vector.broadcast %cst_40 : f32 to vector<2x256xf32>
    %67 = arith.addf %66, %65 : vector<2x256xf32>
    %68 = arith.divf %66, %67 : vector<2x256xf32>
    %69 = math.tanh %63 : vector<2x256xf32>
    %70 = vector.extract_strided_slice %68 {offsets = [0, 0], sizes = [2, 64], strides = [1, 1]} : vector<2x256xf32> to vector<2x64xf32>
    %71 = vector.extract_strided_slice %68 {offsets = [0, 64], sizes = [2, 64], strides = [1, 1]} : vector<2x256xf32> to vector<2x64xf32>
    %72 = vector.extract_strided_slice %69 {offsets = [0, 128], sizes = [2, 64], strides = [1, 1]} : vector<2x256xf32> to vector<2x64xf32>
    %73 = vector.extract_strided_slice %68 {offsets = [0, 192], sizes = [2, 64], strides = [1, 1]} : vector<2x256xf32> to vector<2x64xf32>
    %74 = arith.mulf %71, %52 : vector<2x64xf32>
    %75 = arith.mulf %70, %72 : vector<2x64xf32>
    %76 = arith.addf %74, %75 : vector<2x64xf32>
    %77 = math.tanh %76 : vector<2x64xf32>
    %78 = arith.mulf %73, %77 : vector<2x64xf32>
    %79 = vector.extract_strided_slice %78 {offsets = [0, 0], sizes = [2, 32], strides = [1, 1]} : vector<2x64xf32> to vector<2x32xf32>
    %c2_41 = arith.constant 2 : index
    %c0_42 = arith.constant 0 : index
    %80 = vector.load %arg10[%c2_41, %c0_42] : memref<16x64xf32, #tpu.memory_space<vmem>>, vector<2x32xf32>
    tpu.vector_store %arg10[%c2_41, %c0_42], %79 {strides = array<i32>} : memref<16x64xf32, #tpu.memory_space<vmem>>, vector<2x32xf32>,
    %81 = vector.extract_strided_slice %78 {offsets = [0, 32], sizes = [2, 32], strides = [1, 1]} : vector<2x64xf32> to vector<2x32xf32>
    %c12_43 = arith.constant 12 : index
    %c32_44 = arith.constant 32 : index
    %82 = vector.load %arg10[%c12_43, %c32_44] : memref<16x64xf32, #tpu.memory_space<vmem>>, vector<2x32xf32>
    tpu.vector_store %arg10[%c12_43, %c32_44], %81 {strides = array<i32>} : memref<16x64xf32, #tpu.memory_space<vmem>>, vector<2x32xf32>,
    %cst_45 = arith.constant dense<0.000000e+00> : vector<2x256xf32>
    %83 = tpu.matmul %78, %25, %cst_45 {dimension_numbers = #tpu.dot_dimension_numbers<[1], [0], [0], [1], [0, 0, 1, 1], [], []>} : vector<2x64xf32>, vector<64x256xf32>, vector<2x256xf32> -> vector<2x256xf32>
    %c4_46 = arith.constant 4 : index
    %c0_47 = arith.constant 0 : index
    %84 = vector.load %arg9[%c4_46, %c0_47] : memref<16x256xf32, #tpu.memory_space<vmem>>, vector<2x256xf32>
    %c10 = arith.constant 10 : index
    %c0_48 = arith.constant 0 : index
    %85 = vector.load %arg9[%c10, %c0_48] : memref<16x256xf32, #tpu.memory_space<vmem>>, vector<2x256xf32>
    %86 = arith.select %23, %84, %85 : vector<2x256xi1>, vector<2x256xf32>
    %87 = arith.addf %83, %86 : vector<2x256xf32>
    %88 = arith.negf %87 : vector<2x256xf32>
    %89 = math.exp %88 : vector<2x256xf32>
    %cst_49 = arith.constant 1.000000e+00 : f32
    %90 = vector.broadcast %cst_49 : f32 to vector<2x256xf32>
    %91 = arith.addf %90, %89 : vector<2x256xf32>
    %92 = arith.divf %90, %91 : vector<2x256xf32>
    %93 = math.tanh %87 : vector<2x256xf32>
    %94 = vector.extract_strided_slice %92 {offsets = [0, 0], sizes = [2, 64], strides = [1, 1]} : vector<2x256xf32> to vector<2x64xf32>
    %95 = vector.extract_strided_slice %92 {offsets = [0, 64], sizes = [2, 64], strides = [1, 1]} : vector<2x256xf32> to vector<2x64xf32>
    %96 = vector.extract_strided_slice %93 {offsets = [0, 128], sizes = [2, 64], strides = [1, 1]} : vector<2x256xf32> to vector<2x64xf32>
    %97 = vector.extract_strided_slice %92 {offsets = [0, 192], sizes = [2, 64], strides = [1, 1]} : vector<2x256xf32> to vector<2x64xf32>
    %98 = arith.mulf %95, %76 : vector<2x64xf32>
    %99 = arith.mulf %94, %96 : vector<2x64xf32>
    %100 = arith.addf %98, %99 : vector<2x64xf32>
    %101 = math.tanh %100 : vector<2x64xf32>
    %102 = arith.mulf %97, %101 : vector<2x64xf32>
    %103 = vector.extract_strided_slice %102 {offsets = [0, 0], sizes = [2, 32], strides = [1, 1]} : vector<2x64xf32> to vector<2x32xf32>
    %c4_50 = arith.constant 4 : index
    %c0_51 = arith.constant 0 : index
    %104 = vector.load %arg10[%c4_50, %c0_51] : memref<16x64xf32, #tpu.memory_space<vmem>>, vector<2x32xf32>
    tpu.vector_store %arg10[%c4_50, %c0_51], %103 {strides = array<i32>} : memref<16x64xf32, #tpu.memory_space<vmem>>, vector<2x32xf32>,
    %105 = vector.extract_strided_slice %102 {offsets = [0, 32], sizes = [2, 32], strides = [1, 1]} : vector<2x64xf32> to vector<2x32xf32>
    %c10_52 = arith.constant 10 : index
    %c32_53 = arith.constant 32 : index
    %106 = vector.load %arg10[%c10_52, %c32_53] : memref<16x64xf32, #tpu.memory_space<vmem>>, vector<2x32xf32>
    tpu.vector_store %arg10[%c10_52, %c32_53], %105 {strides = array<i32>} : memref<16x64xf32, #tpu.memory_space<vmem>>, vector<2x32xf32>,
    %cst_54 = arith.constant dense<0.000000e+00> : vector<2x256xf32>
    %107 = tpu.matmul %102, %25, %cst_54 {dimension_numbers = #tpu.dot_dimension_numbers<[1], [0], [0], [1], [0, 0, 1, 1], [], []>} : vector<2x64xf32>, vector<64x256xf32>, vector<2x256xf32> -> vector<2x256xf32>
    %c6_55 = arith.constant 6 : index
    %c0_56 = arith.constant 0 : index
    %108 = vector.load %arg9[%c6_55, %c0_56] : memref<16x256xf32, #tpu.memory_space<vmem>>, vector<2x256xf32>
    %c8 = arith.constant 8 : index
    %c0_57 = arith.constant 0 : index
    %109 = vector.load %arg9[%c8, %c0_57] : memref<16x256xf32, #tpu.memory_space<vmem>>, vector<2x256xf32>
    %110 = arith.select %23, %108, %109 : vector<2x256xi1>, vector<2x256xf32>
    %111 = arith.addf %107, %110 : vector<2x256xf32>
    %112 = arith.negf %111 : vector<2x256xf32>
    %113 = math.exp %112 : vector<2x256xf32>
    %cst_58 = arith.constant 1.000000e+00 : f32
    %114 = vector.broadcast %cst_58 : f32 to vector<2x256xf32>
    %115 = arith.addf %114, %113 : vector<2x256xf32>
    %116 = arith.divf %114, %115 : vector<2x256xf32>
    %117 = math.tanh %111 : vector<2x256xf32>
    %118 = vector.extract_strided_slice %116 {offsets = [0, 0], sizes = [2, 64], strides = [1, 1]} : vector<2x256xf32> to vector<2x64xf32>
    %119 = vector.extract_strided_slice %116 {offsets = [0, 64], sizes = [2, 64], strides = [1, 1]} : vector<2x256xf32> to vector<2x64xf32>
    %120 = vector.extract_strided_slice %117 {offsets = [0, 128], sizes = [2, 64], strides = [1, 1]} : vector<2x256xf32> to vector<2x64xf32>
    %121 = vector.extract_strided_slice %116 {offsets = [0, 192], sizes = [2, 64], strides = [1, 1]} : vector<2x256xf32> to vector<2x64xf32>
    %122 = arith.mulf %119, %100 : vector<2x64xf32>
    %123 = arith.mulf %118, %120 : vector<2x64xf32>
    %124 = arith.addf %122, %123 : vector<2x64xf32>
    %125 = math.tanh %124 : vector<2x64xf32>
    %126 = arith.mulf %121, %125 : vector<2x64xf32>
    %127 = vector.extract_strided_slice %126 {offsets = [0, 0], sizes = [2, 32], strides = [1, 1]} : vector<2x64xf32> to vector<2x32xf32>
    %c6_59 = arith.constant 6 : index
    %c0_60 = arith.constant 0 : index
    %128 = vector.load %arg10[%c6_59, %c0_60] : memref<16x64xf32, #tpu.memory_space<vmem>>, vector<2x32xf32>
    tpu.vector_store %arg10[%c6_59, %c0_60], %127 {strides = array<i32>} : memref<16x64xf32, #tpu.memory_space<vmem>>, vector<2x32xf32>,
    %129 = vector.extract_strided_slice %126 {offsets = [0, 32], sizes = [2, 32], strides = [1, 1]} : vector<2x64xf32> to vector<2x32xf32>
    %c8_61 = arith.constant 8 : index
    %c32_62 = arith.constant 32 : index
    %130 = vector.load %arg10[%c8_61, %c32_62] : memref<16x64xf32, #tpu.memory_space<vmem>>, vector<2x32xf32>
    tpu.vector_store %arg10[%c8_61, %c32_62], %129 {strides = array<i32>} : memref<16x64xf32, #tpu.memory_space<vmem>>, vector<2x32xf32>,
    %cst_63 = arith.constant dense<0.000000e+00> : vector<2x256xf32>
    %131 = tpu.matmul %126, %25, %cst_63 {dimension_numbers = #tpu.dot_dimension_numbers<[1], [0], [0], [1], [0, 0, 1, 1], [], []>} : vector<2x64xf32>, vector<64x256xf32>, vector<2x256xf32> -> vector<2x256xf32>
    %c8_64 = arith.constant 8 : index
    %c0_65 = arith.constant 0 : index
    %132 = vector.load %arg9[%c8_64, %c0_65] : memref<16x256xf32, #tpu.memory_space<vmem>>, vector<2x256xf32>
    %c6_66 = arith.constant 6 : index
    %c0_67 = arith.constant 0 : index
    %133 = vector.load %arg9[%c6_66, %c0_67] : memref<16x256xf32, #tpu.memory_space<vmem>>, vector<2x256xf32>
    %134 = arith.select %23, %132, %133 : vector<2x256xi1>, vector<2x256xf32>
    %135 = arith.addf %131, %134 : vector<2x256xf32>
    %136 = arith.negf %135 : vector<2x256xf32>
    %137 = math.exp %136 : vector<2x256xf32>
    %cst_68 = arith.constant 1.000000e+00 : f32
    %138 = vector.broadcast %cst_68 : f32 to vector<2x256xf32>
    %139 = arith.addf %138, %137 : vector<2x256xf32>
    %140 = arith.divf %138, %139 : vector<2x256xf32>
    %141 = math.tanh %135 : vector<2x256xf32>
    %142 = vector.extract_strided_slice %140 {offsets = [0, 0], sizes = [2, 64], strides = [1, 1]} : vector<2x256xf32> to vector<2x64xf32>
    %143 = vector.extract_strided_slice %140 {offsets = [0, 64], sizes = [2, 64], strides = [1, 1]} : vector<2x256xf32> to vector<2x64xf32>
    %144 = vector.extract_strided_slice %141 {offsets = [0, 128], sizes = [2, 64], strides = [1, 1]} : vector<2x256xf32> to vector<2x64xf32>
    %145 = vector.extract_strided_slice %140 {offsets = [0, 192], sizes = [2, 64], strides = [1, 1]} : vector<2x256xf32> to vector<2x64xf32>
    %146 = arith.mulf %143, %124 : vector<2x64xf32>
    %147 = arith.mulf %142, %144 : vector<2x64xf32>
    %148 = arith.addf %146, %147 : vector<2x64xf32>
    %149 = math.tanh %148 : vector<2x64xf32>
    %150 = arith.mulf %145, %149 : vector<2x64xf32>
    %151 = vector.extract_strided_slice %150 {offsets = [0, 0], sizes = [2, 32], strides = [1, 1]} : vector<2x64xf32> to vector<2x32xf32>
    %c8_69 = arith.constant 8 : index
    %c0_70 = arith.constant 0 : index
    %152 = vector.load %arg10[%c8_69, %c0_70] : memref<16x64xf32, #tpu.memory_space<vmem>>, vector<2x32xf32>
    tpu.vector_store %arg10[%c8_69, %c0_70], %151 {strides = array<i32>} : memref<16x64xf32, #tpu.memory_space<vmem>>, vector<2x32xf32>,
    %153 = vector.extract_strided_slice %150 {offsets = [0, 32], sizes = [2, 32], strides = [1, 1]} : vector<2x64xf32> to vector<2x32xf32>
    %c6_71 = arith.constant 6 : index
    %c32_72 = arith.constant 32 : index
    %154 = vector.load %arg10[%c6_71, %c32_72] : memref<16x64xf32, #tpu.memory_space<vmem>>, vector<2x32xf32>
    tpu.vector_store %arg10[%c6_71, %c32_72], %153 {strides = array<i32>} : memref<16x64xf32, #tpu.memory_space<vmem>>, vector<2x32xf32>,
    %cst_73 = arith.constant dense<0.000000e+00> : vector<2x256xf32>
    %155 = tpu.matmul %150, %25, %cst_73 {dimension_numbers = #tpu.dot_dimension_numbers<[1], [0], [0], [1], [0, 0, 1, 1], [], []>} : vector<2x64xf32>, vector<64x256xf32>, vector<2x256xf32> -> vector<2x256xf32>
    %c10_74 = arith.constant 10 : index
    %c0_75 = arith.constant 0 : index
    %156 = vector.load %arg9[%c10_74, %c0_75] : memref<16x256xf32, #tpu.memory_space<vmem>>, vector<2x256xf32>
    %c4_76 = arith.constant 4 : index
    %c0_77 = arith.constant 0 : index
    %157 = vector.load %arg9[%c4_76, %c0_77] : memref<16x256xf32, #tpu.memory_space<vmem>>, vector<2x256xf32>
    %158 = arith.select %23, %156, %157 : vector<2x256xi1>, vector<2x256xf32>
    %159 = arith.addf %155, %158 : vector<2x256xf32>
    %160 = arith.negf %159 : vector<2x256xf32>
    %161 = math.exp %160 : vector<2x256xf32>
    %cst_78 = arith.constant 1.000000e+00 : f32
    %162 = vector.broadcast %cst_78 : f32 to vector<2x256xf32>
    %163 = arith.addf %162, %161 : vector<2x256xf32>
    %164 = arith.divf %162, %163 : vector<2x256xf32>
    %165 = math.tanh %159 : vector<2x256xf32>
    %166 = vector.extract_strided_slice %164 {offsets = [0, 0], sizes = [2, 64], strides = [1, 1]} : vector<2x256xf32> to vector<2x64xf32>
    %167 = vector.extract_strided_slice %164 {offsets = [0, 64], sizes = [2, 64], strides = [1, 1]} : vector<2x256xf32> to vector<2x64xf32>
    %168 = vector.extract_strided_slice %165 {offsets = [0, 128], sizes = [2, 64], strides = [1, 1]} : vector<2x256xf32> to vector<2x64xf32>
    %169 = vector.extract_strided_slice %164 {offsets = [0, 192], sizes = [2, 64], strides = [1, 1]} : vector<2x256xf32> to vector<2x64xf32>
    %170 = arith.mulf %167, %148 : vector<2x64xf32>
    %171 = arith.mulf %166, %168 : vector<2x64xf32>
    %172 = arith.addf %170, %171 : vector<2x64xf32>
    %173 = math.tanh %172 : vector<2x64xf32>
    %174 = arith.mulf %169, %173 : vector<2x64xf32>
    %175 = vector.extract_strided_slice %174 {offsets = [0, 0], sizes = [2, 32], strides = [1, 1]} : vector<2x64xf32> to vector<2x32xf32>
    %c10_79 = arith.constant 10 : index
    %c0_80 = arith.constant 0 : index
    %176 = vector.load %arg10[%c10_79, %c0_80] : memref<16x64xf32, #tpu.memory_space<vmem>>, vector<2x32xf32>
    tpu.vector_store %arg10[%c10_79, %c0_80], %175 {strides = array<i32>} : memref<16x64xf32, #tpu.memory_space<vmem>>, vector<2x32xf32>,
    %177 = vector.extract_strided_slice %174 {offsets = [0, 32], sizes = [2, 32], strides = [1, 1]} : vector<2x64xf32> to vector<2x32xf32>
    %c4_81 = arith.constant 4 : index
    %c32_82 = arith.constant 32 : index
    %178 = vector.load %arg10[%c4_81, %c32_82] : memref<16x64xf32, #tpu.memory_space<vmem>>, vector<2x32xf32>
    tpu.vector_store %arg10[%c4_81, %c32_82], %177 {strides = array<i32>} : memref<16x64xf32, #tpu.memory_space<vmem>>, vector<2x32xf32>,
    %cst_83 = arith.constant dense<0.000000e+00> : vector<2x256xf32>
    %179 = tpu.matmul %174, %25, %cst_83 {dimension_numbers = #tpu.dot_dimension_numbers<[1], [0], [0], [1], [0, 0, 1, 1], [], []>} : vector<2x64xf32>, vector<64x256xf32>, vector<2x256xf32> -> vector<2x256xf32>
    %c12_84 = arith.constant 12 : index
    %c0_85 = arith.constant 0 : index
    %180 = vector.load %arg9[%c12_84, %c0_85] : memref<16x256xf32, #tpu.memory_space<vmem>>, vector<2x256xf32>
    %c2_86 = arith.constant 2 : index
    %c0_87 = arith.constant 0 : index
    %181 = vector.load %arg9[%c2_86, %c0_87] : memref<16x256xf32, #tpu.memory_space<vmem>>, vector<2x256xf32>
    %182 = arith.select %23, %180, %181 : vector<2x256xi1>, vector<2x256xf32>
    %183 = arith.addf %179, %182 : vector<2x256xf32>
    %184 = arith.negf %183 : vector<2x256xf32>
    %185 = math.exp %184 : vector<2x256xf32>
    %cst_88 = arith.constant 1.000000e+00 : f32
    %186 = vector.broadcast %cst_88 : f32 to vector<2x256xf32>
    %187 = arith.addf %186, %185 : vector<2x256xf32>
    %188 = arith.divf %186, %187 : vector<2x256xf32>
    %189 = math.tanh %183 : vector<2x256xf32>
    %190 = vector.extract_strided_slice %188 {offsets = [0, 0], sizes = [2, 64], strides = [1, 1]} : vector<2x256xf32> to vector<2x64xf32>
    %191 = vector.extract_strided_slice %188 {offsets = [0, 64], sizes = [2, 64], strides = [1, 1]} : vector<2x256xf32> to vector<2x64xf32>
    %192 = vector.extract_strided_slice %189 {offsets = [0, 128], sizes = [2, 64], strides = [1, 1]} : vector<2x256xf32> to vector<2x64xf32>
    %193 = vector.extract_strided_slice %188 {offsets = [0, 192], sizes = [2, 64], strides = [1, 1]} : vector<2x256xf32> to vector<2x64xf32>
    %194 = arith.mulf %191, %172 : vector<2x64xf32>
    %195 = arith.mulf %190, %192 : vector<2x64xf32>
    %196 = arith.addf %194, %195 : vector<2x64xf32>
    %197 = math.tanh %196 : vector<2x64xf32>
    %198 = arith.mulf %193, %197 : vector<2x64xf32>
    %199 = vector.extract_strided_slice %198 {offsets = [0, 0], sizes = [2, 32], strides = [1, 1]} : vector<2x64xf32> to vector<2x32xf32>
    %c12_89 = arith.constant 12 : index
    %c0_90 = arith.constant 0 : index
    %200 = vector.load %arg10[%c12_89, %c0_90] : memref<16x64xf32, #tpu.memory_space<vmem>>, vector<2x32xf32>
    tpu.vector_store %arg10[%c12_89, %c0_90], %199 {strides = array<i32>} : memref<16x64xf32, #tpu.memory_space<vmem>>, vector<2x32xf32>,
    %201 = vector.extract_strided_slice %198 {offsets = [0, 32], sizes = [2, 32], strides = [1, 1]} : vector<2x64xf32> to vector<2x32xf32>
    %c2_91 = arith.constant 2 : index
    %c32_92 = arith.constant 32 : index
    %202 = vector.load %arg10[%c2_91, %c32_92] : memref<16x64xf32, #tpu.memory_space<vmem>>, vector<2x32xf32>
    tpu.vector_store %arg10[%c2_91, %c32_92], %201 {strides = array<i32>} : memref<16x64xf32, #tpu.memory_space<vmem>>, vector<2x32xf32>,
    %cst_93 = arith.constant dense<0.000000e+00> : vector<2x256xf32>
    %203 = tpu.matmul %198, %25, %cst_93 {dimension_numbers = #tpu.dot_dimension_numbers<[1], [0], [0], [1], [0, 0, 1, 1], [], []>} : vector<2x64xf32>, vector<64x256xf32>, vector<2x256xf32> -> vector<2x256xf32>
    %c14_94 = arith.constant 14 : index
    %c0_95 = arith.constant 0 : index
    %204 = vector.load %arg9[%c14_94, %c0_95] : memref<16x256xf32, #tpu.memory_space<vmem>>, vector<2x256xf32>
    %c0_96 = arith.constant 0 : index
    %c0_97 = arith.constant 0 : index
    %205 = vector.load %arg9[%c0_96, %c0_97] : memref<16x256xf32, #tpu.memory_space<vmem>>, vector<2x256xf32>
    %206 = arith.select %23, %204, %205 : vector<2x256xi1>, vector<2x256xf32>
    %207 = arith.addf %203, %206 : vector<2x256xf32>
    %208 = arith.negf %207 : vector<2x256xf32>
    %209 = math.exp %208 : vector<2x256xf32>
    %cst_98 = arith.constant 1.000000e+00 : f32
    %210 = vector.broadcast %cst_98 : f32 to vector<2x256xf32>
    %211 = arith.addf %210, %209 : vector<2x256xf32>
    %212 = arith.divf %210, %211 : vector<2x256xf32>
    %213 = math.tanh %207 : vector<2x256xf32>
    %214 = vector.extract_strided_slice %212 {offsets = [0, 0], sizes = [2, 64], strides = [1, 1]} : vector<2x256xf32> to vector<2x64xf32>
    %215 = vector.extract_strided_slice %212 {offsets = [0, 64], sizes = [2, 64], strides = [1, 1]} : vector<2x256xf32> to vector<2x64xf32>
    %216 = vector.extract_strided_slice %213 {offsets = [0, 128], sizes = [2, 64], strides = [1, 1]} : vector<2x256xf32> to vector<2x64xf32>
    %217 = vector.extract_strided_slice %212 {offsets = [0, 192], sizes = [2, 64], strides = [1, 1]} : vector<2x256xf32> to vector<2x64xf32>
    %218 = arith.mulf %215, %196 : vector<2x64xf32>
    %219 = arith.mulf %214, %216 : vector<2x64xf32>
    %220 = arith.addf %218, %219 : vector<2x64xf32>
    %221 = math.tanh %220 : vector<2x64xf32>
    %222 = arith.mulf %217, %221 : vector<2x64xf32>
    %223 = vector.extract_strided_slice %222 {offsets = [0, 0], sizes = [2, 32], strides = [1, 1]} : vector<2x64xf32> to vector<2x32xf32>
    %c14_99 = arith.constant 14 : index
    %c0_100 = arith.constant 0 : index
    %224 = vector.load %arg10[%c14_99, %c0_100] : memref<16x64xf32, #tpu.memory_space<vmem>>, vector<2x32xf32>
    tpu.vector_store %arg10[%c14_99, %c0_100], %223 {strides = array<i32>} : memref<16x64xf32, #tpu.memory_space<vmem>>, vector<2x32xf32>,
    %225 = vector.extract_strided_slice %222 {offsets = [0, 32], sizes = [2, 32], strides = [1, 1]} : vector<2x64xf32> to vector<2x32xf32>
    %c0_101 = arith.constant 0 : index
    %c32_102 = arith.constant 32 : index
    %226 = vector.load %arg10[%c0_101, %c32_102] : memref<16x64xf32, #tpu.memory_space<vmem>>, vector<2x32xf32>
    tpu.vector_store %arg10[%c0_101, %c32_102], %225 {strides = array<i32>} : memref<16x64xf32, #tpu.memory_space<vmem>>, vector<2x32xf32>,
    %c0_103 = arith.constant 0 : index
    %c0_104 = arith.constant 0 : index
    %227 = vector.load %arg10[%c0_103, %c0_104] : memref<16x64xf32, #tpu.memory_space<vmem>>, vector<16x64xf32>
    %cst_105 = arith.constant dense<0.000000e+00> : vector<16x256xf32>
    %228 = tpu.matmul %227, %24, %cst_105 {dimension_numbers = #tpu.dot_dimension_numbers<[1], [0], [0], [1], [0, 0, 1, 1], [], []>} : vector<16x64xf32>, vector<64x256xf32>, vector<16x256xf32> -> vector<16x256xf32>
    %229 = vector.broadcast %1 : vector<1x256xf32> to vector<16x256xf32>
    %230 = arith.addf %228, %229 : vector<16x256xf32>
    %c0_106 = arith.constant 0 : index
    %c0_107 = arith.constant 0 : index
    %231 = vector.load %arg9[%c0_106, %c0_107] : memref<16x256xf32, #tpu.memory_space<vmem>>, vector<16x256xf32>
    tpu.vector_store %arg9[%c0_106, %c0_107], %230 {strides = array<i32>} : memref<16x256xf32, #tpu.memory_space<vmem>>, vector<16x256xf32>,
    %cst_108 = arith.constant 0.000000e+00 : f32
    %232 = vector.broadcast %cst_108 : f32 to vector<2x64xf32>
    %cst_109 = arith.constant 0.000000e+00 : f32
    %233 = vector.broadcast %cst_109 : f32 to vector<2x64xf32>
    %cst_110 = arith.constant 0xFF800000 : f32
    %234 = vector.broadcast %cst_110 : f32 to vector<2x64xf32>
    %cst_111 = arith.constant 0x7F800000 : f32
    %235 = vector.broadcast %cst_111 : f32 to vector<2x64xf32>
    %cst_112 = arith.constant dense<0.000000e+00> : vector<2x256xf32>
    %236 = tpu.matmul %232, %26, %cst_112 {dimension_numbers = #tpu.dot_dimension_numbers<[1], [0], [0], [1], [0, 0, 1, 1], [], []>} : vector<2x64xf32>, vector<64x256xf32>, vector<2x256xf32> -> vector<2x256xf32>
    %c0_113 = arith.constant 0 : index
    %c0_114 = arith.constant 0 : index
    %237 = vector.load %arg9[%c0_113, %c0_114] : memref<16x256xf32, #tpu.memory_space<vmem>>, vector<2x256xf32>
    %c14_115 = arith.constant 14 : index
    %c0_116 = arith.constant 0 : index
    %238 = vector.load %arg9[%c14_115, %c0_116] : memref<16x256xf32, #tpu.memory_space<vmem>>, vector<2x256xf32>
    %239 = arith.select %23, %237, %238 : vector<2x256xi1>, vector<2x256xf32>
    %240 = arith.addf %236, %239 : vector<2x256xf32>
    %241 = arith.negf %240 : vector<2x256xf32>
    %242 = math.exp %241 : vector<2x256xf32>
    %cst_117 = arith.constant 1.000000e+00 : f32
    %243 = vector.broadcast %cst_117 : f32 to vector<2x256xf32>
    %244 = arith.addf %243, %242 : vector<2x256xf32>
    %245 = arith.divf %243, %244 : vector<2x256xf32>
    %246 = math.tanh %240 : vector<2x256xf32>
    %247 = vector.extract_strided_slice %245 {offsets = [0, 0], sizes = [2, 64], strides = [1, 1]} : vector<2x256xf32> to vector<2x64xf32>
    %248 = vector.extract_strided_slice %245 {offsets = [0, 64], sizes = [2, 64], strides = [1, 1]} : vector<2x256xf32> to vector<2x64xf32>
    %249 = vector.extract_strided_slice %246 {offsets = [0, 128], sizes = [2, 64], strides = [1, 1]} : vector<2x256xf32> to vector<2x64xf32>
    %250 = vector.extract_strided_slice %245 {offsets = [0, 192], sizes = [2, 64], strides = [1, 1]} : vector<2x256xf32> to vector<2x64xf32>
    %251 = arith.mulf %248, %233 : vector<2x64xf32>
    %252 = arith.mulf %247, %249 : vector<2x64xf32>
    %253 = arith.addf %251, %252 : vector<2x64xf32>
    %254 = math.tanh %253 : vector<2x64xf32>
    %255 = arith.mulf %250, %254 : vector<2x64xf32>
    %256 = arith.maximumf %234, %255 : vector<2x64xf32>
    %257 = arith.minimumf %235, %255 : vector<2x64xf32>
    %cst_118 = arith.constant dense<0.000000e+00> : vector<2x256xf32>
    %258 = tpu.matmul %255, %26, %cst_118 {dimension_numbers = #tpu.dot_dimension_numbers<[1], [0], [0], [1], [0, 0, 1, 1], [], []>} : vector<2x64xf32>, vector<64x256xf32>, vector<2x256xf32> -> vector<2x256xf32>
    %c2_119 = arith.constant 2 : index
    %c0_120 = arith.constant 0 : index
    %259 = vector.load %arg9[%c2_119, %c0_120] : memref<16x256xf32, #tpu.memory_space<vmem>>, vector<2x256xf32>
    %c12_121 = arith.constant 12 : index
    %c0_122 = arith.constant 0 : index
    %260 = vector.load %arg9[%c12_121, %c0_122] : memref<16x256xf32, #tpu.memory_space<vmem>>, vector<2x256xf32>
    %261 = arith.select %23, %259, %260 : vector<2x256xi1>, vector<2x256xf32>
    %262 = arith.addf %258, %261 : vector<2x256xf32>
    %263 = arith.negf %262 : vector<2x256xf32>
    %264 = math.exp %263 : vector<2x256xf32>
    %cst_123 = arith.constant 1.000000e+00 : f32
    %265 = vector.broadcast %cst_123 : f32 to vector<2x256xf32>
    %266 = arith.addf %265, %264 : vector<2x256xf32>
    %267 = arith.divf %265, %266 : vector<2x256xf32>
    %268 = math.tanh %262 : vector<2x256xf32>
    %269 = vector.extract_strided_slice %267 {offsets = [0, 0], sizes = [2, 64], strides = [1, 1]} : vector<2x256xf32> to vector<2x64xf32>
    %270 = vector.extract_strided_slice %267 {offsets = [0, 64], sizes = [2, 64], strides = [1, 1]} : vector<2x256xf32> to vector<2x64xf32>
    %271 = vector.extract_strided_slice %268 {offsets = [0, 128], sizes = [2, 64], strides = [1, 1]} : vector<2x256xf32> to vector<2x64xf32>
    %272 = vector.extract_strided_slice %267 {offsets = [0, 192], sizes = [2, 64], strides = [1, 1]} : vector<2x256xf32> to vector<2x64xf32>
    %273 = arith.mulf %270, %253 : vector<2x64xf32>
    %274 = arith.mulf %269, %271 : vector<2x64xf32>
    %275 = arith.addf %273, %274 : vector<2x64xf32>
    %276 = math.tanh %275 : vector<2x64xf32>
    %277 = arith.mulf %272, %276 : vector<2x64xf32>
    %278 = arith.maximumf %256, %277 : vector<2x64xf32>
    %279 = arith.minimumf %257, %277 : vector<2x64xf32>
    %cst_124 = arith.constant dense<0.000000e+00> : vector<2x256xf32>
    %280 = tpu.matmul %277, %26, %cst_124 {dimension_numbers = #tpu.dot_dimension_numbers<[1], [0], [0], [1], [0, 0, 1, 1], [], []>} : vector<2x64xf32>, vector<64x256xf32>, vector<2x256xf32> -> vector<2x256xf32>
    %c4_125 = arith.constant 4 : index
    %c0_126 = arith.constant 0 : index
    %281 = vector.load %arg9[%c4_125, %c0_126] : memref<16x256xf32, #tpu.memory_space<vmem>>, vector<2x256xf32>
    %c10_127 = arith.constant 10 : index
    %c0_128 = arith.constant 0 : index
    %282 = vector.load %arg9[%c10_127, %c0_128] : memref<16x256xf32, #tpu.memory_space<vmem>>, vector<2x256xf32>
    %283 = arith.select %23, %281, %282 : vector<2x256xi1>, vector<2x256xf32>
    %284 = arith.addf %280, %283 : vector<2x256xf32>
    %285 = arith.negf %284 : vector<2x256xf32>
    %286 = math.exp %285 : vector<2x256xf32>
    %cst_129 = arith.constant 1.000000e+00 : f32
    %287 = vector.broadcast %cst_129 : f32 to vector<2x256xf32>
    %288 = arith.addf %287, %286 : vector<2x256xf32>
    %289 = arith.divf %287, %288 : vector<2x256xf32>
    %290 = math.tanh %284 : vector<2x256xf32>
    %291 = vector.extract_strided_slice %289 {offsets = [0, 0], sizes = [2, 64], strides = [1, 1]} : vector<2x256xf32> to vector<2x64xf32>
    %292 = vector.extract_strided_slice %289 {offsets = [0, 64], sizes = [2, 64], strides = [1, 1]} : vector<2x256xf32> to vector<2x64xf32>
    %293 = vector.extract_strided_slice %290 {offsets = [0, 128], sizes = [2, 64], strides = [1, 1]} : vector<2x256xf32> to vector<2x64xf32>
    %294 = vector.extract_strided_slice %289 {offsets = [0, 192], sizes = [2, 64], strides = [1, 1]} : vector<2x256xf32> to vector<2x64xf32>
    %295 = arith.mulf %292, %275 : vector<2x64xf32>
    %296 = arith.mulf %291, %293 : vector<2x64xf32>
    %297 = arith.addf %295, %296 : vector<2x64xf32>
    %298 = math.tanh %297 : vector<2x64xf32>
    %299 = arith.mulf %294, %298 : vector<2x64xf32>
    %300 = arith.maximumf %278, %299 : vector<2x64xf32>
    %301 = arith.minimumf %279, %299 : vector<2x64xf32>
    %cst_130 = arith.constant dense<0.000000e+00> : vector<2x256xf32>
    %302 = tpu.matmul %299, %26, %cst_130 {dimension_numbers = #tpu.dot_dimension_numbers<[1], [0], [0], [1], [0, 0, 1, 1], [], []>} : vector<2x64xf32>, vector<64x256xf32>, vector<2x256xf32> -> vector<2x256xf32>
    %c6_131 = arith.constant 6 : index
    %c0_132 = arith.constant 0 : index
    %303 = vector.load %arg9[%c6_131, %c0_132] : memref<16x256xf32, #tpu.memory_space<vmem>>, vector<2x256xf32>
    %c8_133 = arith.constant 8 : index
    %c0_134 = arith.constant 0 : index
    %304 = vector.load %arg9[%c8_133, %c0_134] : memref<16x256xf32, #tpu.memory_space<vmem>>, vector<2x256xf32>
    %305 = arith.select %23, %303, %304 : vector<2x256xi1>, vector<2x256xf32>
    %306 = arith.addf %302, %305 : vector<2x256xf32>
    %307 = arith.negf %306 : vector<2x256xf32>
    %308 = math.exp %307 : vector<2x256xf32>
    %cst_135 = arith.constant 1.000000e+00 : f32
    %309 = vector.broadcast %cst_135 : f32 to vector<2x256xf32>
    %310 = arith.addf %309, %308 : vector<2x256xf32>
    %311 = arith.divf %309, %310 : vector<2x256xf32>
    %312 = math.tanh %306 : vector<2x256xf32>
    %313 = vector.extract_strided_slice %311 {offsets = [0, 0], sizes = [2, 64], strides = [1, 1]} : vector<2x256xf32> to vector<2x64xf32>
    %314 = vector.extract_strided_slice %311 {offsets = [0, 64], sizes = [2, 64], strides = [1, 1]} : vector<2x256xf32> to vector<2x64xf32>
    %315 = vector.extract_strided_slice %312 {offsets = [0, 128], sizes = [2, 64], strides = [1, 1]} : vector<2x256xf32> to vector<2x64xf32>
    %316 = vector.extract_strided_slice %311 {offsets = [0, 192], sizes = [2, 64], strides = [1, 1]} : vector<2x256xf32> to vector<2x64xf32>
    %317 = arith.mulf %314, %297 : vector<2x64xf32>
    %318 = arith.mulf %313, %315 : vector<2x64xf32>
    %319 = arith.addf %317, %318 : vector<2x64xf32>
    %320 = math.tanh %319 : vector<2x64xf32>
    %321 = arith.mulf %316, %320 : vector<2x64xf32>
    %322 = arith.maximumf %300, %321 : vector<2x64xf32>
    %323 = arith.minimumf %301, %321 : vector<2x64xf32>
    %cst_136 = arith.constant dense<0.000000e+00> : vector<2x256xf32>
    %324 = tpu.matmul %321, %26, %cst_136 {dimension_numbers = #tpu.dot_dimension_numbers<[1], [0], [0], [1], [0, 0, 1, 1], [], []>} : vector<2x64xf32>, vector<64x256xf32>, vector<2x256xf32> -> vector<2x256xf32>
    %c8_137 = arith.constant 8 : index
    %c0_138 = arith.constant 0 : index
    %325 = vector.load %arg9[%c8_137, %c0_138] : memref<16x256xf32, #tpu.memory_space<vmem>>, vector<2x256xf32>
    %c6_139 = arith.constant 6 : index
    %c0_140 = arith.constant 0 : index
    %326 = vector.load %arg9[%c6_139, %c0_140] : memref<16x256xf32, #tpu.memory_space<vmem>>, vector<2x256xf32>
    %327 = arith.select %23, %325, %326 : vector<2x256xi1>, vector<2x256xf32>
    %328 = arith.addf %324, %327 : vector<2x256xf32>
    %329 = arith.negf %328 : vector<2x256xf32>
    %330 = math.exp %329 : vector<2x256xf32>
    %cst_141 = arith.constant 1.000000e+00 : f32
    %331 = vector.broadcast %cst_141 : f32 to vector<2x256xf32>
    %332 = arith.addf %331, %330 : vector<2x256xf32>
    %333 = arith.divf %331, %332 : vector<2x256xf32>
    %334 = math.tanh %328 : vector<2x256xf32>
    %335 = vector.extract_strided_slice %333 {offsets = [0, 0], sizes = [2, 64], strides = [1, 1]} : vector<2x256xf32> to vector<2x64xf32>
    %336 = vector.extract_strided_slice %333 {offsets = [0, 64], sizes = [2, 64], strides = [1, 1]} : vector<2x256xf32> to vector<2x64xf32>
    %337 = vector.extract_strided_slice %334 {offsets = [0, 128], sizes = [2, 64], strides = [1, 1]} : vector<2x256xf32> to vector<2x64xf32>
    %338 = vector.extract_strided_slice %333 {offsets = [0, 192], sizes = [2, 64], strides = [1, 1]} : vector<2x256xf32> to vector<2x64xf32>
    %339 = arith.mulf %336, %319 : vector<2x64xf32>
    %340 = arith.mulf %335, %337 : vector<2x64xf32>
    %341 = arith.addf %339, %340 : vector<2x64xf32>
    %342 = math.tanh %341 : vector<2x64xf32>
    %343 = arith.mulf %338, %342 : vector<2x64xf32>
    %344 = arith.maximumf %322, %343 : vector<2x64xf32>
    %345 = arith.minimumf %323, %343 : vector<2x64xf32>
    %cst_142 = arith.constant dense<0.000000e+00> : vector<2x256xf32>
    %346 = tpu.matmul %343, %26, %cst_142 {dimension_numbers = #tpu.dot_dimension_numbers<[1], [0], [0], [1], [0, 0, 1, 1], [], []>} : vector<2x64xf32>, vector<64x256xf32>, vector<2x256xf32> -> vector<2x256xf32>
    %c10_143 = arith.constant 10 : index
    %c0_144 = arith.constant 0 : index
    %347 = vector.load %arg9[%c10_143, %c0_144] : memref<16x256xf32, #tpu.memory_space<vmem>>, vector<2x256xf32>
    %c4_145 = arith.constant 4 : index
    %c0_146 = arith.constant 0 : index
    %348 = vector.load %arg9[%c4_145, %c0_146] : memref<16x256xf32, #tpu.memory_space<vmem>>, vector<2x256xf32>
    %349 = arith.select %23, %347, %348 : vector<2x256xi1>, vector<2x256xf32>
    %350 = arith.addf %346, %349 : vector<2x256xf32>
    %351 = arith.negf %350 : vector<2x256xf32>
    %352 = math.exp %351 : vector<2x256xf32>
    %cst_147 = arith.constant 1.000000e+00 : f32
    %353 = vector.broadcast %cst_147 : f32 to vector<2x256xf32>
    %354 = arith.addf %353, %352 : vector<2x256xf32>
    %355 = arith.divf %353, %354 : vector<2x256xf32>
    %356 = math.tanh %350 : vector<2x256xf32>
    %357 = vector.extract_strided_slice %355 {offsets = [0, 0], sizes = [2, 64], strides = [1, 1]} : vector<2x256xf32> to vector<2x64xf32>
    %358 = vector.extract_strided_slice %355 {offsets = [0, 64], sizes = [2, 64], strides = [1, 1]} : vector<2x256xf32> to vector<2x64xf32>
    %359 = vector.extract_strided_slice %356 {offsets = [0, 128], sizes = [2, 64], strides = [1, 1]} : vector<2x256xf32> to vector<2x64xf32>
    %360 = vector.extract_strided_slice %355 {offsets = [0, 192], sizes = [2, 64], strides = [1, 1]} : vector<2x256xf32> to vector<2x64xf32>
    %361 = arith.mulf %358, %341 : vector<2x64xf32>
    %362 = arith.mulf %357, %359 : vector<2x64xf32>
    %363 = arith.addf %361, %362 : vector<2x64xf32>
    %364 = math.tanh %363 : vector<2x64xf32>
    %365 = arith.mulf %360, %364 : vector<2x64xf32>
    %366 = arith.maximumf %344, %365 : vector<2x64xf32>
    %367 = arith.minimumf %345, %365 : vector<2x64xf32>
    %cst_148 = arith.constant dense<0.000000e+00> : vector<2x256xf32>
    %368 = tpu.matmul %365, %26, %cst_148 {dimension_numbers = #tpu.dot_dimension_numbers<[1], [0], [0], [1], [0, 0, 1, 1], [], []>} : vector<2x64xf32>, vector<64x256xf32>, vector<2x256xf32> -> vector<2x256xf32>
    %c12_149 = arith.constant 12 : index
    %c0_150 = arith.constant 0 : index
    %369 = vector.load %arg9[%c12_149, %c0_150] : memref<16x256xf32, #tpu.memory_space<vmem>>, vector<2x256xf32>
    %c2_151 = arith.constant 2 : index
    %c0_152 = arith.constant 0 : index
    %370 = vector.load %arg9[%c2_151, %c0_152] : memref<16x256xf32, #tpu.memory_space<vmem>>, vector<2x256xf32>
    %371 = arith.select %23, %369, %370 : vector<2x256xi1>, vector<2x256xf32>
    %372 = arith.addf %368, %371 : vector<2x256xf32>
    %373 = arith.negf %372 : vector<2x256xf32>
    %374 = math.exp %373 : vector<2x256xf32>
    %cst_153 = arith.constant 1.000000e+00 : f32
    %375 = vector.broadcast %cst_153 : f32 to vector<2x256xf32>
    %376 = arith.addf %375, %374 : vector<2x256xf32>
    %377 = arith.divf %375, %376 : vector<2x256xf32>
    %378 = math.tanh %372 : vector<2x256xf32>
    %379 = vector.extract_strided_slice %377 {offsets = [0, 0], sizes = [2, 64], strides = [1, 1]} : vector<2x256xf32> to vector<2x64xf32>
    %380 = vector.extract_strided_slice %377 {offsets = [0, 64], sizes = [2, 64], strides = [1, 1]} : vector<2x256xf32> to vector<2x64xf32>
    %381 = vector.extract_strided_slice %378 {offsets = [0, 128], sizes = [2, 64], strides = [1, 1]} : vector<2x256xf32> to vector<2x64xf32>
    %382 = vector.extract_strided_slice %377 {offsets = [0, 192], sizes = [2, 64], strides = [1, 1]} : vector<2x256xf32> to vector<2x64xf32>
    %383 = arith.mulf %380, %363 : vector<2x64xf32>
    %384 = arith.mulf %379, %381 : vector<2x64xf32>
    %385 = arith.addf %383, %384 : vector<2x64xf32>
    %386 = math.tanh %385 : vector<2x64xf32>
    %387 = arith.mulf %382, %386 : vector<2x64xf32>
    %388 = arith.maximumf %366, %387 : vector<2x64xf32>
    %389 = arith.minimumf %367, %387 : vector<2x64xf32>
    %cst_154 = arith.constant dense<0.000000e+00> : vector<2x256xf32>
    %390 = tpu.matmul %387, %26, %cst_154 {dimension_numbers = #tpu.dot_dimension_numbers<[1], [0], [0], [1], [0, 0, 1, 1], [], []>} : vector<2x64xf32>, vector<64x256xf32>, vector<2x256xf32> -> vector<2x256xf32>
    %c14_155 = arith.constant 14 : index
    %c0_156 = arith.constant 0 : index
    %391 = vector.load %arg9[%c14_155, %c0_156] : memref<16x256xf32, #tpu.memory_space<vmem>>, vector<2x256xf32>
    %c0_157 = arith.constant 0 : index
    %c0_158 = arith.constant 0 : index
    %392 = vector.load %arg9[%c0_157, %c0_158] : memref<16x256xf32, #tpu.memory_space<vmem>>, vector<2x256xf32>
    %393 = arith.select %23, %391, %392 : vector<2x256xi1>, vector<2x256xf32>
    %394 = arith.addf %390, %393 : vector<2x256xf32>
    %395 = arith.negf %394 : vector<2x256xf32>
    %396 = math.exp %395 : vector<2x256xf32>
    %cst_159 = arith.constant 1.000000e+00 : f32
    %397 = vector.broadcast %cst_159 : f32 to vector<2x256xf32>
    %398 = arith.addf %397, %396 : vector<2x256xf32>
    %399 = arith.divf %397, %398 : vector<2x256xf32>
    %400 = math.tanh %394 : vector<2x256xf32>
    %401 = vector.extract_strided_slice %399 {offsets = [0, 0], sizes = [2, 64], strides = [1, 1]} : vector<2x256xf32> to vector<2x64xf32>
    %402 = vector.extract_strided_slice %399 {offsets = [0, 64], sizes = [2, 64], strides = [1, 1]} : vector<2x256xf32> to vector<2x64xf32>
    %403 = vector.extract_strided_slice %400 {offsets = [0, 128], sizes = [2, 64], strides = [1, 1]} : vector<2x256xf32> to vector<2x64xf32>
    %404 = vector.extract_strided_slice %399 {offsets = [0, 192], sizes = [2, 64], strides = [1, 1]} : vector<2x256xf32> to vector<2x64xf32>
    %405 = arith.mulf %402, %385 : vector<2x64xf32>
    %406 = arith.mulf %401, %403 : vector<2x64xf32>
    %407 = arith.addf %405, %406 : vector<2x64xf32>
    %408 = math.tanh %407 : vector<2x64xf32>
    %409 = arith.mulf %404, %408 : vector<2x64xf32>
    %410 = arith.maximumf %388, %409 : vector<2x64xf32>
    %411 = arith.minimumf %389, %409 : vector<2x64xf32>
    %cst_160 = arith.constant 0.000000e+00 : f32
    %412 = vector.broadcast %cst_160 : f32 to vector<1x64xf32>
    %413 = arith.cmpf oge, %2, %412 : vector<1x64xf32>
    %414 = vector.broadcast %2 : vector<1x64xf32> to vector<2x64xf32>
    %415 = arith.mulf %414, %410 : vector<2x64xf32>
    %416 = vector.broadcast %3 : vector<1x64xf32> to vector<2x64xf32>
    %417 = arith.addf %415, %416 : vector<2x64xf32>
    %418 = vector.broadcast %2 : vector<1x64xf32> to vector<2x64xf32>
    %419 = arith.mulf %418, %411 : vector<2x64xf32>
    %420 = vector.broadcast %3 : vector<1x64xf32> to vector<2x64xf32>
    %421 = arith.addf %419, %420 : vector<2x64xf32>
    %422 = vector.shape_cast %413 : vector<1x64xi1> to vector<1x64xi1>
    %423 = vector.broadcast %422 : vector<1x64xi1> to vector<2x64xi1>
    %424 = arith.select %423, %417, %421 : vector<2x64xi1>, vector<2x64xf32>
    %c0_161 = arith.constant 0 : index
    %c0_162 = arith.constant 0 : index
    %425 = vector.load %arg6[%c0_161, %c0_162] : memref<448x64xf32, #tpu.memory_space<vmem>>, vector<64x64xf32>
    %c64_163 = arith.constant 64 : index
    %c0_164 = arith.constant 0 : index
    %426 = vector.load %arg6[%c64_163, %c0_164] : memref<448x64xf32, #tpu.memory_space<vmem>>, vector<64x64xf32>
    %c128_165 = arith.constant 128 : index
    %c0_166 = arith.constant 0 : index
    %427 = vector.load %arg6[%c128_165, %c0_166] : memref<448x64xf32, #tpu.memory_space<vmem>>, vector<192x64xf32>
    %c320 = arith.constant 320 : index
    %c0_167 = arith.constant 0 : index
    %428 = vector.load %arg6[%c320, %c0_167] : memref<448x64xf32, #tpu.memory_space<vmem>>, vector<64x64xf32>
    %c384 = arith.constant 384 : index
    %c0_168 = arith.constant 0 : index
    %429 = vector.load %arg6[%c384, %c0_168] : memref<448x64xf32, #tpu.memory_space<vmem>>, vector<64x64xf32>
    %cst_169 = arith.constant dense<0.000000e+00> : vector<2x64xf32>
    %430 = tpu.matmul %424, %425, %cst_169 {dimension_numbers = #tpu.dot_dimension_numbers<[1], [0], [0], [1], [0, 0, 1, 1], [], []>} : vector<2x64xf32>, vector<64x64xf32>, vector<2x64xf32> -> vector<2x64xf32>
    %431 = vector.broadcast %4 : vector<1x64xf32> to vector<2x64xf32>
    %432 = arith.addf %430, %431 : vector<2x64xf32>
    %cst_170 = arith.constant 0.000000e+00 : f32
    %433 = vector.broadcast %cst_170 : f32 to vector<2x64xf32>
    %434 = arith.maximumf %432, %433 : vector<2x64xf32>
    %c0_171 = arith.constant 0 : index
    %c0_172 = arith.constant 0 : index
    %435 = vector.load %arg2[%c0_171, %c0_172] : memref<2x896xf32, #tpu.memory_space<vmem>>, vector<2x64xf32>
    %c0_173 = arith.constant 0 : index
    %c64_174 = arith.constant 64 : index
    %436 = vector.load %arg2[%c0_173, %c64_174] : memref<2x896xf32, #tpu.memory_space<vmem>>, vector<2x64xf32>
    %cst_175 = arith.constant dense<0.000000e+00> : vector<2x64xf32>
    %437 = tpu.matmul %436, %426, %cst_175 {dimension_numbers = #tpu.dot_dimension_numbers<[1], [0], [0], [1], [0, 0, 1, 1], [], []>} : vector<2x64xf32>, vector<64x64xf32>, vector<2x64xf32> -> vector<2x64xf32>
    %438 = vector.broadcast %5 : vector<1x64xf32> to vector<2x64xf32>
    %439 = arith.addf %437, %438 : vector<2x64xf32>
    %cst_176 = arith.constant 0.000000e+00 : f32
    %440 = vector.broadcast %cst_176 : f32 to vector<2x64xf32>
    %441 = arith.maximumf %439, %440 : vector<2x64xf32>
    %c0_177 = arith.constant 0 : index
    %c128_178 = arith.constant 128 : index
    %442 = vector.load %arg2[%c0_177, %c128_178] : memref<2x896xf32, #tpu.memory_space<vmem>>, vector<2x768xf32>
    %443 = arith.truncf %442 : vector<2x768xf32> to vector<2x768xbf16>
    %c0_179 = arith.constant 0 : index
    %c0_180 = arith.constant 0 : index
    %444 = vector.load %arg5[%c0_179, %c0_180] : memref<768x192xbf16, #tpu.memory_space<vmem>>, vector<768x192xbf16>
    %cst_181 = arith.constant dense<0.000000e+00> : vector<2x192xf32>
    %445 = tpu.matmul %443, %444, %cst_181 {dimension_numbers = #tpu.dot_dimension_numbers<[1], [0], [0], [1], [0, 0, 1, 1], [], []>} : vector<2x768xbf16>, vector<768x192xbf16>, vector<2x192xf32> -> vector<2x192xf32>
    %446 = vector.broadcast %8 : vector<1x192xf32> to vector<2x192xf32>
    %447 = arith.addf %445, %446 : vector<2x192xf32>
    %cst_182 = arith.constant 0.000000e+00 : f32
    %448 = vector.broadcast %cst_182 : f32 to vector<2x192xf32>
    %449 = arith.maximumf %447, %448 : vector<2x192xf32>
    %cst_183 = arith.constant dense<0.000000e+00> : vector<2x64xf32>
    %450 = tpu.matmul %449, %427, %cst_183 {dimension_numbers = #tpu.dot_dimension_numbers<[1], [0], [0], [1], [0, 0, 1, 1], [], []>} : vector<2x192xf32>, vector<192x64xf32>, vector<2x64xf32> -> vector<2x64xf32>
    %451 = vector.broadcast %6 : vector<1x64xf32> to vector<2x64xf32>
    %452 = arith.addf %450, %451 : vector<2x64xf32>
    %cst_184 = arith.constant 0.000000e+00 : f32
    %453 = vector.broadcast %cst_184 : f32 to vector<2x64xf32>
    %454 = arith.maximumf %452, %453 : vector<2x64xf32>
    %455 = tpu.concatenate %434, %435, %441, %454 in 0 : vector<2x64xf32>, vector<2x64xf32>, vector<2x64xf32>, vector<2x64xf32> -> vector<8x64xf32>
    %cst_185 = arith.constant dense<0.000000e+00> : vector<8x64xf32>
    %456 = tpu.matmul %455, %428, %cst_185 {dimension_numbers = #tpu.dot_dimension_numbers<[1], [0], [0], [1], [0, 0, 1, 1], [], []>} : vector<8x64xf32>, vector<64x64xf32>, vector<8x64xf32> -> vector<8x64xf32>
    %457 = vector.broadcast %7 : vector<1x64xf32> to vector<8x64xf32>
    %458 = arith.addf %456, %457 : vector<8x64xf32>
    %cst_186 = arith.constant 0.000000e+00 : f32
    %459 = vector.broadcast %cst_186 : f32 to vector<8x64xf32>
    %460 = arith.maximumf %458, %459 : vector<8x64xf32>
    %461 = math.tanh %460 : vector<8x64xf32>
    %462 = vector.broadcast %9 : vector<1x64xf32> to vector<8x64xf32>
    %463 = arith.mulf %461, %462 : vector<8x64xf32>
    %cst_187 = arith.constant dense<0.000000e+00> : vector<8xf32>
    %464 = vector.multi_reduction <add>, %463, %cst_187 [1] : vector<8x64xf32> to vector<8xf32>
    %465 = vector.shape_cast %464 : vector<8xf32> to vector<8x1xf32>
    %466 = vector.extract_strided_slice %465 {offsets = [0, 0], sizes = [2, 1], strides = [1, 1]} : vector<8x1xf32> to vector<2x1xf32>
    %467 = vector.extract_strided_slice %465 {offsets = [2, 0], sizes = [2, 1], strides = [1, 1]} : vector<8x1xf32> to vector<2x1xf32>
    %468 = vector.extract_strided_slice %465 {offsets = [4, 0], sizes = [2, 1], strides = [1, 1]} : vector<8x1xf32> to vector<2x1xf32>
    %469 = vector.extract_strided_slice %465 {offsets = [6, 0], sizes = [2, 1], strides = [1, 1]} : vector<8x1xf32> to vector<2x1xf32>
    %470 = tpu.concatenate %466, %467, %468, %469 in 1 : vector<2x1xf32>, vector<2x1xf32>, vector<2x1xf32>, vector<2x1xf32> -> vector<2x4xf32>
    %cst_188 = arith.constant dense<0xFF800000> : vector<2xf32>
    %471 = vector.multi_reduction <maximumf>, %470, %cst_188 [1] : vector<2x4xf32> to vector<2xf32>
    %472 = vector.shape_cast %471 : vector<2xf32> to vector<2x1xf32>
    %473 = vector.broadcast %472 : vector<2x1xf32> to vector<2x4xf32>
    %474 = arith.subf %470, %473 : vector<2x4xf32>
    %475 = math.exp %474 : vector<2x4xf32>
    %cst_189 = arith.constant dense<0.000000e+00> : vector<2xf32>
    %476 = vector.multi_reduction <add>, %475, %cst_189 [1] : vector<2x4xf32> to vector<2xf32>
    %477 = vector.shape_cast %476 : vector<2xf32> to vector<2x1xf32>
    %478 = vector.broadcast %477 : vector<2x1xf32> to vector<2x4xf32>
    %479 = arith.divf %475, %478 : vector<2x4xf32>
    %cst_190 = arith.constant 0.000000e+00 : f32
    %480 = vector.broadcast %cst_190 : f32 to vector<2x64xf32>
    %481 = vector.extract_strided_slice %479 {offsets = [0, 0], sizes = [2, 1], strides = [1, 1]} : vector<2x4xf32> to vector<2x1xf32>
    %482 = vector.extract_strided_slice %460 {offsets = [0, 0], sizes = [2, 64], strides = [1, 1]} : vector<8x64xf32> to vector<2x64xf32>
    %483 = vector.broadcast %481 : vector<2x1xf32> to vector<2x64xf32>
    %484 = arith.mulf %483, %482 : vector<2x64xf32>
    %485 = arith.addf %480, %484 : vector<2x64xf32>
    %486 = vector.extract_strided_slice %479 {offsets = [0, 1], sizes = [2, 1], strides = [1, 1]} : vector<2x4xf32> to vector<2x1xf32>
    %487 = vector.extract_strided_slice %460 {offsets = [2, 0], sizes = [2, 64], strides = [1, 1]} : vector<8x64xf32> to vector<2x64xf32>
    %488 = vector.broadcast %486 : vector<2x1xf32> to vector<2x64xf32>
    %489 = arith.mulf %488, %487 : vector<2x64xf32>
    %490 = arith.addf %485, %489 : vector<2x64xf32>
    %491 = vector.extract_strided_slice %479 {offsets = [0, 2], sizes = [2, 1], strides = [1, 1]} : vector<2x4xf32> to vector<2x1xf32>
    %492 = vector.extract_strided_slice %460 {offsets = [4, 0], sizes = [2, 64], strides = [1, 1]} : vector<8x64xf32> to vector<2x64xf32>
    %493 = vector.broadcast %491 : vector<2x1xf32> to vector<2x64xf32>
    %494 = arith.mulf %493, %492 : vector<2x64xf32>
    %495 = arith.addf %490, %494 : vector<2x64xf32>
    %496 = vector.extract_strided_slice %479 {offsets = [0, 3], sizes = [2, 1], strides = [1, 1]} : vector<2x4xf32> to vector<2x1xf32>
    %497 = vector.extract_strided_slice %460 {offsets = [6, 0], sizes = [2, 64], strides = [1, 1]} : vector<8x64xf32> to vector<2x64xf32>
    %498 = vector.broadcast %496 : vector<2x1xf32> to vector<2x64xf32>
    %499 = arith.mulf %498, %497 : vector<2x64xf32>
    %500 = arith.addf %495, %499 : vector<2x64xf32>
    %cst_191 = arith.constant 0.000000e+00 : f32
    %501 = vector.broadcast %cst_191 : f32 to vector<2x64xf32>
    %502 = arith.maximumf %500, %501 : vector<2x64xf32>
    %cst_192 = arith.constant dense<0.000000e+00> : vector<2x64xf32>
    %503 = tpu.matmul %502, %429, %cst_192 {dimension_numbers = #tpu.dot_dimension_numbers<[1], [0], [0], [1], [0, 0, 1, 1], [], []>} : vector<2x64xf32>, vector<64x64xf32>, vector<2x64xf32> -> vector<2x64xf32>
    %504 = vector.broadcast %10 : vector<1x64xf32> to vector<2x64xf32>
    %505 = arith.addf %503, %504 : vector<2x64xf32>
    %c0_193 = arith.constant 0 : index
    %c0_194 = arith.constant 0 : index
    %506 = vector.load %arg8[%c0_193, %c0_194] : memref<2x64xf32, #tpu.memory_space<vmem>>, vector<2x64xf32>
    tpu.vector_store %arg8[%c0_193, %c0_194], %505 {strides = array<i32>} : memref<2x64xf32, #tpu.memory_space<vmem>>, vector<2x64xf32>,
    return
  }
}

</mosaic_0001>

<llo_original>
// kernel: la_model_forward.1
$region0: #{la_model_forward.1}
  #allocation0 [shape = 'u32[]', space=smem, size = 0x4, offset = 0x4, fixed_abs, tag = 'smem constant byte address 0x4 - core index']
  #allocation1 [shape = 'u32[72,128]{1,0:T(1,128)}', space=vmem, size = 0x9000, scoped, tag = 'internal scratch']
  #allocation2 [shape = 'f32[16,256]{1,0:T(8,128)}', space=vmem, size = 0x4000, scoped, tag = 'scratch operand']
  #allocation3 [shape = 'f32[16,64]{1,0:T(8,128)}', space=vmem, size = 0x2000, scoped, tag = 'scratch operand']
  %s0 = inlined_call_operand.vmem [shape: s32[16,1], index: 0, kind: input, shape index: {}]
  %s1 = inlined_call_operand.vmem [shape: f32[64,384], index: 1, kind: input, shape index: {}]
  %s2 = inlined_call_operand.vmem [shape: f32[2,896], index: 2, kind: input, shape index: {}]
  %s3 = inlined_call_operand.vmem [shape: bf16[384,256], index: 3, kind: input, shape index: {}]
  %s4 = inlined_call_operand.vmem [shape: f32[192,256], index: 4, kind: input, shape index: {}]
  %s5 = inlined_call_operand.vmem [shape: bf16[768,192], index: 5, kind: input, shape index: {}]
  %s6 = inlined_call_operand.vmem [shape: f32[448,64], index: 6, kind: input, shape index: {}]
  %s7 = inlined_call_operand.vmem [shape: f32[8,256], index: 7, kind: input, shape index: {}]
  %s8 = inlined_call_operand.vmem [shape: f32[2,64], index: 8, kind: output, shape index: {}]
  %s9 = sld [smem:[#allocation0]]
  $region42: #{la_model_forward.1} parent=0
    _
  %s11 = ssub.s32 1, %s9
  %s12 = scalar_select 0, %s11, %s9
  // Predicated region
  $region2: #{la_model_forward.1} parent=0 // pred_check
    _
  $region3: #{la_model_forward.1} parent=0 // pred_check_branch
    %14 = sbr.rel (0) target = $region5
  $region4: #{la_model_forward.1} parent=0 // pred_region
    _
  $region5: #{la_model_forward.1} parent=0 // pred_fallthru
    _
  // Predicated region
  $region6: #{la_model_forward.1} parent=0 // pred_check
    _
  $region7: #{la_model_forward.1} parent=0 // pred_check_branch
    %16 = sbr.rel (0) target = $region9
  $region8: #{la_model_forward.1} parent=0 // pred_region
    _
  $region9: #{la_model_forward.1} parent=0 // pred_fallthru
    _
  // Predicated region
  $region10: #{la_model_forward.1} parent=0 // pred_check
    _
  $region11: #{la_model_forward.1} parent=0 // pred_check_branch
    %18 = sbr.rel (0) target = $region13
  $region12: #{la_model_forward.1} parent=0 // pred_region
    _
  $region13: #{la_model_forward.1} parent=0 // pred_fallthru
    _
  // Predicated region
  $region14: #{la_model_forward.1} parent=0 // pred_check
    _
  $region15: #{la_model_forward.1} parent=0 // pred_check_branch
    %20 = sbr.rel (0) target = $region17
  $region16: #{la_model_forward.1} parent=0 // pred_region
    _
  $region17: #{la_model_forward.1} parent=0 // pred_fallthru
    _
  // Predicated region
  $region18: #{la_model_forward.1} parent=0 // pred_check
    _
  $region19: #{la_model_forward.1} parent=0 // pred_check_branch
    %22 = sbr.rel (0) target = $region21
  $region20: #{la_model_forward.1} parent=0 // pred_region
    _
  $region21: #{la_model_forward.1} parent=0 // pred_fallthru
    _
  // Predicated region
  $region22: #{la_model_forward.1} parent=0 // pred_check
    _
  $region23: #{la_model_forward.1} parent=0 // pred_check_branch
    %24 = sbr.rel (0) target = $region25
  $region24: #{la_model_forward.1} parent=0 // pred_region
    _
  $region25: #{la_model_forward.1} parent=0 // pred_fallthru
    _
  // Predicated region
  $region26: #{la_model_forward.1} parent=0 // pred_check
    _
  $region27: #{la_model_forward.1} parent=0 // pred_check_branch
    %26 = sbr.rel (0) target = $region29
  $region28: #{la_model_forward.1} parent=0 // pred_region
    _
  $region29: #{la_model_forward.1} parent=0 // pred_fallthru
    _
  // Predicated region
  $region30: #{la_model_forward.1} parent=0 // pred_check
    _
  $region31: #{la_model_forward.1} parent=0 // pred_check_branch
    %28 = sbr.rel (0) target = $region33
  $region32: #{la_model_forward.1} parent=0 // pred_region
    _
  $region33: #{la_model_forward.1} parent=0 // pred_fallthru
    _
  %v29 = vld [vmem:[%s7] ss:$8 sm:$0x3]
  %s30 = scalar_lea.vmem %s7, 1
  %v31 = vld [vmem:[%s30] ss:$8 sm:$0x3]
  %v32 = vld [vmem:[%s7 + $0x2] ss:$0 sm:$0xff]
  %v33 = vld [vmem:[%s7 + $0x3] ss:$0 sm:$0xff]
  %v34 = vld [vmem:[%s7 + $0x4] ss:$0 sm:$0xff]
  %v35 = vld [vmem:[%s7 + $0xc] ss:$0 sm:$0xff]
  %s36 = scalar_lea.vmem %s7, 5
  %v37 = vld [vmem:[%s36] ss:$8 sm:$0x3]
  %v38 = vld [vmem:[%s7 + $0x6] ss:$0 sm:$0xff]
  %v39 = vld [vmem:[%s7 + $0x7] ss:$0 sm:$0xff]
  %v40 = vld [vmem:[%s0] sm:$0xff]
  %v41 = vld [vmem:[%s0 + $0x8] sm:$0xff]
  %v42 = vlaneseq
  %v43 = vand.u32 %v42, 127
  %44 = vset.pattern.permute.xlu0 0
  %45 = vperm.xlu0 %44, %v40
  %v46 = vpop.permute.xlu0 %45
  %47 = vset.pattern.permute.xlu0 0
  %48 = vperm.xlu0 %47, %v41
  %v49 = vpop.permute.xlu0 %48
  %vm50 = vcmp.eq.s32.totalorder %v43, %v46
  %vm51 = vcmp.eq.s32.totalorder %v43, %v49
  %v52 = vsel %vm50, 1, 0
  %v53 = vsel %vm51, 1, 0
  %v54 = vcvt.s32.f32 %v52
  %v55 = vcvt.s32.f32 %v53
  %v56 = vld [vmem:[%s1] sm:$0xff]
  %v57 = vld [vmem:[%s1 + $0x8] sm:$0xff]
  %v58 = vld [vmem:[%s1 + $0x10] sm:$0xff]
  %v59 = vld [vmem:[%s1 + $0x18] sm:$0xff]
  %v60 = vld [vmem:[%s1 + $0x20] sm:$0xff]
  %v61 = vld [vmem:[%s1 + $0x28] sm:$0xff]
  %v62 = vld [vmem:[%s1 + $0x30] sm:$0xff]
  %v63 = vld [vmem:[%s1 + $0x38] sm:$0xff]
  %v64 = vld [vmem:[%s1 + $0x40] sm:$0xff]
  %v65 = vld [vmem:[%s1 + $0x48] sm:$0xff]
  %v66 = vld [vmem:[%s1 + $0x50] sm:$0xff]
  %v67 = vld [vmem:[%s1 + $0x58] sm:$0xff]
  %v68 = vld [vmem:[%s1 + $0x60] sm:$0xff]
  %v69 = vld [vmem:[%s1 + $0x68] sm:$0xff]
  %v70 = vld [vmem:[%s1 + $0x70] sm:$0xff]
  %v71 = vld [vmem:[%s1 + $0x78] sm:$0xff]
  %v72 = vld [vmem:[%s1 + $0x80] sm:$0xff]
  %v73 = vld [vmem:[%s1 + $0x88] sm:$0xff]
  %v74 = vld [vmem:[%s1 + $0x90] sm:$0xff]
  %v75 = vld [vmem:[%s1 + $0x98] sm:$0xff]
  %v76 = vld [vmem:[%s1 + $0xa0] sm:$0xff]
  %v77 = vld [vmem:[%s1 + $0xa8] sm:$0xff]
  %v78 = vld [vmem:[%s1 + $0xb0] sm:$0xff]
  %v79 = vld [vmem:[%s1 + $0xb8] sm:$0xff]
  %vm80 = vcmask 523264
  %v82 = vsel %vm80, %v54, 0
  %v85 = vsel %vm80, %v55, 0
  %87 = vmatpush.msra.mxu0 0.0
  %88 = vmatpush.msra.mxu0 0.0
  %89 = vmatpush.msra.mxu0 0.0
  %90 = vmatpush.msra.mxu0 0.0
  %91 = vmatpush.msra.mxu0 0.0
  %92 = vmatpush.msra.mxu0 0.0
  %93 = vmatpush.msra.mxu0 0.0
  %94 = vmatpush.msra.mxu0 0.0
  %95 = vmatpush.msra.mxu0 %v77
  %96 = vmatpush.msra.mxu0 %v74
  %97 = vmatpush.msra.mxu0 %v71
  %98 = vmatpush.msra.mxu0 %v68
  %99 = vmatpush.msra.mxu0 %v65
  %100 = vmatpush.msra.mxu0 %v62
  %101 = vmatpush.msra.mxu0 %v59
  %102 = vmatpush.msra.mxu0 %v56
  %103 = vmatmul.f32.gmra.mxu0 %v82
  %v104 = vpop.f32.mrf.mxu0
  %v105 = vadd.f32 0.0, %v104
  %106 = vmatmul.f32.gmra.mxu0 %v85
  %v107 = vpop.f32.mrf.mxu0
  %v108 = vadd.f32 0.0, %v107
  %109 = vdwg.mxu0
  %110 = vmatpush.msra.mxu0 0.0
  %111 = vmatpush.msra.mxu0 0.0
  %112 = vmatpush.msra.mxu0 0.0
  %113 = vmatpush.msra.mxu0 0.0
  %114 = vmatpush.msra.mxu0 0.0
  %115 = vmatpush.msra.mxu0 0.0
  %116 = vmatpush.msra.mxu0 0.0
  %117 = vmatpush.msra.mxu0 0.0
  %118 = vmatpush.msra.mxu0 %v78
  %119 = vmatpush.msra.mxu0 %v75
  %120 = vmatpush.msra.mxu0 %v72
  %121 = vmatpush.msra.mxu0 %v69
  %122 = vmatpush.msra.mxu0 %v66
  %123 = vmatpush.msra.mxu0 %v63
  %124 = vmatpush.msra.mxu0 %v60
  %125 = vmatpush.msra.mxu0 %v57
  %126 = vmatmul.f32.gmra.mxu0 %v82
  %v127 = vpop.f32.mrf.mxu0
  %v128 = vadd.f32 0.0, %v127
  %129 = vmatmul.f32.gmra.mxu0 %v85
  %v130 = vpop.f32.mrf.mxu0
  %v131 = vadd.f32 0.0, %v130
  %132 = vdwg.mxu0
  %133 = vmatpush.msra.mxu0 0.0
  %134 = vmatpush.msra.mxu0 0.0
  %135 = vmatpush.msra.mxu0 0.0
  %136 = vmatpush.msra.mxu0 0.0
  %137 = vmatpush.msra.mxu0 0.0
  %138 = vmatpush.msra.mxu0 0.0
  %139 = vmatpush.msra.mxu0 0.0
  %140 = vmatpush.msra.mxu0 0.0
  %141 = vmatpush.msra.mxu0 %v79
  %142 = vmatpush.msra.mxu0 %v76
  %143 = vmatpush.msra.mxu0 %v73
  %144 = vmatpush.msra.mxu0 %v70
  %145 = vmatpush.msra.mxu0 %v67
  %146 = vmatpush.msra.mxu0 %v64
  %147 = vmatpush.msra.mxu0 %v61
  %148 = vmatpush.msra.mxu0 %v58
  %149 = vmatmul.f32.gmra.mxu0 %v82
  %v150 = vpop.f32.mrf.mxu0
  %v151 = vadd.f32 0.0, %v150
  %152 = vmatmul.f32.gmra.mxu0 %v85
  %v153 = vpop.f32.mrf.mxu0
  %v154 = vadd.f32 0.0, %v153
  %155 = vdwg.mxu0
  %v156 = vadd.s32 %v43, 128
  %v157 = vand.u32 %v43, 32
  %v158 = vand.u32 %v156, 32
  %vm159 = vcmp.eq.s32.totalorder %v157, 0
  %vm160 = vcmp.eq.s32.totalorder %v158, 0
  %v161 = vld [vmem:[%s4] sm:$0xff]
  %v162 = vld [vmem:[%s4 + $0x8] sm:$0xff]
  %v163 = vld [vmem:[%s4 + $0x10] sm:$0xff]
  %v164 = vld [vmem:[%s4 + $0x18] sm:$0xff]
  %v165 = vld [vmem:[%s4 + $0x20] sm:$0xff]
  %v166 = vld [vmem:[%s4 + $0x28] sm:$0xff]
  %v167 = vld [vmem:[%s4 + $0x30] sm:$0xff]
  %v168 = vld [vmem:[%s4 + $0x38] sm:$0xff]
  %v169 = vld [vmem:[%s4 + $0x40] sm:$0xff]
  %v170 = vld [vmem:[%s4 + $0x48] sm:$0xff]
  %v171 = vld [vmem:[%s4 + $0x50] sm:$0xff]
  %v172 = vld [vmem:[%s4 + $0x58] sm:$0xff]
  %v173 = vld [vmem:[%s4 + $0x60] sm:$0xff]
  %v174 = vld [vmem:[%s4 + $0x68] sm:$0xff]
  %v175 = vld [vmem:[%s4 + $0x70] sm:$0xff]
  %v176 = vld [vmem:[%s4 + $0x78] sm:$0xff]
  %v177 = vld [vmem:[%s4 + $0x80] sm:$0xff]
  %v178 = vld [vmem:[%s4 + $0x88] sm:$0xff]
  %v179 = vld [vmem:[%s4 + $0x90] sm:$0xff]
  %v180 = vld [vmem:[%s4 + $0x98] sm:$0xff]
  %v181 = vld [vmem:[%s4 + $0xa0] sm:$0xff]
  %v182 = vld [vmem:[%s4 + $0xa8] sm:$0xff]
  %v183 = vld [vmem:[%s4 + $0xb0] sm:$0xff]
  %v184 = vld [vmem:[%s4 + $0xb8] sm:$0xff]
  %v185 = vld [vmem:[%s4 + $0xc0] sm:$0xff]
  %v186 = vld [vmem:[%s4 + $0xc8] sm:$0xff]
  %v187 = vld [vmem:[%s4 + $0xd0] sm:$0xff]
  %v188 = vld [vmem:[%s4 + $0xd8] sm:$0xff]
  %v189 = vld [vmem:[%s4 + $0xe0] sm:$0xff]
  %v190 = vld [vmem:[%s4 + $0xe8] sm:$0xff]
  %v191 = vld [vmem:[%s4 + $0xf0] sm:$0xff]
  %v192 = vld [vmem:[%s4 + $0xf8] sm:$0xff]
  %v193 = vld [vmem:[%s4 + $0x100] sm:$0xff]
  %v194 = vld [vmem:[%s4 + $0x108] sm:$0xff]
  %v195 = vld [vmem:[%s4 + $0x110] sm:$0xff]
  %v196 = vld [vmem:[%s4 + $0x118] sm:$0xff]
  %v197 = vld [vmem:[%s4 + $0x120] sm:$0xff]
  %v198 = vld [vmem:[%s4 + $0x128] sm:$0xff]
  %v199 = vld [vmem:[%s4 + $0x130] sm:$0xff]
  %v200 = vld [vmem:[%s4 + $0x138] sm:$0xff]
  %v201 = vld [vmem:[%s4 + $0x140] sm:$0xff]
  %v202 = vld [vmem:[%s4 + $0x148] sm:$0xff]
  %v203 = vld [vmem:[%s4 + $0x150] sm:$0xff]
  %v204 = vld [vmem:[%s4 + $0x158] sm:$0xff]
  %v205 = vld [vmem:[%s4 + $0x160] sm:$0xff]
  %v206 = vld [vmem:[%s4 + $0x168] sm:$0xff]
  %v207 = vld [vmem:[%s4 + $0x170] sm:$0xff]
  %v208 = vld [vmem:[%s4 + $0x178] sm:$0xff]
  %v209 = vpack.c.bf16 %v108, %v105
  %v210 = vpack.c.bf16 %v131, %v128
  %v211 = vpack.c.bf16 %v154, %v151
  %v212 = vld [vmem:[%s3] sm:$0xff]
  %v213 = vld [vmem:[%s3 + $0x8] sm:$0xff]
  %v214 = vld [vmem:[%s3 + $0x10] sm:$0xff]
  %v215 = vld [vmem:[%s3 + $0x18] sm:$0xff]
  %v216 = vld [vmem:[%s3 + $0x20] sm:$0xff]
  %v217 = vld [vmem:[%s3 + $0x28] sm:$0xff]
  %v218 = vld [vmem:[%s3 + $0x30] sm:$0xff]
  %v219 = vld [vmem:[%s3 + $0x38] sm:$0xff]
  %v220 = vld [vmem:[%s3 + $0x40] sm:$0xff]
  %v221 = vld [vmem:[%s3 + $0x48] sm:$0xff]
  %v222 = vld [vmem:[%s3 + $0x50] sm:$0xff]
  %v223 = vld [vmem:[%s3 + $0x58] sm:$0xff]
  %v224 = vld [vmem:[%s3 + $0x60] sm:$0xff]
  %v225 = vld [vmem:[%s3 + $0x68] sm:$0xff]
  %v226 = vld [vmem:[%s3 + $0x70] sm:$0xff]
  %v227 = vld [vmem:[%s3 + $0x78] sm:$0xff]
  %v228 = vld [vmem:[%s3 + $0x80] sm:$0xff]
  %v229 = vld [vmem:[%s3 + $0x88] sm:$0xff]
  %v230 = vld [vmem:[%s3 + $0x90] sm:$0xff]
  %v231 = vld [vmem:[%s3 + $0x98] sm:$0xff]
  %v232 = vld [vmem:[%s3 + $0xa0] sm:$0xff]
  %v233 = vld [vmem:[%s3 + $0xa8] sm:$0xff]
  %v234 = vld [vmem:[%s3 + $0xb0] sm:$0xff]
  %v235 = vld [vmem:[%s3 + $0xb8] sm:$0xff]
  %v236 = vld [vmem:[%s3 + $0xc0] sm:$0xff]
  %v237 = vld [vmem:[%s3 + $0xc8] sm:$0xff]
  %v238 = vld [vmem:[%s3 + $0xd0] sm:$0xff]
  %v239 = vld [vmem:[%s3 + $0xd8] sm:$0xff]
  %v240 = vld [vmem:[%s3 + $0xe0] sm:$0xff]
  %v241 = vld [vmem:[%s3 + $0xe8] sm:$0xff]
  %v242 = vld [vmem:[%s3 + $0xf0] sm:$0xff]
  %v243 = vld [vmem:[%s3 + $0xf8] sm:$0xff]
  %v244 = vld [vmem:[%s3 + $0x100] sm:$0xff]
  %v245 = vld [vmem:[%s3 + $0x108] sm:$0xff]
  %v246 = vld [vmem:[%s3 + $0x110] sm:$0xff]
  %v247 = vld [vmem:[%s3 + $0x118] sm:$0xff]
  %v248 = vld [vmem:[%s3 + $0x120] sm:$0xff]
  %v249 = vld [vmem:[%s3 + $0x128] sm:$0xff]
  %v250 = vld [vmem:[%s3 + $0x130] sm:$0xff]
  %v251 = vld [vmem:[%s3 + $0x138] sm:$0xff]
  %v252 = vld [vmem:[%s3 + $0x140] sm:$0xff]
  %v253 = vld [vmem:[%s3 + $0x148] sm:$0xff]
  %v254 = vld [vmem:[%s3 + $0x150] sm:$0xff]
  %v255 = vld [vmem:[%s3 + $0x158] sm:$0xff]
  %v256 = vld [vmem:[%s3 + $0x160] sm:$0xff]
  %v257 = vld [vmem:[%s3 + $0x168] sm:$0xff]
  %v258 = vld [vmem:[%s3 + $0x170] sm:$0xff]
  %v259 = vld [vmem:[%s3 + $0x178] sm:$0xff]
  %v261 = vperm.slane %v29, 0
  %v262 = vperm.slane %v29, 1
  %v313 = vunpack.c.l.b16 %v212
  %v314 = vunpack.c.h.b16 %v212
  %v315 = vunpack.c.l.b16 %v213
  %v316 = vunpack.c.h.b16 %v213
  %v317 = vunpack.c.l.b16 %v214
  %v318 = vunpack.c.h.b16 %v214
  %v319 = vunpack.c.l.b16 %v215
  %v320 = vunpack.c.h.b16 %v215
  %v321 = vunpack.c.l.b16 %v216
  %v322 = vunpack.c.h.b16 %v216
  %v323 = vunpack.c.l.b16 %v217
  %v324 = vunpack.c.h.b16 %v217
  %v325 = vunpack.c.l.b16 %v218
  %v326 = vunpack.c.h.b16 %v218
  %v327 = vunpack.c.l.b16 %v219
  %v328 = vunpack.c.h.b16 %v219
  %v329 = vunpack.c.l.b16 %v220
  %v330 = vunpack.c.h.b16 %v220
  %v331 = vunpack.c.l.b16 %v221
  %v332 = vunpack.c.h.b16 %v221
  %v333 = vunpack.c.l.b16 %v222
  %v334 = vunpack.c.h.b16 %v222
  %v335 = vunpack.c.l.b16 %v223
  %v336 = vunpack.c.h.b16 %v223
  %v337 = vunpack.c.l.b16 %v224
  %v338 = vunpack.c.h.b16 %v224
  %v339 = vunpack.c.l.b16 %v225
  %v340 = vunpack.c.h.b16 %v225
  %v341 = vunpack.c.l.b16 %v226
  %v342 = vunpack.c.h.b16 %v226
  %v343 = vunpack.c.l.b16 %v227
  %v344 = vunpack.c.h.b16 %v227
  %v345 = vunpack.c.l.b16 %v228
  %v346 = vunpack.c.h.b16 %v228
  %v347 = vunpack.c.l.b16 %v229
  %v348 = vunpack.c.h.b16 %v229
  %v349 = vunpack.c.l.b16 %v230
  %v350 = vunpack.c.h.b16 %v230
  %v351 = vunpack.c.l.b16 %v231
  %v352 = vunpack.c.h.b16 %v231
  %v353 = vunpack.c.l.b16 %v232
  %v354 = vunpack.c.h.b16 %v232
  %v355 = vunpack.c.l.b16 %v233
  %v356 = vunpack.c.h.b16 %v233
  %v357 = vunpack.c.l.b16 %v234
  %v358 = vunpack.c.h.b16 %v234
  %v359 = vunpack.c.l.b16 %v235
  %v360 = vunpack.c.h.b16 %v235
  %v361 = vunpack.c.l.b16 %v236
  %v362 = vunpack.c.h.b16 %v236
  %v363 = vunpack.c.l.b16 %v237
  %v364 = vunpack.c.h.b16 %v237
  %v365 = vunpack.c.l.b16 %v238
  %v366 = vunpack.c.h.b16 %v238
  %v367 = vunpack.c.l.b16 %v239
  %v368 = vunpack.c.h.b16 %v239
  %v369 = vunpack.c.l.b16 %v240
  %v370 = vunpack.c.h.b16 %v240
  %v371 = vunpack.c.l.b16 %v241
  %v372 = vunpack.c.h.b16 %v241
  %v373 = vunpack.c.l.b16 %v242
  %v374 = vunpack.c.h.b16 %v242
  %v375 = vunpack.c.l.b16 %v243
  %v376 = vunpack.c.h.b16 %v243
  %v377 = vunpack.c.l.b16 %v244
  %v378 = vunpack.c.h.b16 %v244
  %v379 = vunpack.c.l.b16 %v245
  %v380 = vunpack.c.h.b16 %v245
  %v381 = vunpack.c.l.b16 %v246
  %v382 = vunpack.c.h.b16 %v246
  %v383 = vunpack.c.l.b16 %v247
  %v384 = vunpack.c.h.b16 %v247
  %v385 = vunpack.c.l.b16 %v248
  %v386 = vunpack.c.h.b16 %v248
  %v387 = vunpack.c.l.b16 %v249
  %v388 = vunpack.c.h.b16 %v249
  %v389 = vunpack.c.l.b16 %v250
  %v390 = vunpack.c.h.b16 %v250
  %v391 = vunpack.c.l.b16 %v251
  %v392 = vunpack.c.h.b16 %v251
  %v393 = vunpack.c.l.b16 %v252
  %v394 = vunpack.c.h.b16 %v252
  %v395 = vunpack.c.l.b16 %v253
  %v396 = vunpack.c.h.b16 %v253
  %v397 = vunpack.c.l.b16 %v254
  %v398 = vunpack.c.h.b16 %v254
  %v399 = vunpack.c.l.b16 %v255
  %v400 = vunpack.c.h.b16 %v255
  %v401 = vunpack.c.l.b16 %v256
  %v402 = vunpack.c.h.b16 %v256
  %v403 = vunpack.c.l.b16 %v257
  %v404 = vunpack.c.h.b16 %v257
  %v405 = vunpack.c.l.b16 %v258
  %v406 = vunpack.c.h.b16 %v258
  %v407 = vunpack.c.l.b16 %v259
  %v408 = vunpack.c.h.b16 %v259
  %v409 = vpack.c.b16 %v315, %v313
  %v410 = vpack.c.b16 %v316, %v314
  %v411 = vpack.c.b16 %v319, %v317
  %v412 = vpack.c.b16 %v320, %v318
  %v413 = vpack.c.b16 %v323, %v321
  %v414 = vpack.c.b16 %v324, %v322
  %v415 = vpack.c.b16 %v327, %v325
  %v416 = vpack.c.b16 %v328, %v326
  %v417 = vpack.c.b16 %v331, %v329
  %v418 = vpack.c.b16 %v332, %v330
  %v419 = vpack.c.b16 %v335, %v333
  %v420 = vpack.c.b16 %v336, %v334
  %v421 = vpack.c.b16 %v339, %v337
  %v422 = vpack.c.b16 %v340, %v338
  %v423 = vpack.c.b16 %v343, %v341
  %v424 = vpack.c.b16 %v344, %v342
  %v425 = vpack.c.b16 %v347, %v345
  %v426 = vpack.c.b16 %v348, %v346
  %v427 = vpack.c.b16 %v351, %v349
  %v428 = vpack.c.b16 %v352, %v350
  %v429 = vpack.c.b16 %v355, %v353
  %v430 = vpack.c.b16 %v356, %v354
  %v431 = vpack.c.b16 %v359, %v357
  %v432 = vpack.c.b16 %v360, %v358
  %v433 = vpack.c.b16 %v363, %v361
  %v434 = vpack.c.b16 %v364, %v362
  %v435 = vpack.c.b16 %v367, %v365
  %v436 = vpack.c.b16 %v368, %v366
  %v437 = vpack.c.b16 %v371, %v369
  %v438 = vpack.c.b16 %v372, %v370
  %v439 = vpack.c.b16 %v375, %v373
  %v440 = vpack.c.b16 %v376, %v374
  %v441 = vpack.c.b16 %v379, %v377
  %v442 = vpack.c.b16 %v380, %v378
  %v443 = vpack.c.b16 %v383, %v381
  %v444 = vpack.c.b16 %v384, %v382
  %v445 = vpack.c.b16 %v387, %v385
  %v446 = vpack.c.b16 %v388, %v386
  %v447 = vpack.c.b16 %v391, %v389
  %v448 = vpack.c.b16 %v392, %v390
  %v449 = vpack.c.b16 %v395, %v393
  %v450 = vpack.c.b16 %v396, %v394
  %v451 = vpack.c.b16 %v399, %v397
  %v452 = vpack.c.b16 %v400, %v398
  %v453 = vpack.c.b16 %v403, %v401
  %v454 = vpack.c.b16 %v404, %v402
  %v455 = vpack.c.b16 %v407, %v405
  %v456 = vpack.c.b16 %v408, %v406
  %505 = vmatpush.bf16.msra.mxu0 %v423
  %506 = vmatpush.bf16.msra.mxu0 %v421
  %507 = vmatpush.bf16.msra.mxu0 %v419
  %508 = vmatpush.bf16.msra.mxu0 %v417
  %509 = vmatpush.bf16.msra.mxu0 %v415
  %510 = vmatpush.bf16.msra.mxu0 %v413
  %511 = vmatpush.bf16.msra.mxu0 %v411
  %512 = vmatpush.bf16.msra.mxu0 %v409
  %513 = vmatmul.bf16.gmra.mxu0 %v209
  %v514 = vpop.f32.mrf.mxu0
  %v515 = vadd.f32 %v261, %v514
  %v516 = vpop.f32.mrf.mxu0
  %v517 = vadd.f32 %v261, %v516
  %518 = vdwg.mxu0
  %519 = vmatpush.bf16.msra.mxu0 %v439
  %520 = vmatpush.bf16.msra.mxu0 %v437
  %521 = vmatpush.bf16.msra.mxu0 %v435
  %522 = vmatpush.bf16.msra.mxu0 %v433
  %523 = vmatpush.bf16.msra.mxu0 %v431
  %524 = vmatpush.bf16.msra.mxu0 %v429
  %525 = vmatpush.bf16.msra.mxu0 %v427
  %526 = vmatpush.bf16.msra.mxu0 %v425
  %527 = vmatmul.bf16.gmra.mxu0 %v210
  %v528 = vpop.f32.mrf.mxu0
  %v529 = vadd.f32 %v515, %v528
  %v530 = vpop.f32.mrf.mxu0
  %v531 = vadd.f32 %v517, %v530
  %532 = vdwg.mxu0
  %533 = vmatpush.bf16.msra.mxu0 %v455
  %534 = vmatpush.bf16.msra.mxu0 %v453
  %535 = vmatpush.bf16.msra.mxu0 %v451
  %536 = vmatpush.bf16.msra.mxu0 %v449
  %537 = vmatpush.bf16.msra.mxu0 %v447
  %538 = vmatpush.bf16.msra.mxu0 %v445
  %539 = vmatpush.bf16.msra.mxu0 %v443
  %540 = vmatpush.bf16.msra.mxu0 %v441
  %541 = vmatmul.bf16.gmra.mxu0 %v211
  %v542 = vpop.f32.mrf.mxu0
  %v543 = vadd.f32 %v529, %v542
  %v544 = vpop.f32.mrf.mxu0
  %v545 = vadd.f32 %v531, %v544
  %546 = vdwg.mxu0
  %547 = vmatpush.bf16.msra.mxu0 %v424
  %548 = vmatpush.bf16.msra.mxu0 %v422
  %549 = vmatpush.bf16.msra.mxu0 %v420
  %550 = vmatpush.bf16.msra.mxu0 %v418
  %551 = vmatpush.bf16.msra.mxu0 %v416
  %552 = vmatpush.bf16.msra.mxu0 %v414
  %553 = vmatpush.bf16.msra.mxu0 %v412
  %554 = vmatpush.bf16.msra.mxu0 %v410
  %555 = vmatmul.bf16.gmra.mxu0 %v209
  %v556 = vpop.f32.mrf.mxu0
  %v557 = vadd.f32 %v262, %v556
  %v558 = vpop.f32.mrf.mxu0
  %v559 = vadd.f32 %v262, %v558
  %560 = vdwg.mxu0
  %561 = vmatpush.bf16.msra.mxu0 %v440
  %562 = vmatpush.bf16.msra.mxu0 %v438
  %563 = vmatpush.bf16.msra.mxu0 %v436
  %564 = vmatpush.bf16.msra.mxu0 %v434
  %565 = vmatpush.bf16.msra.mxu0 %v432
  %566 = vmatpush.bf16.msra.mxu0 %v430
  %567 = vmatpush.bf16.msra.mxu0 %v428
  %568 = vmatpush.bf16.msra.mxu0 %v426
  %569 = vmatmul.bf16.gmra.mxu0 %v210
  %v570 = vpop.f32.mrf.mxu0
  %v571 = vadd.f32 %v557, %v570
  %v572 = vpop.f32.mrf.mxu0
  %v573 = vadd.f32 %v559, %v572
  %574 = vdwg.mxu0
  %575 = vmatpush.bf16.msra.mxu0 %v456
  %576 = vmatpush.bf16.msra.mxu0 %v454
  %577 = vmatpush.bf16.msra.mxu0 %v452
  %578 = vmatpush.bf16.msra.mxu0 %v450
  %579 = vmatpush.bf16.msra.mxu0 %v448
  %580 = vmatpush.bf16.msra.mxu0 %v446
  %581 = vmatpush.bf16.msra.mxu0 %v444
  %582 = vmatpush.bf16.msra.mxu0 %v442
  %583 = vmatmul.bf16.gmra.mxu0 %v211
  %v584 = vpop.f32.mrf.mxu0
  %v585 = vadd.f32 %v571, %v584
  %v586 = vpop.f32.mrf.mxu0
  %v587 = vadd.f32 %v573, %v586
  %588 = vdwg.mxu0
  %589 = vst [vmem:[#allocation2] sm:$0xff] %v543
  %590 = vst [vmem:[#allocation2 + $0x8] sm:$0xff] %v585
  %591 = vst [vmem:[#allocation2 + $0x10] sm:$0xff] %v545
  %592 = vst [vmem:[#allocation2 + $0x18] sm:$0xff] %v587
  %v593 = vld [vmem:[#allocation2] sm:$0x3]
  %v594 = vld [vmem:[#allocation2 + $0x8] sm:$0x3]
  %v595 = vld [vmem:[#allocation2 + $0x10] sm:$0xc0]
  %v596 = vld [vmem:[#allocation2 + $0x18] sm:$0xc0]
  %v599 = vrot.slane %v595, 6
  %v600 = vrot.slane %v596, 6
  %v603 = vsel %vm159, %v593, %v599
  %v604 = vsel %vm160, %v594, %v600
  %v606 = vsel %vm80, 0.0, 0
  %608 = vmatpush.msra.mxu0 0.0
  %609 = vmatpush.msra.mxu0 0.0
  %610 = vmatpush.msra.mxu0 0.0
  %611 = vmatpush.msra.mxu0 0.0
  %612 = vmatpush.msra.mxu0 0.0
  %613 = vmatpush.msra.mxu0 0.0
  %614 = vmatpush.msra.mxu0 0.0
  %615 = vmatpush.msra.mxu0 0.0
  %616 = vmatpush.msra.mxu0 %v191
  %617 = vmatpush.msra.mxu0 %v189
  %618 = vmatpush.msra.mxu0 %v187
  %619 = vmatpush.msra.mxu0 %v185
  %620 = vmatpush.msra.mxu0 %v183
  %621 = vmatpush.msra.mxu0 %v181
  %622 = vmatpush.msra.mxu0 %v179
  %623 = vmatpush.msra.mxu0 %v177
  %624 = vmatmul.f32.gmra.mxu0 %v606
  %v625 = vpop.f32.mrf.mxu0
  %v626 = vadd.f32 %v603, %v625
  %627 = vdwg.mxu0
  %628 = vmatpush.msra.mxu0 0.0
  %629 = vmatpush.msra.mxu0 0.0
  %630 = vmatpush.msra.mxu0 0.0
  %631 = vmatpush.msra.mxu0 0.0
  %632 = vmatpush.msra.mxu0 0.0
  %633 = vmatpush.msra.mxu0 0.0
  %634 = vmatpush.msra.mxu0 0.0
  %635 = vmatpush.msra.mxu0 0.0
  %636 = vmatpush.msra.mxu0 %v192
  %637 = vmatpush.msra.mxu0 %v190
  %638 = vmatpush.msra.mxu0 %v188
  %639 = vmatpush.msra.mxu0 %v186
  %640 = vmatpush.msra.mxu0 %v184
  %641 = vmatpush.msra.mxu0 %v182
  %642 = vmatpush.msra.mxu0 %v180
  %643 = vmatpush.msra.mxu0 %v178
  %644 = vmatmul.f32.gmra.mxu0 %v606
  %v645 = vpop.f32.mrf.mxu0
  %v646 = vadd.f32 %v604, %v645
  %647 = vdwg.mxu0
  %v648 = vxor.u32 %v626, 2147483648
  %v649 = vxor.u32 %v646, 2147483648
  %v650 = vmul.f32 %v648, 1.442695
  %v651 = vpow.pop %v650
  %v652 = vmul.f32 %v649, 1.442695
  %v653 = vpow.pop %v652
  %v654 = vadd.f32 %v651, 1.0
  %v655 = vadd.f32 %v653, 1.0
  %v656 = vrcp.pop %v654
  %v657 = vmul.f32 %v654, %v656
  %v658 = vsub.f32 1.0, %v657
  %v659 = vmul.f32 %v656, %v658
  %v660 = vadd.f32 %v656, %v659
  %vm661 = vweird.f32 %v654
  %vm662 = vweird.f32 %v656
  %vm663 = vmor %vm661, %vm662
  %v664 = vsel %vm663, %v656, %v660
  %v665 = vand.u32 2147483647, %v654
  %vm666 = vcmp.eq.f32.partialorder %v665, 8.507059e+37
  %v667 = vand.u32 %v654, 2147483648
  %v668 = vor.u32 1.1754944e-38, %v667
  %v669 = vsel %vm666, %v668, %v664
  %v670 = vmul.f32 1.0, %v669
  %v671 = vrcp.pop %v655
  %v672 = vmul.f32 %v655, %v671
  %v673 = vsub.f32 1.0, %v672
  %v674 = vmul.f32 %v671, %v673
  %v675 = vadd.f32 %v671, %v674
  %vm676 = vweird.f32 %v655
  %vm677 = vweird.f32 %v671
  %vm678 = vmor %vm676, %vm677
  %v679 = vsel %vm678, %v671, %v675
  %v680 = vand.u32 2147483647, %v655
  %vm681 = vcmp.eq.f32.partialorder %v680, 8.507059e+37
  %v682 = vand.u32 %v655, 2147483648
  %v683 = vor.u32 1.1754944e-38, %v682
  %v684 = vsel %vm681, %v683, %v679
  %v685 = vmul.f32 1.0, %v684
  %v686 = vtanh.pop %v646
  %v687 = vmul.f32 %v670, 0.0
  %v688 = vmul.f32 %v670, %v686
  %690 = vrot.lane.b32.xlu0 %v688, 64
  %v691 = vpop.permute.xlu0 %690
  %v693 = vadd.f32 %v687, %v691
  %v694 = vtanh.pop %v693
  %v695 = vmul.f32 %v685, %v694
  %697 = vrot.lane.b32.xlu0 %v695, 64
  %v698 = vpop.permute.xlu0 %697
  %vm700 = vcmask 254976
  %701 = vst.msk [vmem:[#allocation3] sm:$0x3] %vm700, %v698
  %vm702 = vcmask 517376
  %703 = vst.msk [vmem:[#allocation3 + $0xe] sm:$0x3] %vm702, %v698
  %v704 = vld [vmem:[#allocation2] sm:$0xc]
  %v705 = vld [vmem:[#allocation2 + $0x8] sm:$0xc]
  %v706 = vld [vmem:[#allocation2 + $0x10] sm:$0x30]
  %v707 = vld [vmem:[#allocation2 + $0x18] sm:$0x30]
  %v710 = vrot.slane %v706, 2
  %v711 = vrot.slane %v707, 2
  %v714 = vsel %vm159, %v704, %v710
  %v715 = vsel %vm160, %v705, %v711
  %v718 = vrot.slane %v714, 2
  %v719 = vrot.slane %v715, 2
  %v722 = vsel %vm80, %v698, 0
  %724 = vmatpush.msra.mxu0 0.0
  %725 = vmatpush.msra.mxu0 0.0
  %726 = vmatpush.msra.mxu0 0.0
  %727 = vmatpush.msra.mxu0 0.0
  %728 = vmatpush.msra.mxu0 0.0
  %729 = vmatpush.msra.mxu0 0.0
  %730 = vmatpush.msra.mxu0 0.0
  %731 = vmatpush.msra.mxu0 0.0
  %732 = vmatpush.msra.mxu0 %v191
  %733 = vmatpush.msra.mxu0 %v189
  %734 = vmatpush.msra.mxu0 %v187
  %735 = vmatpush.msra.mxu0 %v185
  %736 = vmatpush.msra.mxu0 %v183
  %737 = vmatpush.msra.mxu0 %v181
  %738 = vmatpush.msra.mxu0 %v179
  %739 = vmatpush.msra.mxu0 %v177
  %740 = vmatmul.f32.gmra.mxu0 %v722
  %v741 = vpop.f32.mrf.mxu0
  %v742 = vadd.f32 %v718, %v741
  %743 = vdwg.mxu0
  %744 = vmatpush.msra.mxu0 0.0
  %745 = vmatpush.msra.mxu0 0.0
  %746 = vmatpush.msra.mxu0 0.0
  %747 = vmatpush.msra.mxu0 0.0
  %748 = vmatpush.msra.mxu0 0.0
  %749 = vmatpush.msra.mxu0 0.0
  %750 = vmatpush.msra.mxu0 0.0
  %751 = vmatpush.msra.mxu0 0.0
  %752 = vmatpush.msra.mxu0 %v192
  %753 = vmatpush.msra.mxu0 %v190
  %754 = vmatpush.msra.mxu0 %v188
  %755 = vmatpush.msra.mxu0 %v186
  %756 = vmatpush.msra.mxu0 %v184
  %757 = vmatpush.msra.mxu0 %v182
  %758 = vmatpush.msra.mxu0 %v180
  %759 = vmatpush.msra.mxu0 %v178
  %760 = vmatmul.f32.gmra.mxu0 %v722
  %v761 = vpop.f32.mrf.mxu0
  %v762 = vadd.f32 %v719, %v761
  %763 = vdwg.mxu0
  %v764 = vxor.u32 %v742, 2147483648
  %v765 = vxor.u32 %v762, 2147483648
  %v766 = vmul.f32 %v764, 1.442695
  %v767 = vpow.pop %v766
  %v768 = vmul.f32 %v765, 1.442695
  %v769 = vpow.pop %v768
  %v770 = vadd.f32 %v767, 1.0
  %v771 = vadd.f32 %v769, 1.0
  %v772 = vrcp.pop %v770
  %v773 = vmul.f32 %v770, %v772
  %v774 = vsub.f32 1.0, %v773
  %v775 = vmul.f32 %v772, %v774
  %v776 = vadd.f32 %v772, %v775
  %vm777 = vweird.f32 %v770
  %vm778 = vweird.f32 %v772
  %vm779 = vmor %vm777, %vm778
  %v780 = vsel %vm779, %v772, %v776
  %v781 = vand.u32 2147483647, %v770
  %vm782 = vcmp.eq.f32.partialorder %v781, 8.507059e+37
  %v783 = vand.u32 %v770, 2147483648
  %v784 = vor.u32 1.1754944e-38, %v783
  %v785 = vsel %vm782, %v784, %v780
  %v786 = vmul.f32 1.0, %v785
  %v787 = vrcp.pop %v771
  %v788 = vmul.f32 %v771, %v787
  %v789 = vsub.f32 1.0, %v788
  %v790 = vmul.f32 %v787, %v789
  %v791 = vadd.f32 %v787, %v790
  %vm792 = vweird.f32 %v771
  %vm793 = vweird.f32 %v787
  %vm794 = vmor %vm792, %vm793
  %v795 = vsel %vm794, %v787, %v791
  %v796 = vand.u32 2147483647, %v771
  %vm797 = vcmp.eq.f32.partialorder %v796, 8.507059e+37
  %v798 = vand.u32 %v771, 2147483648
  %v799 = vor.u32 1.1754944e-38, %v798
  %v800 = vsel %vm797, %v799, %v795
  %v801 = vmul.f32 1.0, %v800
  %v802 = vtanh.pop %v762
  %v803 = vmul.f32 %v786, %v693
  %v804 = vmul.f32 %v786, %v802
  %806 = vrot.lane.b32.xlu0 %v804, 64
  %v807 = vpop.permute.xlu0 %806
  %v809 = vadd.f32 %v803, %v807
  %v810 = vtanh.pop %v809
  %v811 = vmul.f32 %v801, %v810
  %813 = vrot.lane.b32.xlu0 %v811, 64
  %v814 = vpop.permute.xlu0 %813
  %816 = vst.msk [vmem:[#allocation3 + $0x2] sm:$0x3] %vm700, %v814
  %817 = vst.msk [vmem:[#allocation3 + $0xc] sm:$0x3] %vm702, %v814
  %v818 = vld [vmem:[#allocation2] sm:$0x30]
  %v819 = vld [vmem:[#allocation2 + $0x8] sm:$0x30]
  %v820 = vld [vmem:[#allocation2 + $0x10] sm:$0xc]
  %v821 = vld [vmem:[#allocation2 + $0x18] sm:$0xc]
  %v824 = vrot.slane %v820, 6
  %v825 = vrot.slane %v821, 6
  %v828 = vsel %vm159, %v818, %v824
  %v829 = vsel %vm160, %v819, %v825
  %v832 = vrot.slane %v828, 4
  %v833 = vrot.slane %v829, 4
  %v836 = vsel %vm80, %v814, 0
  %838 = vmatpush.msra.mxu0 0.0
  %839 = vmatpush.msra.mxu0 0.0
  %840 = vmatpush.msra.mxu0 0.0
  %841 = vmatpush.msra.mxu0 0.0
  %842 = vmatpush.msra.mxu0 0.0
  %843 = vmatpush.msra.mxu0 0.0
  %844 = vmatpush.msra.mxu0 0.0
  %845 = vmatpush.msra.mxu0 0.0
  %846 = vmatpush.msra.mxu0 %v191
  %847 = vmatpush.msra.mxu0 %v189
  %848 = vmatpush.msra.mxu0 %v187
  %849 = vmatpush.msra.mxu0 %v185
  %850 = vmatpush.msra.mxu0 %v183
  %851 = vmatpush.msra.mxu0 %v181
  %852 = vmatpush.msra.mxu0 %v179
  %853 = vmatpush.msra.mxu0 %v177
  %854 = vmatmul.f32.gmra.mxu0 %v836
  %v855 = vpop.f32.mrf.mxu0
  %v856 = vadd.f32 %v832, %v855
  %857 = vdwg.mxu0
  %858 = vmatpush.msra.mxu0 0.0
  %859 = vmatpush.msra.mxu0 0.0
  %860 = vmatpush.msra.mxu0 0.0
  %861 = vmatpush.msra.mxu0 0.0
  %862 = vmatpush.msra.mxu0 0.0
  %863 = vmatpush.msra.mxu0 0.0
  %864 = vmatpush.msra.mxu0 0.0
  %865 = vmatpush.msra.mxu0 0.0
  %866 = vmatpush.msra.mxu0 %v192
  %867 = vmatpush.msra.mxu0 %v190
  %868 = vmatpush.msra.mxu0 %v188
  %869 = vmatpush.msra.mxu0 %v186
  %870 = vmatpush.msra.mxu0 %v184
  %871 = vmatpush.msra.mxu0 %v182
  %872 = vmatpush.msra.mxu0 %v180
  %873 = vmatpush.msra.mxu0 %v178
  %874 = vmatmul.f32.gmra.mxu0 %v836
  %v875 = vpop.f32.mrf.mxu0
  %v876 = vadd.f32 %v833, %v875
  %877 = vdwg.mxu0
  %v878 = vxor.u32 %v856, 2147483648
  %v879 = vxor.u32 %v876, 2147483648
  %v880 = vmul.f32 %v878, 1.442695
  %v881 = vpow.pop %v880
  %v882 = vmul.f32 %v879, 1.442695
  %v883 = vpow.pop %v882
  %v884 = vadd.f32 %v881, 1.0
  %v885 = vadd.f32 %v883, 1.0
  %v886 = vrcp.pop %v884
  %v887 = vmul.f32 %v884, %v886
  %v888 = vsub.f32 1.0, %v887
  %v889 = vmul.f32 %v886, %v888
  %v890 = vadd.f32 %v886, %v889
  %vm891 = vweird.f32 %v884
  %vm892 = vweird.f32 %v886
  %vm893 = vmor %vm891, %vm892
  %v894 = vsel %vm893, %v886, %v890
  %v895 = vand.u32 2147483647, %v884
  %vm896 = vcmp.eq.f32.partialorder %v895, 8.507059e+37
  %v897 = vand.u32 %v884, 2147483648
  %v898 = vor.u32 1.1754944e-38, %v897
  %v899 = vsel %vm896, %v898, %v894
  %v900 = vmul.f32 1.0, %v899
  %v901 = vrcp.pop %v885
  %v902 = vmul.f32 %v885, %v901
  %v903 = vsub.f32 1.0, %v902
  %v904 = vmul.f32 %v901, %v903
  %v905 = vadd.f32 %v901, %v904
  %vm906 = vweird.f32 %v885
  %vm907 = vweird.f32 %v901
  %vm908 = vmor %vm906, %vm907
  %v909 = vsel %vm908, %v901, %v905
  %v910 = vand.u32 2147483647, %v885
  %vm911 = vcmp.eq.f32.partialorder %v910, 8.507059e+37
  %v912 = vand.u32 %v885, 2147483648
  %v913 = vor.u32 1.1754944e-38, %v912
  %v914 = vsel %vm911, %v913, %v909
  %v915 = vmul.f32 1.0, %v914
  %v916 = vtanh.pop %v876
  %v917 = vmul.f32 %v900, %v809
  %v918 = vmul.f32 %v900, %v916
  %920 = vrot.lane.b32.xlu0 %v918, 64
  %v921 = vpop.permute.xlu0 %920
  %v923 = vadd.f32 %v917, %v921
  %v924 = vtanh.pop %v923
  %v925 = vmul.f32 %v915, %v924
  %927 = vrot.lane.b32.xlu0 %v925, 64
  %v928 = vpop.permute.xlu0 %927
  %930 = vst.msk [vmem:[#allocation3 + $0x4] sm:$0x3] %vm700, %v928
  %931 = vst.msk [vmem:[#allocation3 + $0xa] sm:$0x3] %vm702, %v928
  %v932 = vld [vmem:[#allocation2] sm:$0xc0]
  %v933 = vld [vmem:[#allocation2 + $0x8] sm:$0xc0]
  %v934 = vld [vmem:[#allocation2 + $0x10] sm:$0x3]
  %v935 = vld [vmem:[#allocation2 + $0x18] sm:$0x3]
  %v938 = vrot.slane %v934, 2
  %v939 = vrot.slane %v935, 2
  %v942 = vsel %vm159, %v932, %v938
  %v943 = vsel %vm160, %v933, %v939
  %v946 = vrot.slane %v942, 6
  %v947 = vrot.slane %v943, 6
  %v950 = vsel %vm80, %v928, 0
  %952 = vmatpush.msra.mxu0 0.0
  %953 = vmatpush.msra.mxu0 0.0
  %954 = vmatpush.msra.mxu0 0.0
  %955 = vmatpush.msra.mxu0 0.0
  %956 = vmatpush.msra.mxu0 0.0
  %957 = vmatpush.msra.mxu0 0.0
  %958 = vmatpush.msra.mxu0 0.0
  %959 = vmatpush.msra.mxu0 0.0
  %960 = vmatpush.msra.mxu0 %v191
  %961 = vmatpush.msra.mxu0 %v189
  %962 = vmatpush.msra.mxu0 %v187
  %963 = vmatpush.msra.mxu0 %v185
  %964 = vmatpush.msra.mxu0 %v183
  %965 = vmatpush.msra.mxu0 %v181
  %966 = vmatpush.msra.mxu0 %v179
  %967 = vmatpush.msra.mxu0 %v177
  %968 = vmatmul.f32.gmra.mxu0 %v950
  %v969 = vpop.f32.mrf.mxu0
  %v970 = vadd.f32 %v946, %v969
  %971 = vdwg.mxu0
  %972 = vmatpush.msra.mxu0 0.0
  %973 = vmatpush.msra.mxu0 0.0
  %974 = vmatpush.msra.mxu0 0.0
  %975 = vmatpush.msra.mxu0 0.0
  %976 = vmatpush.msra.mxu0 0.0
  %977 = vmatpush.msra.mxu0 0.0
  %978 = vmatpush.msra.mxu0 0.0
  %979 = vmatpush.msra.mxu0 0.0
  %980 = vmatpush.msra.mxu0 %v192
  %981 = vmatpush.msra.mxu0 %v190
  %982 = vmatpush.msra.mxu0 %v188
  %983 = vmatpush.msra.mxu0 %v186
  %984 = vmatpush.msra.mxu0 %v184
  %985 = vmatpush.msra.mxu0 %v182
  %986 = vmatpush.msra.mxu0 %v180
  %987 = vmatpush.msra.mxu0 %v178
  %988 = vmatmul.f32.gmra.mxu0 %v950
  %v989 = vpop.f32.mrf.mxu0
  %v990 = vadd.f32 %v947, %v989
  %991 = vdwg.mxu0
  %v992 = vxor.u32 %v970, 2147483648
  %v993 = vxor.u32 %v990, 2147483648
  %v994 = vmul.f32 %v992, 1.442695
  %v995 = vpow.pop %v994
  %v996 = vmul.f32 %v993, 1.442695
  %v997 = vpow.pop %v996
  %v998 = vadd.f32 %v995, 1.0
  %v999 = vadd.f32 %v997, 1.0
  %v1000 = vrcp.pop %v998
  %v1001 = vmul.f32 %v998, %v1000
  %v1002 = vsub.f32 1.0, %v1001
  %v1003 = vmul.f32 %v1000, %v1002
  %v1004 = vadd.f32 %v1000, %v1003
  %vm1005 = vweird.f32 %v998
  %vm1006 = vweird.f32 %v1000
  %vm1007 = vmor %vm1005, %vm1006
  %v1008 = vsel %vm1007, %v1000, %v1004
  %v1009 = vand.u32 2147483647, %v998
  %vm1010 = vcmp.eq.f32.partialorder %v1009, 8.507059e+37
  %v1011 = vand.u32 %v998, 2147483648
  %v1012 = vor.u32 1.1754944e-38, %v1011
  %v1013 = vsel %vm1010, %v1012, %v1008
  %v1014 = vmul.f32 1.0, %v1013
  %v1015 = vrcp.pop %v999
  %v1016 = vmul.f32 %v999, %v1015
  %v1017 = vsub.f32 1.0, %v1016
  %v1018 = vmul.f32 %v1015, %v1017
  %v1019 = vadd.f32 %v1015, %v1018
  %vm1020 = vweird.f32 %v999
  %vm1021 = vweird.f32 %v1015
  %vm1022 = vmor %vm1020, %vm1021
  %v1023 = vsel %vm1022, %v1015, %v1019
  %v1024 = vand.u32 2147483647, %v999
  %vm1025 = vcmp.eq.f32.partialorder %v1024, 8.507059e+37
  %v1026 = vand.u32 %v999, 2147483648
  %v1027 = vor.u32 1.1754944e-38, %v1026
  %v1028 = vsel %vm1025, %v1027, %v1023
  %v1029 = vmul.f32 1.0, %v1028
  %v1030 = vtanh.pop %v990
  %v1031 = vmul.f32 %v1014, %v923
  %v1032 = vmul.f32 %v1014, %v1030
  %1034 = vrot.lane.b32.xlu0 %v1032, 64
  %v1035 = vpop.permute.xlu0 %1034
  %v1037 = vadd.f32 %v1031, %v1035
  %v1038 = vtanh.pop %v1037
  %v1039 = vmul.f32 %v1029, %v1038
  %1041 = vrot.lane.b32.xlu0 %v1039, 64
  %v1042 = vpop.permute.xlu0 %1041
  %1044 = vst.msk [vmem:[#allocation3 + $0x6] sm:$0x3] %vm700, %v1042
  %1045 = vst.msk [vmem:[#allocation3 + $0x8] sm:$0x3] %vm702, %v1042
  %v1046 = vld [vmem:[#allocation2 + $0x10] sm:$0x3]
  %v1047 = vld [vmem:[#allocation2 + $0x18] sm:$0x3]
  %v1048 = vld [vmem:[#allocation2] sm:$0xc0]
  %v1049 = vld [vmem:[#allocation2 + $0x8] sm:$0xc0]
  %v1052 = vrot.slane %v1048, 6
  %v1053 = vrot.slane %v1049, 6
  %v1056 = vsel %vm159, %v1046, %v1052
  %v1057 = vsel %vm160, %v1047, %v1053
  %v1058 = vsel %vm80, %v1042, 0
  %1060 = vmatpush.msra.mxu0 0.0
  %1061 = vmatpush.msra.mxu0 0.0
  %1062 = vmatpush.msra.mxu0 0.0
  %1063 = vmatpush.msra.mxu0 0.0
  %1064 = vmatpush.msra.mxu0 0.0
  %1065 = vmatpush.msra.mxu0 0.0
  %1066 = vmatpush.msra.mxu0 0.0
  %1067 = vmatpush.msra.mxu0 0.0
  %1068 = vmatpush.msra.mxu0 %v191
  %1069 = vmatpush.msra.mxu0 %v189
  %1070 = vmatpush.msra.mxu0 %v187
  %1071 = vmatpush.msra.mxu0 %v185
  %1072 = vmatpush.msra.mxu0 %v183
  %1073 = vmatpush.msra.mxu0 %v181
  %1074 = vmatpush.msra.mxu0 %v179
  %1075 = vmatpush.msra.mxu0 %v177
  %1076 = vmatmul.f32.gmra.mxu0 %v1058
  %v1077 = vpop.f32.mrf.mxu0
  %v1078 = vadd.f32 %v1056, %v1077
  %1079 = vdwg.mxu0
  %1080 = vmatpush.msra.mxu0 0.0
  %1081 = vmatpush.msra.mxu0 0.0
  %1082 = vmatpush.msra.mxu0 0.0
  %1083 = vmatpush.msra.mxu0 0.0
  %1084 = vmatpush.msra.mxu0 0.0
  %1085 = vmatpush.msra.mxu0 0.0
  %1086 = vmatpush.msra.mxu0 0.0
  %1087 = vmatpush.msra.mxu0 0.0
  %1088 = vmatpush.msra.mxu0 %v192
  %1089 = vmatpush.msra.mxu0 %v190
  %1090 = vmatpush.msra.mxu0 %v188
  %1091 = vmatpush.msra.mxu0 %v186
  %1092 = vmatpush.msra.mxu0 %v184
  %1093 = vmatpush.msra.mxu0 %v182
  %1094 = vmatpush.msra.mxu0 %v180
  %1095 = vmatpush.msra.mxu0 %v178
  %1096 = vmatmul.f32.gmra.mxu0 %v1058
  %v1097 = vpop.f32.mrf.mxu0
  %v1098 = vadd.f32 %v1057, %v1097
  %1099 = vdwg.mxu0
  %v1100 = vxor.u32 %v1078, 2147483648
  %v1101 = vxor.u32 %v1098, 2147483648
  %v1102 = vmul.f32 %v1100, 1.442695
  %v1103 = vpow.pop %v1102
  %v1104 = vmul.f32 %v1101, 1.442695
  %v1105 = vpow.pop %v1104
  %v1106 = vadd.f32 %v1103, 1.0
  %v1107 = vadd.f32 %v1105, 1.0
  %v1108 = vrcp.pop %v1106
  %v1109 = vmul.f32 %v1106, %v1108
  %v1110 = vsub.f32 1.0, %v1109
  %v1111 = vmul.f32 %v1108, %v1110
  %v1112 = vadd.f32 %v1108, %v1111
  %vm1113 = vweird.f32 %v1106
  %vm1114 = vweird.f32 %v1108
  %vm1115 = vmor %vm1113, %vm1114
  %v1116 = vsel %vm1115, %v1108, %v1112
  %v1117 = vand.u32 2147483647, %v1106
  %vm1118 = vcmp.eq.f32.partialorder %v1117, 8.507059e+37
  %v1119 = vand.u32 %v1106, 2147483648
  %v1120 = vor.u32 1.1754944e-38, %v1119
  %v1121 = vsel %vm1118, %v1120, %v1116
  %v1122 = vmul.f32 1.0, %v1121
  %v1123 = vrcp.pop %v1107
  %v1124 = vmul.f32 %v1107, %v1123
  %v1125 = vsub.f32 1.0, %v1124
  %v1126 = vmul.f32 %v1123, %v1125
  %v1127 = vadd.f32 %v1123, %v1126
  %vm1128 = vweird.f32 %v1107
  %vm1129 = vweird.f32 %v1123
  %vm1130 = vmor %vm1128, %vm1129
  %v1131 = vsel %vm1130, %v1123, %v1127
  %v1132 = vand.u32 2147483647, %v1107
  %vm1133 = vcmp.eq.f32.partialorder %v1132, 8.507059e+37
  %v1134 = vand.u32 %v1107, 2147483648
  %v1135 = vor.u32 1.1754944e-38, %v1134
  %v1136 = vsel %vm1133, %v1135, %v1131
  %v1137 = vmul.f32 1.0, %v1136
  %v1138 = vtanh.pop %v1098
  %v1139 = vmul.f32 %v1122, %v1037
  %v1140 = vmul.f32 %v1122, %v1138
  %1142 = vrot.lane.b32.xlu0 %v1140, 64
  %v1143 = vpop.permute.xlu0 %1142
  %v1145 = vadd.f32 %v1139, %v1143
  %v1146 = vtanh.pop %v1145
  %v1147 = vmul.f32 %v1137, %v1146
  %1149 = vrot.lane.b32.xlu0 %v1147, 64
  %v1150 = vpop.permute.xlu0 %1149
  %1152 = vst.msk [vmem:[#allocation3 + $0x8] sm:$0x3] %vm700, %v1150
  %1153 = vst.msk [vmem:[#allocation3 + $0x6] sm:$0x3] %vm702, %v1150
  %v1154 = vld [vmem:[#allocation2 + $0x10] sm:$0xc]
  %v1155 = vld [vmem:[#allocation2 + $0x18] sm:$0xc]
  %v1156 = vld [vmem:[#allocation2] sm:$0x30]
  %v1157 = vld [vmem:[#allocation2 + $0x8] sm:$0x30]
  %v1160 = vrot.slane %v1156, 2
  %v1161 = vrot.slane %v1157, 2
  %v1164 = vsel %vm159, %v1154, %v1160
  %v1165 = vsel %vm160, %v1155, %v1161
  %v1168 = vrot.slane %v1164, 2
  %v1169 = vrot.slane %v1165, 2
  %v1172 = vsel %vm80, %v1150, 0
  %1174 = vmatpush.msra.mxu0 0.0
  %1175 = vmatpush.msra.mxu0 0.0
  %1176 = vmatpush.msra.mxu0 0.0
  %1177 = vmatpush.msra.mxu0 0.0
  %1178 = vmatpush.msra.mxu0 0.0
  %1179 = vmatpush.msra.mxu0 0.0
  %1180 = vmatpush.msra.mxu0 0.0
  %1181 = vmatpush.msra.mxu0 0.0
  %1182 = vmatpush.msra.mxu0 %v191
  %1183 = vmatpush.msra.mxu0 %v189
  %1184 = vmatpush.msra.mxu0 %v187
  %1185 = vmatpush.msra.mxu0 %v185
  %1186 = vmatpush.msra.mxu0 %v183
  %1187 = vmatpush.msra.mxu0 %v181
  %1188 = vmatpush.msra.mxu0 %v179
  %1189 = vmatpush.msra.mxu0 %v177
  %1190 = vmatmul.f32.gmra.mxu0 %v1172
  %v1191 = vpop.f32.mrf.mxu0
  %v1192 = vadd.f32 %v1168, %v1191
  %1193 = vdwg.mxu0
  %1194 = vmatpush.msra.mxu0 0.0
  %1195 = vmatpush.msra.mxu0 0.0
  %1196 = vmatpush.msra.mxu0 0.0
  %1197 = vmatpush.msra.mxu0 0.0
  %1198 = vmatpush.msra.mxu0 0.0
  %1199 = vmatpush.msra.mxu0 0.0
  %1200 = vmatpush.msra.mxu0 0.0
  %1201 = vmatpush.msra.mxu0 0.0
  %1202 = vmatpush.msra.mxu0 %v192
  %1203 = vmatpush.msra.mxu0 %v190
  %1204 = vmatpush.msra.mxu0 %v188
  %1205 = vmatpush.msra.mxu0 %v186
  %1206 = vmatpush.msra.mxu0 %v184
  %1207 = vmatpush.msra.mxu0 %v182
  %1208 = vmatpush.msra.mxu0 %v180
  %1209 = vmatpush.msra.mxu0 %v178
  %1210 = vmatmul.f32.gmra.mxu0 %v1172
  %v1211 = vpop.f32.mrf.mxu0
  %v1212 = vadd.f32 %v1169, %v1211
  %1213 = vdwg.mxu0
  %v1214 = vxor.u32 %v1192, 2147483648
  %v1215 = vxor.u32 %v1212, 2147483648
  %v1216 = vmul.f32 %v1214, 1.442695
  %v1217 = vpow.pop %v1216
  %v1218 = vmul.f32 %v1215, 1.442695
  %v1219 = vpow.pop %v1218
  %v1220 = vadd.f32 %v1217, 1.0
  %v1221 = vadd.f32 %v1219, 1.0
  %v1222 = vrcp.pop %v1220
  %v1223 = vmul.f32 %v1220, %v1222
  %v1224 = vsub.f32 1.0, %v1223
  %v1225 = vmul.f32 %v1222, %v1224
  %v1226 = vadd.f32 %v1222, %v1225
  %vm1227 = vweird.f32 %v1220
  %vm1228 = vweird.f32 %v1222
  %vm1229 = vmor %vm1227, %vm1228
  %v1230 = vsel %vm1229, %v1222, %v1226
  %v1231 = vand.u32 2147483647, %v1220
  %vm1232 = vcmp.eq.f32.partialorder %v1231, 8.507059e+37
  %v1233 = vand.u32 %v1220, 2147483648
  %v1234 = vor.u32 1.1754944e-38, %v1233
  %v1235 = vsel %vm1232, %v1234, %v1230
  %v1236 = vmul.f32 1.0, %v1235
  %v1237 = vrcp.pop %v1221
  %v1238 = vmul.f32 %v1221, %v1237
  %v1239 = vsub.f32 1.0, %v1238
  %v1240 = vmul.f32 %v1237, %v1239
  %v1241 = vadd.f32 %v1237, %v1240
  %vm1242 = vweird.f32 %v1221
  %vm1243 = vweird.f32 %v1237
  %vm1244 = vmor %vm1242, %vm1243
  %v1245 = vsel %vm1244, %v1237, %v1241
  %v1246 = vand.u32 2147483647, %v1221
  %vm1247 = vcmp.eq.f32.partialorder %v1246, 8.507059e+37
  %v1248 = vand.u32 %v1221, 2147483648
  %v1249 = vor.u32 1.1754944e-38, %v1248
  %v1250 = vsel %vm1247, %v1249, %v1245
  %v1251 = vmul.f32 1.0, %v1250
  %v1252 = vtanh.pop %v1212
  %v1253 = vmul.f32 %v1236, %v1145
  %v1254 = vmul.f32 %v1236, %v1252
  %1256 = vrot.lane.b32.xlu0 %v1254, 64
  %v1257 = vpop.permute.xlu0 %1256
  %v1259 = vadd.f32 %v1253, %v1257
  %v1260 = vtanh.pop %v1259
  %v1261 = vmul.f32 %v1251, %v1260
  %1263 = vrot.lane.b32.xlu0 %v1261, 64
  %v1264 = vpop.permute.xlu0 %1263
  %1266 = vst.msk [vmem:[#allocation3 + $0xa] sm:$0x3] %vm700, %v1264
  %1267 = vst.msk [vmem:[#allocation3 + $0x4] sm:$0x3] %vm702, %v1264
  %v1268 = vld [vmem:[#allocation2 + $0x10] sm:$0x30]
  %v1269 = vld [vmem:[#allocation2 + $0x18] sm:$0x30]
  %v1270 = vld [vmem:[#allocation2] sm:$0xc]
  %v1271 = vld [vmem:[#allocation2 + $0x8] sm:$0xc]
  %v1274 = vrot.slane %v1270, 6
  %v1275 = vrot.slane %v1271, 6
  %v1278 = vsel %vm159, %v1268, %v1274
  %v1279 = vsel %vm160, %v1269, %v1275
  %v1282 = vrot.slane %v1278, 4
  %v1283 = vrot.slane %v1279, 4
  %v1286 = vsel %vm80, %v1264, 0
  %1288 = vmatpush.msra.mxu0 0.0
  %1289 = vmatpush.msra.mxu0 0.0
  %1290 = vmatpush.msra.mxu0 0.0
  %1291 = vmatpush.msra.mxu0 0.0
  %1292 = vmatpush.msra.mxu0 0.0
  %1293 = vmatpush.msra.mxu0 0.0
  %1294 = vmatpush.msra.mxu0 0.0
  %1295 = vmatpush.msra.mxu0 0.0
  %1296 = vmatpush.msra.mxu0 %v191
  %1297 = vmatpush.msra.mxu0 %v189
  %1298 = vmatpush.msra.mxu0 %v187
  %1299 = vmatpush.msra.mxu0 %v185
  %1300 = vmatpush.msra.mxu0 %v183
  %1301 = vmatpush.msra.mxu0 %v181
  %1302 = vmatpush.msra.mxu0 %v179
  %1303 = vmatpush.msra.mxu0 %v177
  %1304 = vmatmul.f32.gmra.mxu0 %v1286
  %v1305 = vpop.f32.mrf.mxu0
  %v1306 = vadd.f32 %v1282, %v1305
  %1307 = vdwg.mxu0
  %1308 = vmatpush.msra.mxu0 0.0
  %1309 = vmatpush.msra.mxu0 0.0
  %1310 = vmatpush.msra.mxu0 0.0
  %1311 = vmatpush.msra.mxu0 0.0
  %1312 = vmatpush.msra.mxu0 0.0
  %1313 = vmatpush.msra.mxu0 0.0
  %1314 = vmatpush.msra.mxu0 0.0
  %1315 = vmatpush.msra.mxu0 0.0
  %1316 = vmatpush.msra.mxu0 %v192
  %1317 = vmatpush.msra.mxu0 %v190
  %1318 = vmatpush.msra.mxu0 %v188
  %1319 = vmatpush.msra.mxu0 %v186
  %1320 = vmatpush.msra.mxu0 %v184
  %1321 = vmatpush.msra.mxu0 %v182
  %1322 = vmatpush.msra.mxu0 %v180
  %1323 = vmatpush.msra.mxu0 %v178
  %1324 = vmatmul.f32.gmra.mxu0 %v1286
  %v1325 = vpop.f32.mrf.mxu0
  %v1326 = vadd.f32 %v1283, %v1325
  %1327 = vdwg.mxu0
  %v1328 = vxor.u32 %v1306, 2147483648
  %v1329 = vxor.u32 %v1326, 2147483648
  %v1330 = vmul.f32 %v1328, 1.442695
  %v1331 = vpow.pop %v1330
  %v1332 = vmul.f32 %v1329, 1.442695
  %v1333 = vpow.pop %v1332
  %v1334 = vadd.f32 %v1331, 1.0
  %v1335 = vadd.f32 %v1333, 1.0
  %v1336 = vrcp.pop %v1334
  %v1337 = vmul.f32 %v1334, %v1336
  %v1338 = vsub.f32 1.0, %v1337
  %v1339 = vmul.f32 %v1336, %v1338
  %v1340 = vadd.f32 %v1336, %v1339
  %vm1341 = vweird.f32 %v1334
  %vm1342 = vweird.f32 %v1336
  %vm1343 = vmor %vm1341, %vm1342
  %v1344 = vsel %vm1343, %v1336, %v1340
  %v1345 = vand.u32 2147483647, %v1334
  %vm1346 = vcmp.eq.f32.partialorder %v1345, 8.507059e+37
  %v1347 = vand.u32 %v1334, 2147483648
  %v1348 = vor.u32 1.1754944e-38, %v1347
  %v1349 = vsel %vm1346, %v1348, %v1344
  %v1350 = vmul.f32 1.0, %v1349
  %v1351 = vrcp.pop %v1335
  %v1352 = vmul.f32 %v1335, %v1351
  %v1353 = vsub.f32 1.0, %v1352
  %v1354 = vmul.f32 %v1351, %v1353
  %v1355 = vadd.f32 %v1351, %v1354
  %vm1356 = vweird.f32 %v1335
  %vm1357 = vweird.f32 %v1351
  %vm1358 = vmor %vm1356, %vm1357
  %v1359 = vsel %vm1358, %v1351, %v1355
  %v1360 = vand.u32 2147483647, %v1335
  %vm1361 = vcmp.eq.f32.partialorder %v1360, 8.507059e+37
  %v1362 = vand.u32 %v1335, 2147483648
  %v1363 = vor.u32 1.1754944e-38, %v1362
  %v1364 = vsel %vm1361, %v1363, %v1359
  %v1365 = vmul.f32 1.0, %v1364
  %v1366 = vtanh.pop %v1326
  %v1367 = vmul.f32 %v1350, %v1259
  %v1368 = vmul.f32 %v1350, %v1366
  %1370 = vrot.lane.b32.xlu0 %v1368, 64
  %v1371 = vpop.permute.xlu0 %1370
  %v1373 = vadd.f32 %v1367, %v1371
  %v1374 = vtanh.pop %v1373
  %v1375 = vmul.f32 %v1365, %v1374
  %1377 = vrot.lane.b32.xlu0 %v1375, 64
  %v1378 = vpop.permute.xlu0 %1377
  %1380 = vst.msk [vmem:[#allocation3 + $0xc] sm:$0x3] %vm700, %v1378
  %1381 = vst.msk [vmem:[#allocation3 + $0x2] sm:$0x3] %vm702, %v1378
  %v1382 = vld [vmem:[#allocation2 + $0x10] sm:$0xc0]
  %v1383 = vld [vmem:[#allocation2 + $0x18] sm:$0xc0]
  %v1384 = vld [vmem:[#allocation2] sm:$0x3]
  %v1385 = vld [vmem:[#allocation2 + $0x8] sm:$0x3]
  %v1388 = vrot.slane %v1384, 2
  %v1389 = vrot.slane %v1385, 2
  %v1392 = vsel %vm159, %v1382, %v1388
  %v1393 = vsel %vm160, %v1383, %v1389
  %v1396 = vrot.slane %v1392, 6
  %v1397 = vrot.slane %v1393, 6
  %v1400 = vsel %vm80, %v1378, 0
  %1402 = vmatpush.msra.mxu0 0.0
  %1403 = vmatpush.msra.mxu0 0.0
  %1404 = vmatpush.msra.mxu0 0.0
  %1405 = vmatpush.msra.mxu0 0.0
  %1406 = vmatpush.msra.mxu0 0.0
  %1407 = vmatpush.msra.mxu0 0.0
  %1408 = vmatpush.msra.mxu0 0.0
  %1409 = vmatpush.msra.mxu0 0.0
  %1410 = vmatpush.msra.mxu0 %v191
  %1411 = vmatpush.msra.mxu0 %v189
  %1412 = vmatpush.msra.mxu0 %v187
  %1413 = vmatpush.msra.mxu0 %v185
  %1414 = vmatpush.msra.mxu0 %v183
  %1415 = vmatpush.msra.mxu0 %v181
  %1416 = vmatpush.msra.mxu0 %v179
  %1417 = vmatpush.msra.mxu0 %v177
  %1418 = vmatmul.f32.gmra.mxu0 %v1400
  %v1419 = vpop.f32.mrf.mxu0
  %v1420 = vadd.f32 %v1396, %v1419
  %1421 = vdwg.mxu0
  %1422 = vmatpush.msra.mxu0 0.0
  %1423 = vmatpush.msra.mxu0 0.0
  %1424 = vmatpush.msra.mxu0 0.0
  %1425 = vmatpush.msra.mxu0 0.0
  %1426 = vmatpush.msra.mxu0 0.0
  %1427 = vmatpush.msra.mxu0 0.0
  %1428 = vmatpush.msra.mxu0 0.0
  %1429 = vmatpush.msra.mxu0 0.0
  %1430 = vmatpush.msra.mxu0 %v192
  %1431 = vmatpush.msra.mxu0 %v190
  %1432 = vmatpush.msra.mxu0 %v188
  %1433 = vmatpush.msra.mxu0 %v186
  %1434 = vmatpush.msra.mxu0 %v184
  %1435 = vmatpush.msra.mxu0 %v182
  %1436 = vmatpush.msra.mxu0 %v180
  %1437 = vmatpush.msra.mxu0 %v178
  %1438 = vmatmul.f32.gmra.mxu0 %v1400
  %v1439 = vpop.f32.mrf.mxu0
  %v1440 = vadd.f32 %v1397, %v1439
  %1441 = vdwg.mxu0
  %v1442 = vxor.u32 %v1420, 2147483648
  %v1443 = vxor.u32 %v1440, 2147483648
  %v1444 = vmul.f32 %v1442, 1.442695
  %v1445 = vpow.pop %v1444
  %v1446 = vmul.f32 %v1443, 1.442695
  %v1447 = vpow.pop %v1446
  %v1448 = vadd.f32 %v1445, 1.0
  %v1449 = vadd.f32 %v1447, 1.0
  %v1450 = vrcp.pop %v1448
  %v1451 = vmul.f32 %v1448, %v1450
  %v1452 = vsub.f32 1.0, %v1451
  %v1453 = vmul.f32 %v1450, %v1452
  %v1454 = vadd.f32 %v1450, %v1453
  %vm1455 = vweird.f32 %v1448
  %vm1456 = vweird.f32 %v1450
  %vm1457 = vmor %vm1455, %vm1456
  %v1458 = vsel %vm1457, %v1450, %v1454
  %v1459 = vand.u32 2147483647, %v1448
  %vm1460 = vcmp.eq.f32.partialorder %v1459, 8.507059e+37
  %v1461 = vand.u32 %v1448, 2147483648
  %v1462 = vor.u32 1.1754944e-38, %v1461
  %v1463 = vsel %vm1460, %v1462, %v1458
  %v1464 = vmul.f32 1.0, %v1463
  %v1465 = vrcp.pop %v1449
  %v1466 = vmul.f32 %v1449, %v1465
  %v1467 = vsub.f32 1.0, %v1466
  %v1468 = vmul.f32 %v1465, %v1467
  %v1469 = vadd.f32 %v1465, %v1468
  %vm1470 = vweird.f32 %v1449
  %vm1471 = vweird.f32 %v1465
  %vm1472 = vmor %vm1470, %vm1471
  %v1473 = vsel %vm1472, %v1465, %v1469
  %v1474 = vand.u32 2147483647, %v1449
  %vm1475 = vcmp.eq.f32.partialorder %v1474, 8.507059e+37
  %v1476 = vand.u32 %v1449, 2147483648
  %v1477 = vor.u32 1.1754944e-38, %v1476
  %v1478 = vsel %vm1475, %v1477, %v1473
  %v1479 = vmul.f32 1.0, %v1478
  %v1480 = vtanh.pop %v1440
  %v1481 = vmul.f32 %v1464, %v1373
  %v1482 = vmul.f32 %v1464, %v1480
  %1484 = vrot.lane.b32.xlu0 %v1482, 64
  %v1485 = vpop.permute.xlu0 %1484
  %v1487 = vadd.f32 %v1481, %v1485
  %v1488 = vtanh.pop %v1487
  %v1489 = vmul.f32 %v1479, %v1488
  %1491 = vrot.lane.b32.xlu0 %v1489, 64
  %v1492 = vpop.permute.xlu0 %1491
  %1494 = vst.msk [vmem:[#allocation3 + $0xe] sm:$0x3] %vm700, %v1492
  %1495 = vst.msk [vmem:[#allocation3] sm:$0x3] %vm702, %v1492
  %v1496 = vld [vmem:[#allocation3] sm:$0xff]
  %v1497 = vld [vmem:[#allocation3 + $0x8] sm:$0xff]
  %v1499 = vperm.slane %v31, 0
  %v1500 = vperm.slane %v31, 1
  %v1504 = vsel %vm80, %v1496, 0
  %v1507 = vsel %vm80, %v1497, 0
  %1509 = vmatpush.msra.mxu0 0.0
  %1510 = vmatpush.msra.mxu0 0.0
  %1511 = vmatpush.msra.mxu0 0.0
  %1512 = vmatpush.msra.mxu0 0.0
  %1513 = vmatpush.msra.mxu0 0.0
  %1514 = vmatpush.msra.mxu0 0.0
  %1515 = vmatpush.msra.mxu0 0.0
  %1516 = vmatpush.msra.mxu0 0.0
  %1517 = vmatpush.msra.mxu0 %v175
  %1518 = vmatpush.msra.mxu0 %v173
  %1519 = vmatpush.msra.mxu0 %v171
  %1520 = vmatpush.msra.mxu0 %v169
  %1521 = vmatpush.msra.mxu0 %v167
  %1522 = vmatpush.msra.mxu0 %v165
  %1523 = vmatpush.msra.mxu0 %v163
  %1524 = vmatpush.msra.mxu0 %v161
  %1525 = vmatmul.f32.gmra.mxu0 %v1504
  %v1526 = vpop.f32.mrf.mxu0
  %v1527 = vadd.f32 %v1499, %v1526
  %1528 = vmatmul.f32.gmra.mxu0 %v1507
  %v1529 = vpop.f32.mrf.mxu0
  %v1530 = vadd.f32 %v1499, %v1529
  %1531 = vdwg.mxu0
  %1532 = vmatpush.msra.mxu0 0.0
  %1533 = vmatpush.msra.mxu0 0.0
  %1534 = vmatpush.msra.mxu0 0.0
  %1535 = vmatpush.msra.mxu0 0.0
  %1536 = vmatpush.msra.mxu0 0.0
  %1537 = vmatpush.msra.mxu0 0.0
  %1538 = vmatpush.msra.mxu0 0.0
  %1539 = vmatpush.msra.mxu0 0.0
  %1540 = vmatpush.msra.mxu0 %v176
  %1541 = vmatpush.msra.mxu0 %v174
  %1542 = vmatpush.msra.mxu0 %v172
  %1543 = vmatpush.msra.mxu0 %v170
  %1544 = vmatpush.msra.mxu0 %v168
  %1545 = vmatpush.msra.mxu0 %v166
  %1546 = vmatpush.msra.mxu0 %v164
  %1547 = vmatpush.msra.mxu0 %v162
  %1548 = vmatmul.f32.gmra.mxu0 %v1504
  %v1549 = vpop.f32.mrf.mxu0
  %v1550 = vadd.f32 %v1500, %v1549
  %1551 = vmatmul.f32.gmra.mxu0 %v1507
  %v1552 = vpop.f32.mrf.mxu0
  %v1553 = vadd.f32 %v1500, %v1552
  %1554 = vdwg.mxu0
  %1555 = vst [vmem:[#allocation2] sm:$0xff] %v1527
  %1556 = vst [vmem:[#allocation2 + $0x8] sm:$0xff] %v1550
  %1557 = vst [vmem:[#allocation2 + $0x10] sm:$0xff] %v1530
  %1558 = vst [vmem:[#allocation2 + $0x18] sm:$0xff] %v1553
  %v1559 = vld [vmem:[#allocation2] sm:$0x3]
  %v1560 = vld [vmem:[#allocation2 + $0x8] sm:$0x3]
  %v1561 = vld [vmem:[#allocation2 + $0x10] sm:$0xc0]
  %v1562 = vld [vmem:[#allocation2 + $0x18] sm:$0xc0]
  %v1565 = vrot.slane %v1561, 6
  %v1566 = vrot.slane %v1562, 6
  %v1569 = vsel %vm159, %v1559, %v1565
  %v1570 = vsel %vm160, %v1560, %v1566
  %1571 = vmatpush.msra.mxu0 0.0
  %1572 = vmatpush.msra.mxu0 0.0
  %1573 = vmatpush.msra.mxu0 0.0
  %1574 = vmatpush.msra.mxu0 0.0
  %1575 = vmatpush.msra.mxu0 0.0
  %1576 = vmatpush.msra.mxu0 0.0
  %1577 = vmatpush.msra.mxu0 0.0
  %1578 = vmatpush.msra.mxu0 0.0
  %1579 = vmatpush.msra.mxu0 %v207
  %1580 = vmatpush.msra.mxu0 %v205
  %1581 = vmatpush.msra.mxu0 %v203
  %1582 = vmatpush.msra.mxu0 %v201
  %1583 = vmatpush.msra.mxu0 %v199
  %1584 = vmatpush.msra.mxu0 %v197
  %1585 = vmatpush.msra.mxu0 %v195
  %1586 = vmatpush.msra.mxu0 %v193
  %1587 = vmatmul.f32.gmra.mxu0 %v606
  %v1588 = vpop.f32.mrf.mxu0
  %v1589 = vadd.f32 %v1569, %v1588
  %1590 = vdwg.mxu0
  %1591 = vmatpush.msra.mxu0 0.0
  %1592 = vmatpush.msra.mxu0 0.0
  %1593 = vmatpush.msra.mxu0 0.0
  %1594 = vmatpush.msra.mxu0 0.0
  %1595 = vmatpush.msra.mxu0 0.0
  %1596 = vmatpush.msra.mxu0 0.0
  %1597 = vmatpush.msra.mxu0 0.0
  %1598 = vmatpush.msra.mxu0 0.0
  %1599 = vmatpush.msra.mxu0 %v208
  %1600 = vmatpush.msra.mxu0 %v206
  %1601 = vmatpush.msra.mxu0 %v204
  %1602 = vmatpush.msra.mxu0 %v202
  %1603 = vmatpush.msra.mxu0 %v200
  %1604 = vmatpush.msra.mxu0 %v198
  %1605 = vmatpush.msra.mxu0 %v196
  %1606 = vmatpush.msra.mxu0 %v194
  %1607 = vmatmul.f32.gmra.mxu0 %v606
  %v1608 = vpop.f32.mrf.mxu0
  %v1609 = vadd.f32 %v1570, %v1608
  %1610 = vdwg.mxu0
  %v1611 = vxor.u32 %v1589, 2147483648
  %v1612 = vxor.u32 %v1609, 2147483648
  %v1613 = vmul.f32 %v1611, 1.442695
  %v1614 = vpow.pop %v1613
  %v1615 = vmul.f32 %v1612, 1.442695
  %v1616 = vpow.pop %v1615
  %v1617 = vadd.f32 %v1614, 1.0
  %v1618 = vadd.f32 %v1616, 1.0
  %v1619 = vrcp.pop %v1617
  %v1620 = vmul.f32 %v1617, %v1619
  %v1621 = vsub.f32 1.0, %v1620
  %v1622 = vmul.f32 %v1619, %v1621
  %v1623 = vadd.f32 %v1619, %v1622
  %vm1624 = vweird.f32 %v1617
  %vm1625 = vweird.f32 %v1619
  %vm1626 = vmor %vm1624, %vm1625
  %v1627 = vsel %vm1626, %v1619, %v1623
  %v1628 = vand.u32 2147483647, %v1617
  %vm1629 = vcmp.eq.f32.partialorder %v1628, 8.507059e+37
  %v1630 = vand.u32 %v1617, 2147483648
  %v1631 = vor.u32 1.1754944e-38, %v1630
  %v1632 = vsel %vm1629, %v1631, %v1627
  %v1633 = vmul.f32 1.0, %v1632
  %v1634 = vrcp.pop %v1618
  %v1635 = vmul.f32 %v1618, %v1634
  %v1636 = vsub.f32 1.0, %v1635
  %v1637 = vmul.f32 %v1634, %v1636
  %v1638 = vadd.f32 %v1634, %v1637
  %vm1639 = vweird.f32 %v1618
  %vm1640 = vweird.f32 %v1634
  %vm1641 = vmor %vm1639, %vm1640
  %v1642 = vsel %vm1641, %v1634, %v1638
  %v1643 = vand.u32 2147483647, %v1618
  %vm1644 = vcmp.eq.f32.partialorder %v1643, 8.507059e+37
  %v1645 = vand.u32 %v1618, 2147483648
  %v1646 = vor.u32 1.1754944e-38, %v1645
  %v1647 = vsel %vm1644, %v1646, %v1642
  %v1648 = vmul.f32 1.0, %v1647
  %v1649 = vtanh.pop %v1609
  %v1650 = vmul.f32 %v1633, 0.0
  %v1651 = vmul.f32 %v1633, %v1649
  %1653 = vrot.lane.b32.xlu0 %v1651, 64
  %v1654 = vpop.permute.xlu0 %1653
  %v1656 = vadd.f32 %v1650, %v1654
  %v1657 = vtanh.pop %v1656
  %v1658 = vmul.f32 %v1648, %v1657
  %v1659 = vld [vmem:[#allocation2] sm:$0xc]
  %v1660 = vld [vmem:[#allocation2 + $0x8] sm:$0xc]
  %v1661 = vld [vmem:[#allocation2 + $0x10] sm:$0x30]
  %v1662 = vld [vmem:[#allocation2 + $0x18] sm:$0x30]
  %v1665 = vrot.slane %v1661, 2
  %v1666 = vrot.slane %v1662, 2
  %v1669 = vsel %vm159, %v1659, %v1665
  %v1670 = vsel %vm160, %v1660, %v1666
  %1672 = vrot.lane.b32.xlu0 %v1658, 64
  %v1673 = vpop.permute.xlu0 %1672
  %v1676 = vrot.slane %v1669, 2
  %v1677 = vrot.slane %v1670, 2
  %v1680 = vsel %vm80, %v1673, 0
  %1682 = vmatpush.msra.mxu0 0.0
  %1683 = vmatpush.msra.mxu0 0.0
  %1684 = vmatpush.msra.mxu0 0.0
  %1685 = vmatpush.msra.mxu0 0.0
  %1686 = vmatpush.msra.mxu0 0.0
  %1687 = vmatpush.msra.mxu0 0.0
  %1688 = vmatpush.msra.mxu0 0.0
  %1689 = vmatpush.msra.mxu0 0.0
  %1690 = vmatpush.msra.mxu0 %v207
  %1691 = vmatpush.msra.mxu0 %v205
  %1692 = vmatpush.msra.mxu0 %v203
  %1693 = vmatpush.msra.mxu0 %v201
  %1694 = vmatpush.msra.mxu0 %v199
  %1695 = vmatpush.msra.mxu0 %v197
  %1696 = vmatpush.msra.mxu0 %v195
  %1697 = vmatpush.msra.mxu0 %v193
  %1698 = vmatmul.f32.gmra.mxu0 %v1680
  %v1699 = vpop.f32.mrf.mxu0
  %v1700 = vadd.f32 %v1676, %v1699
  %1701 = vdwg.mxu0
  %1702 = vmatpush.msra.mxu0 0.0
  %1703 = vmatpush.msra.mxu0 0.0
  %1704 = vmatpush.msra.mxu0 0.0
  %1705 = vmatpush.msra.mxu0 0.0
  %1706 = vmatpush.msra.mxu0 0.0
  %1707 = vmatpush.msra.mxu0 0.0
  %1708 = vmatpush.msra.mxu0 0.0
  %1709 = vmatpush.msra.mxu0 0.0
  %1710 = vmatpush.msra.mxu0 %v208
  %1711 = vmatpush.msra.mxu0 %v206
  %1712 = vmatpush.msra.mxu0 %v204
  %1713 = vmatpush.msra.mxu0 %v202
  %1714 = vmatpush.msra.mxu0 %v200
  %1715 = vmatpush.msra.mxu0 %v198
  %1716 = vmatpush.msra.mxu0 %v196
  %1717 = vmatpush.msra.mxu0 %v194
  %1718 = vmatmul.f32.gmra.mxu0 %v1680
  %v1719 = vpop.f32.mrf.mxu0
  %v1720 = vadd.f32 %v1677, %v1719
  %1721 = vdwg.mxu0
  %v1722 = vxor.u32 %v1700, 2147483648
  %v1723 = vxor.u32 %v1720, 2147483648
  %v1724 = vmul.f32 %v1722, 1.442695
  %v1725 = vpow.pop %v1724
  %v1726 = vmul.f32 %v1723, 1.442695
  %v1727 = vpow.pop %v1726
  %v1728 = vadd.f32 %v1725, 1.0
  %v1729 = vadd.f32 %v1727, 1.0
  %v1730 = vrcp.pop %v1728
  %v1731 = vmul.f32 %v1728, %v1730
  %v1732 = vsub.f32 1.0, %v1731
  %v1733 = vmul.f32 %v1730, %v1732
  %v1734 = vadd.f32 %v1730, %v1733
  %vm1735 = vweird.f32 %v1728
  %vm1736 = vweird.f32 %v1730
  %vm1737 = vmor %vm1735, %vm1736
  %v1738 = vsel %vm1737, %v1730, %v1734
  %v1739 = vand.u32 2147483647, %v1728
  %vm1740 = vcmp.eq.f32.partialorder %v1739, 8.507059e+37
  %v1741 = vand.u32 %v1728, 2147483648
  %v1742 = vor.u32 1.1754944e-38, %v1741
  %v1743 = vsel %vm1740, %v1742, %v1738
  %v1744 = vmul.f32 1.0, %v1743
  %v1745 = vrcp.pop %v1729
  %v1746 = vmul.f32 %v1729, %v1745
  %v1747 = vsub.f32 1.0, %v1746
  %v1748 = vmul.f32 %v1745, %v1747
  %v1749 = vadd.f32 %v1745, %v1748
  %vm1750 = vweird.f32 %v1729
  %vm1751 = vweird.f32 %v1745
  %vm1752 = vmor %vm1750, %vm1751
  %v1753 = vsel %vm1752, %v1745, %v1749
  %v1754 = vand.u32 2147483647, %v1729
  %vm1755 = vcmp.eq.f32.partialorder %v1754, 8.507059e+37
  %v1756 = vand.u32 %v1729, 2147483648
  %v1757 = vor.u32 1.1754944e-38, %v1756
  %v1758 = vsel %vm1755, %v1757, %v1753
  %v1759 = vmul.f32 1.0, %v1758
  %v1760 = vtanh.pop %v1720
  %v1761 = vmul.f32 %v1744, %v1656
  %v1762 = vmul.f32 %v1744, %v1760
  %1764 = vrot.lane.b32.xlu0 %v1762, 64
  %v1765 = vpop.permute.xlu0 %1764
  %v1767 = vadd.f32 %v1761, %v1765
  %v1768 = vtanh.pop %v1767
  %v1769 = vmul.f32 %v1759, %v1768
  %v1770 = vmax.f32 %v1658, %v1769
  %v1771 = vmin.f32 %v1658, %v1769
  %v1772 = vld [vmem:[#allocation2] sm:$0x30]
  %v1773 = vld [vmem:[#allocation2 + $0x8] sm:$0x30]
  %v1774 = vld [vmem:[#allocation2 + $0x10] sm:$0xc]
  %v1775 = vld [vmem:[#allocation2 + $0x18] sm:$0xc]
  %v1778 = vrot.slane %v1774, 6
  %v1779 = vrot.slane %v1775, 6
  %v1782 = vsel %vm159, %v1772, %v1778
  %v1783 = vsel %vm160, %v1773, %v1779
  %1785 = vrot.lane.b32.xlu0 %v1769, 64
  %v1786 = vpop.permute.xlu0 %1785
  %v1789 = vrot.slane %v1782, 4
  %v1790 = vrot.slane %v1783, 4
  %v1793 = vsel %vm80, %v1786, 0
  %1795 = vmatpush.msra.mxu0 0.0
  %1796 = vmatpush.msra.mxu0 0.0
  %1797 = vmatpush.msra.mxu0 0.0
  %1798 = vmatpush.msra.mxu0 0.0
  %1799 = vmatpush.msra.mxu0 0.0
  %1800 = vmatpush.msra.mxu0 0.0
  %1801 = vmatpush.msra.mxu0 0.0
  %1802 = vmatpush.msra.mxu0 0.0
  %1803 = vmatpush.msra.mxu0 %v207
  %1804 = vmatpush.msra.mxu0 %v205
  %1805 = vmatpush.msra.mxu0 %v203
  %1806 = vmatpush.msra.mxu0 %v201
  %1807 = vmatpush.msra.mxu0 %v199
  %1808 = vmatpush.msra.mxu0 %v197
  %1809 = vmatpush.msra.mxu0 %v195
  %1810 = vmatpush.msra.mxu0 %v193
  %1811 = vmatmul.f32.gmra.mxu0 %v1793
  %v1812 = vpop.f32.mrf.mxu0
  %v1813 = vadd.f32 %v1789, %v1812
  %1814 = vdwg.mxu0
  %1815 = vmatpush.msra.mxu0 0.0
  %1816 = vmatpush.msra.mxu0 0.0
  %1817 = vmatpush.msra.mxu0 0.0
  %1818 = vmatpush.msra.mxu0 0.0
  %1819 = vmatpush.msra.mxu0 0.0
  %1820 = vmatpush.msra.mxu0 0.0
  %1821 = vmatpush.msra.mxu0 0.0
  %1822 = vmatpush.msra.mxu0 0.0
  %1823 = vmatpush.msra.mxu0 %v208
  %1824 = vmatpush.msra.mxu0 %v206
  %1825 = vmatpush.msra.mxu0 %v204
  %1826 = vmatpush.msra.mxu0 %v202
  %1827 = vmatpush.msra.mxu0 %v200
  %1828 = vmatpush.msra.mxu0 %v198
  %1829 = vmatpush.msra.mxu0 %v196
  %1830 = vmatpush.msra.mxu0 %v194
  %1831 = vmatmul.f32.gmra.mxu0 %v1793
  %v1832 = vpop.f32.mrf.mxu0
  %v1833 = vadd.f32 %v1790, %v1832
  %1834 = vdwg.mxu0
  %v1835 = vxor.u32 %v1813, 2147483648
  %v1836 = vxor.u32 %v1833, 2147483648
  %v1837 = vmul.f32 %v1835, 1.442695
  %v1838 = vpow.pop %v1837
  %v1839 = vmul.f32 %v1836, 1.442695
  %v1840 = vpow.pop %v1839
  %v1841 = vadd.f32 %v1838, 1.0
  %v1842 = vadd.f32 %v1840, 1.0
  %v1843 = vrcp.pop %v1841
  %v1844 = vmul.f32 %v1841, %v1843
  %v1845 = vsub.f32 1.0, %v1844
  %v1846 = vmul.f32 %v1843, %v1845
  %v1847 = vadd.f32 %v1843, %v1846
  %vm1848 = vweird.f32 %v1841
  %vm1849 = vweird.f32 %v1843
  %vm1850 = vmor %vm1848, %vm1849
  %v1851 = vsel %vm1850, %v1843, %v1847
  %v1852 = vand.u32 2147483647, %v1841
  %vm1853 = vcmp.eq.f32.partialorder %v1852, 8.507059e+37
  %v1854 = vand.u32 %v1841, 2147483648
  %v1855 = vor.u32 1.1754944e-38, %v1854
  %v1856 = vsel %vm1853, %v1855, %v1851
  %v1857 = vmul.f32 1.0, %v1856
  %v1858 = vrcp.pop %v1842
  %v1859 = vmul.f32 %v1842, %v1858
  %v1860 = vsub.f32 1.0, %v1859
  %v1861 = vmul.f32 %v1858, %v1860
  %v1862 = vadd.f32 %v1858, %v1861
  %vm1863 = vweird.f32 %v1842
  %vm1864 = vweird.f32 %v1858
  %vm1865 = vmor %vm1863, %vm1864
  %v1866 = vsel %vm1865, %v1858, %v1862
  %v1867 = vand.u32 2147483647, %v1842
  %vm1868 = vcmp.eq.f32.partialorder %v1867, 8.507059e+37
  %v1869 = vand.u32 %v1842, 2147483648
  %v1870 = vor.u32 1.1754944e-38, %v1869
  %v1871 = vsel %vm1868, %v1870, %v1866
  %v1872 = vmul.f32 1.0, %v1871
  %v1873 = vtanh.pop %v1833
  %v1874 = vmul.f32 %v1857, %v1767
  %v1875 = vmul.f32 %v1857, %v1873
  %1877 = vrot.lane.b32.xlu0 %v1875, 64
  %v1878 = vpop.permute.xlu0 %1877
  %v1880 = vadd.f32 %v1874, %v1878
  %v1881 = vtanh.pop %v1880
  %v1882 = vmul.f32 %v1872, %v1881
  %v1883 = vmax.f32 %v1770, %v1882
  %v1884 = vmin.f32 %v1771, %v1882
  %v1885 = vld [vmem:[#allocation2] sm:$0xc0]
  %v1886 = vld [vmem:[#allocation2 + $0x8] sm:$0xc0]
  %v1887 = vld [vmem:[#allocation2 + $0x10] sm:$0x3]
  %v1888 = vld [vmem:[#allocation2 + $0x18] sm:$0x3]
  %v1891 = vrot.slane %v1887, 2
  %v1892 = vrot.slane %v1888, 2
  %v1895 = vsel %vm159, %v1885, %v1891
  %v1896 = vsel %vm160, %v1886, %v1892
  %1898 = vrot.lane.b32.xlu0 %v1882, 64
  %v1899 = vpop.permute.xlu0 %1898
  %v1902 = vrot.slane %v1895, 6
  %v1903 = vrot.slane %v1896, 6
  %v1906 = vsel %vm80, %v1899, 0
  %1908 = vmatpush.msra.mxu0 0.0
  %1909 = vmatpush.msra.mxu0 0.0
  %1910 = vmatpush.msra.mxu0 0.0
  %1911 = vmatpush.msra.mxu0 0.0
  %1912 = vmatpush.msra.mxu0 0.0
  %1913 = vmatpush.msra.mxu0 0.0
  %1914 = vmatpush.msra.mxu0 0.0
  %1915 = vmatpush.msra.mxu0 0.0
  %1916 = vmatpush.msra.mxu0 %v207
  %1917 = vmatpush.msra.mxu0 %v205
  %1918 = vmatpush.msra.mxu0 %v203
  %1919 = vmatpush.msra.mxu0 %v201
  %1920 = vmatpush.msra.mxu0 %v199
  %1921 = vmatpush.msra.mxu0 %v197
  %1922 = vmatpush.msra.mxu0 %v195
  %1923 = vmatpush.msra.mxu0 %v193
  %1924 = vmatmul.f32.gmra.mxu0 %v1906
  %v1925 = vpop.f32.mrf.mxu0
  %v1926 = vadd.f32 %v1902, %v1925
  %1927 = vdwg.mxu0
  %1928 = vmatpush.msra.mxu0 0.0
  %1929 = vmatpush.msra.mxu0 0.0
  %1930 = vmatpush.msra.mxu0 0.0
  %1931 = vmatpush.msra.mxu0 0.0
  %1932 = vmatpush.msra.mxu0 0.0
  %1933 = vmatpush.msra.mxu0 0.0
  %1934 = vmatpush.msra.mxu0 0.0
  %1935 = vmatpush.msra.mxu0 0.0
  %1936 = vmatpush.msra.mxu0 %v208
  %1937 = vmatpush.msra.mxu0 %v206
  %1938 = vmatpush.msra.mxu0 %v204
  %1939 = vmatpush.msra.mxu0 %v202
  %1940 = vmatpush.msra.mxu0 %v200
  %1941 = vmatpush.msra.mxu0 %v198
  %1942 = vmatpush.msra.mxu0 %v196
  %1943 = vmatpush.msra.mxu0 %v194
  %1944 = vmatmul.f32.gmra.mxu0 %v1906
  %v1945 = vpop.f32.mrf.mxu0
  %v1946 = vadd.f32 %v1903, %v1945
  %1947 = vdwg.mxu0
  %v1948 = vxor.u32 %v1926, 2147483648
  %v1949 = vxor.u32 %v1946, 2147483648
  %v1950 = vmul.f32 %v1948, 1.442695
  %v1951 = vpow.pop %v1950
  %v1952 = vmul.f32 %v1949, 1.442695
  %v1953 = vpow.pop %v1952
  %v1954 = vadd.f32 %v1951, 1.0
  %v1955 = vadd.f32 %v1953, 1.0
  %v1956 = vrcp.pop %v1954
  %v1957 = vmul.f32 %v1954, %v1956
  %v1958 = vsub.f32 1.0, %v1957
  %v1959 = vmul.f32 %v1956, %v1958
  %v1960 = vadd.f32 %v1956, %v1959
  %vm1961 = vweird.f32 %v1954
  %vm1962 = vweird.f32 %v1956
  %vm1963 = vmor %vm1961, %vm1962
  %v1964 = vsel %vm1963, %v1956, %v1960
  %v1965 = vand.u32 2147483647, %v1954
  %vm1966 = vcmp.eq.f32.partialorder %v1965, 8.507059e+37
  %v1967 = vand.u32 %v1954, 2147483648
  %v1968 = vor.u32 1.1754944e-38, %v1967
  %v1969 = vsel %vm1966, %v1968, %v1964
  %v1970 = vmul.f32 1.0, %v1969
  %v1971 = vrcp.pop %v1955
  %v1972 = vmul.f32 %v1955, %v1971
  %v1973 = vsub.f32 1.0, %v1972
  %v1974 = vmul.f32 %v1971, %v1973
  %v1975 = vadd.f32 %v1971, %v1974
  %vm1976 = vweird.f32 %v1955
  %vm1977 = vweird.f32 %v1971
  %vm1978 = vmor %vm1976, %vm1977
  %v1979 = vsel %vm1978, %v1971, %v1975
  %v1980 = vand.u32 2147483647, %v1955
  %vm1981 = vcmp.eq.f32.partialorder %v1980, 8.507059e+37
  %v1982 = vand.u32 %v1955, 2147483648
  %v1983 = vor.u32 1.1754944e-38, %v1982
  %v1984 = vsel %vm1981, %v1983, %v1979
  %v1985 = vmul.f32 1.0, %v1984
  %v1986 = vtanh.pop %v1946
  %v1987 = vmul.f32 %v1970, %v1880
  %v1988 = vmul.f32 %v1970, %v1986
  %1990 = vrot.lane.b32.xlu0 %v1988, 64
  %v1991 = vpop.permute.xlu0 %1990
  %v1993 = vadd.f32 %v1987, %v1991
  %v1994 = vtanh.pop %v1993
  %v1995 = vmul.f32 %v1985, %v1994
  %v1996 = vmax.f32 %v1883, %v1995
  %v1997 = vmin.f32 %v1884, %v1995
  %v2000 = vrot.slane %v1885, 6
  %v2001 = vrot.slane %v1886, 6
  %v2004 = vsel %vm159, %v1887, %v2000
  %v2005 = vsel %vm160, %v1888, %v2001
  %2007 = vrot.lane.b32.xlu0 %v1995, 64
  %v2008 = vpop.permute.xlu0 %2007
  %v2009 = vsel %vm80, %v2008, 0
  %2011 = vmatpush.msra.mxu0 0.0
  %2012 = vmatpush.msra.mxu0 0.0
  %2013 = vmatpush.msra.mxu0 0.0
  %2014 = vmatpush.msra.mxu0 0.0
  %2015 = vmatpush.msra.mxu0 0.0
  %2016 = vmatpush.msra.mxu0 0.0
  %2017 = vmatpush.msra.mxu0 0.0
  %2018 = vmatpush.msra.mxu0 0.0
  %2019 = vmatpush.msra.mxu0 %v207
  %2020 = vmatpush.msra.mxu0 %v205
  %2021 = vmatpush.msra.mxu0 %v203
  %2022 = vmatpush.msra.mxu0 %v201
  %2023 = vmatpush.msra.mxu0 %v199
  %2024 = vmatpush.msra.mxu0 %v197
  %2025 = vmatpush.msra.mxu0 %v195
  %2026 = vmatpush.msra.mxu0 %v193
  %2027 = vmatmul.f32.gmra.mxu0 %v2009
  %v2028 = vpop.f32.mrf.mxu0
  %v2029 = vadd.f32 %v2004, %v2028
  %2030 = vdwg.mxu0
  %2031 = vmatpush.msra.mxu0 0.0
  %2032 = vmatpush.msra.mxu0 0.0
  %2033 = vmatpush.msra.mxu0 0.0
  %2034 = vmatpush.msra.mxu0 0.0
  %2035 = vmatpush.msra.mxu0 0.0
  %2036 = vmatpush.msra.mxu0 0.0
  %2037 = vmatpush.msra.mxu0 0.0
  %2038 = vmatpush.msra.mxu0 0.0
  %2039 = vmatpush.msra.mxu0 %v208
  %2040 = vmatpush.msra.mxu0 %v206
  %2041 = vmatpush.msra.mxu0 %v204
  %2042 = vmatpush.msra.mxu0 %v202
  %2043 = vmatpush.msra.mxu0 %v200
  %2044 = vmatpush.msra.mxu0 %v198
  %2045 = vmatpush.msra.mxu0 %v196
  %2046 = vmatpush.msra.mxu0 %v194
  %2047 = vmatmul.f32.gmra.mxu0 %v2009
  %v2048 = vpop.f32.mrf.mxu0
  %v2049 = vadd.f32 %v2005, %v2048
  %2050 = vdwg.mxu0
  %v2051 = vxor.u32 %v2029, 2147483648
  %v2052 = vxor.u32 %v2049, 2147483648
  %v2053 = vmul.f32 %v2051, 1.442695
  %v2054 = vpow.pop %v2053
  %v2055 = vmul.f32 %v2052, 1.442695
  %v2056 = vpow.pop %v2055
  %v2057 = vadd.f32 %v2054, 1.0
  %v2058 = vadd.f32 %v2056, 1.0
  %v2059 = vrcp.pop %v2057
  %v2060 = vmul.f32 %v2057, %v2059
  %v2061 = vsub.f32 1.0, %v2060
  %v2062 = vmul.f32 %v2059, %v2061
  %v2063 = vadd.f32 %v2059, %v2062
  %vm2064 = vweird.f32 %v2057
  %vm2065 = vweird.f32 %v2059
  %vm2066 = vmor %vm2064, %vm2065
  %v2067 = vsel %vm2066, %v2059, %v2063
  %v2068 = vand.u32 2147483647, %v2057
  %vm2069 = vcmp.eq.f32.partialorder %v2068, 8.507059e+37
  %v2070 = vand.u32 %v2057, 2147483648
  %v2071 = vor.u32 1.1754944e-38, %v2070
  %v2072 = vsel %vm2069, %v2071, %v2067
  %v2073 = vmul.f32 1.0, %v2072
  %v2074 = vrcp.pop %v2058
  %v2075 = vmul.f32 %v2058, %v2074
  %v2076 = vsub.f32 1.0, %v2075
  %v2077 = vmul.f32 %v2074, %v2076
  %v2078 = vadd.f32 %v2074, %v2077
  %vm2079 = vweird.f32 %v2058
  %vm2080 = vweird.f32 %v2074
  %vm2081 = vmor %vm2079, %vm2080
  %v2082 = vsel %vm2081, %v2074, %v2078
  %v2083 = vand.u32 2147483647, %v2058
  %vm2084 = vcmp.eq.f32.partialorder %v2083, 8.507059e+37
  %v2085 = vand.u32 %v2058, 2147483648
  %v2086 = vor.u32 1.1754944e-38, %v2085
  %v2087 = vsel %vm2084, %v2086, %v2082
  %v2088 = vmul.f32 1.0, %v2087
  %v2089 = vtanh.pop %v2049
  %v2090 = vmul.f32 %v2073, %v1993
  %v2091 = vmul.f32 %v2073, %v2089
  %2093 = vrot.lane.b32.xlu0 %v2091, 64
  %v2094 = vpop.permute.xlu0 %2093
  %v2096 = vadd.f32 %v2090, %v2094
  %v2097 = vtanh.pop %v2096
  %v2098 = vmul.f32 %v2088, %v2097
  %v2099 = vmax.f32 %v1996, %v2098
  %v2100 = vmin.f32 %v1997, %v2098
  %v2103 = vrot.slane %v1772, 2
  %v2104 = vrot.slane %v1773, 2
  %v2107 = vsel %vm159, %v1774, %v2103
  %v2108 = vsel %vm160, %v1775, %v2104
  %2110 = vrot.lane.b32.xlu0 %v2098, 64
  %v2111 = vpop.permute.xlu0 %2110
  %v2114 = vrot.slane %v2107, 2
  %v2115 = vrot.slane %v2108, 2
  %v2118 = vsel %vm80, %v2111, 0
  %2120 = vmatpush.msra.mxu0 0.0
  %2121 = vmatpush.msra.mxu0 0.0
  %2122 = vmatpush.msra.mxu0 0.0
  %2123 = vmatpush.msra.mxu0 0.0
  %2124 = vmatpush.msra.mxu0 0.0
  %2125 = vmatpush.msra.mxu0 0.0
  %2126 = vmatpush.msra.mxu0 0.0
  %2127 = vmatpush.msra.mxu0 0.0
  %2128 = vmatpush.msra.mxu0 %v207
  %2129 = vmatpush.msra.mxu0 %v205
  %2130 = vmatpush.msra.mxu0 %v203
  %2131 = vmatpush.msra.mxu0 %v201
  %2132 = vmatpush.msra.mxu0 %v199
  %2133 = vmatpush.msra.mxu0 %v197
  %2134 = vmatpush.msra.mxu0 %v195
  %2135 = vmatpush.msra.mxu0 %v193
  %2136 = vmatmul.f32.gmra.mxu0 %v2118
  %v2137 = vpop.f32.mrf.mxu0
  %v2138 = vadd.f32 %v2114, %v2137
  %2139 = vdwg.mxu0
  %2140 = vmatpush.msra.mxu0 0.0
  %2141 = vmatpush.msra.mxu0 0.0
  %2142 = vmatpush.msra.mxu0 0.0
  %2143 = vmatpush.msra.mxu0 0.0
  %2144 = vmatpush.msra.mxu0 0.0
  %2145 = vmatpush.msra.mxu0 0.0
  %2146 = vmatpush.msra.mxu0 0.0
  %2147 = vmatpush.msra.mxu0 0.0
  %2148 = vmatpush.msra.mxu0 %v208
  %2149 = vmatpush.msra.mxu0 %v206
  %2150 = vmatpush.msra.mxu0 %v204
  %2151 = vmatpush.msra.mxu0 %v202
  %2152 = vmatpush.msra.mxu0 %v200
  %2153 = vmatpush.msra.mxu0 %v198
  %2154 = vmatpush.msra.mxu0 %v196
  %2155 = vmatpush.msra.mxu0 %v194
  %2156 = vmatmul.f32.gmra.mxu0 %v2118
  %v2157 = vpop.f32.mrf.mxu0
  %v2158 = vadd.f32 %v2115, %v2157
  %2159 = vdwg.mxu0
  %v2160 = vxor.u32 %v2138, 2147483648
  %v2161 = vxor.u32 %v2158, 2147483648
  %v2162 = vmul.f32 %v2160, 1.442695
  %v2163 = vpow.pop %v2162
  %v2164 = vmul.f32 %v2161, 1.442695
  %v2165 = vpow.pop %v2164
  %v2166 = vadd.f32 %v2163, 1.0
  %v2167 = vadd.f32 %v2165, 1.0
  %v2168 = vrcp.pop %v2166
  %v2169 = vmul.f32 %v2166, %v2168
  %v2170 = vsub.f32 1.0, %v2169
  %v2171 = vmul.f32 %v2168, %v2170
  %v2172 = vadd.f32 %v2168, %v2171
  %vm2173 = vweird.f32 %v2166
  %vm2174 = vweird.f32 %v2168
  %vm2175 = vmor %vm2173, %vm2174
  %v2176 = vsel %vm2175, %v2168, %v2172
  %v2177 = vand.u32 2147483647, %v2166
  %vm2178 = vcmp.eq.f32.partialorder %v2177, 8.507059e+37
  %v2179 = vand.u32 %v2166, 2147483648
  %v2180 = vor.u32 1.1754944e-38, %v2179
  %v2181 = vsel %vm2178, %v2180, %v2176
  %v2182 = vmul.f32 1.0, %v2181
  %v2183 = vrcp.pop %v2167
  %v2184 = vmul.f32 %v2167, %v2183
  %v2185 = vsub.f32 1.0, %v2184
  %v2186 = vmul.f32 %v2183, %v2185
  %v2187 = vadd.f32 %v2183, %v2186
  %vm2188 = vweird.f32 %v2167
  %vm2189 = vweird.f32 %v2183
  %vm2190 = vmor %vm2188, %vm2189
  %v2191 = vsel %vm2190, %v2183, %v2187
  %v2192 = vand.u32 2147483647, %v2167
  %vm2193 = vcmp.eq.f32.partialorder %v2192, 8.507059e+37
  %v2194 = vand.u32 %v2167, 2147483648
  %v2195 = vor.u32 1.1754944e-38, %v2194
  %v2196 = vsel %vm2193, %v2195, %v2191
  %v2197 = vmul.f32 1.0, %v2196
  %v2198 = vtanh.pop %v2158
  %v2199 = vmul.f32 %v2182, %v2096
  %v2200 = vmul.f32 %v2182, %v2198
  %2202 = vrot.lane.b32.xlu0 %v2200, 64
  %v2203 = vpop.permute.xlu0 %2202
  %v2205 = vadd.f32 %v2199, %v2203
  %v2206 = vtanh.pop %v2205
  %v2207 = vmul.f32 %v2197, %v2206
  %v2208 = vmax.f32 %v2099, %v2207
  %v2209 = vmin.f32 %v2100, %v2207
  %v2212 = vrot.slane %v1659, 6
  %v2213 = vrot.slane %v1660, 6
  %v2216 = vsel %vm159, %v1661, %v2212
  %v2217 = vsel %vm160, %v1662, %v2213
  %2219 = vrot.lane.b32.xlu0 %v2207, 64
  %v2220 = vpop.permute.xlu0 %2219
  %v2223 = vrot.slane %v2216, 4
  %v2224 = vrot.slane %v2217, 4
  %v2227 = vsel %vm80, %v2220, 0
  %2229 = vmatpush.msra.mxu0 0.0
  %2230 = vmatpush.msra.mxu0 0.0
  %2231 = vmatpush.msra.mxu0 0.0
  %2232 = vmatpush.msra.mxu0 0.0
  %2233 = vmatpush.msra.mxu0 0.0
  %2234 = vmatpush.msra.mxu0 0.0
  %2235 = vmatpush.msra.mxu0 0.0
  %2236 = vmatpush.msra.mxu0 0.0
  %2237 = vmatpush.msra.mxu0 %v207
  %2238 = vmatpush.msra.mxu0 %v205
  %2239 = vmatpush.msra.mxu0 %v203
  %2240 = vmatpush.msra.mxu0 %v201
  %2241 = vmatpush.msra.mxu0 %v199
  %2242 = vmatpush.msra.mxu0 %v197
  %2243 = vmatpush.msra.mxu0 %v195
  %2244 = vmatpush.msra.mxu0 %v193
  %2245 = vmatmul.f32.gmra.mxu0 %v2227
  %v2246 = vpop.f32.mrf.mxu0
  %v2247 = vadd.f32 %v2223, %v2246
  %2248 = vdwg.mxu0
  %2249 = vmatpush.msra.mxu0 0.0
  %2250 = vmatpush.msra.mxu0 0.0
  %2251 = vmatpush.msra.mxu0 0.0
  %2252 = vmatpush.msra.mxu0 0.0
  %2253 = vmatpush.msra.mxu0 0.0
  %2254 = vmatpush.msra.mxu0 0.0
  %2255 = vmatpush.msra.mxu0 0.0
  %2256 = vmatpush.msra.mxu0 0.0
  %2257 = vmatpush.msra.mxu0 %v208
  %2258 = vmatpush.msra.mxu0 %v206
  %2259 = vmatpush.msra.mxu0 %v204
  %2260 = vmatpush.msra.mxu0 %v202
  %2261 = vmatpush.msra.mxu0 %v200
  %2262 = vmatpush.msra.mxu0 %v198
  %2263 = vmatpush.msra.mxu0 %v196
  %2264 = vmatpush.msra.mxu0 %v194
  %2265 = vmatmul.f32.gmra.mxu0 %v2227
  %v2266 = vpop.f32.mrf.mxu0
  %v2267 = vadd.f32 %v2224, %v2266
  %2268 = vdwg.mxu0
  %v2269 = vxor.u32 %v2247, 2147483648
  %v2270 = vxor.u32 %v2267, 2147483648
  %v2271 = vmul.f32 %v2269, 1.442695
  %v2272 = vpow.pop %v2271
  %v2273 = vmul.f32 %v2270, 1.442695
  %v2274 = vpow.pop %v2273
  %v2275 = vadd.f32 %v2272, 1.0
  %v2276 = vadd.f32 %v2274, 1.0
  %v2277 = vrcp.pop %v2275
  %v2278 = vmul.f32 %v2275, %v2277
  %v2279 = vsub.f32 1.0, %v2278
  %v2280 = vmul.f32 %v2277, %v2279
  %v2281 = vadd.f32 %v2277, %v2280
  %vm2282 = vweird.f32 %v2275
  %vm2283 = vweird.f32 %v2277
  %vm2284 = vmor %vm2282, %vm2283
  %v2285 = vsel %vm2284, %v2277, %v2281
  %v2286 = vand.u32 2147483647, %v2275
  %vm2287 = vcmp.eq.f32.partialorder %v2286, 8.507059e+37
  %v2288 = vand.u32 %v2275, 2147483648
  %v2289 = vor.u32 1.1754944e-38, %v2288
  %v2290 = vsel %vm2287, %v2289, %v2285
  %v2291 = vmul.f32 1.0, %v2290
  %v2292 = vrcp.pop %v2276
  %v2293 = vmul.f32 %v2276, %v2292
  %v2294 = vsub.f32 1.0, %v2293
  %v2295 = vmul.f32 %v2292, %v2294
  %v2296 = vadd.f32 %v2292, %v2295
  %vm2297 = vweird.f32 %v2276
  %vm2298 = vweird.f32 %v2292
  %vm2299 = vmor %vm2297, %vm2298
  %v2300 = vsel %vm2299, %v2292, %v2296
  %v2301 = vand.u32 2147483647, %v2276
  %vm2302 = vcmp.eq.f32.partialorder %v2301, 8.507059e+37
  %v2303 = vand.u32 %v2276, 2147483648
  %v2304 = vor.u32 1.1754944e-38, %v2303
  %v2305 = vsel %vm2302, %v2304, %v2300
  %v2306 = vmul.f32 1.0, %v2305
  %v2307 = vtanh.pop %v2267
  %v2308 = vmul.f32 %v2291, %v2205
  %v2309 = vmul.f32 %v2291, %v2307
  %2311 = vrot.lane.b32.xlu0 %v2309, 64
  %v2312 = vpop.permute.xlu0 %2311
  %v2314 = vadd.f32 %v2308, %v2312
  %v2315 = vtanh.pop %v2314
  %v2316 = vmul.f32 %v2306, %v2315
  %v2317 = vmax.f32 %v2208, %v2316
  %v2318 = vmin.f32 %v2209, %v2316
  %v2321 = vrot.slane %v1559, 2
  %v2322 = vrot.slane %v1560, 2
  %v2325 = vsel %vm159, %v1561, %v2321
  %v2326 = vsel %vm160, %v1562, %v2322
  %2328 = vrot.lane.b32.xlu0 %v2316, 64
  %v2329 = vpop.permute.xlu0 %2328
  %v2332 = vrot.slane %v2325, 6
  %v2333 = vrot.slane %v2326, 6
  %v2336 = vsel %vm80, %v2329, 0
  %2338 = vmatpush.msra.mxu0 0.0
  %2339 = vmatpush.msra.mxu0 0.0
  %2340 = vmatpush.msra.mxu0 0.0
  %2341 = vmatpush.msra.mxu0 0.0
  %2342 = vmatpush.msra.mxu0 0.0
  %2343 = vmatpush.msra.mxu0 0.0
  %2344 = vmatpush.msra.mxu0 0.0
  %2345 = vmatpush.msra.mxu0 0.0
  %2346 = vmatpush.msra.mxu0 %v207
  %2347 = vmatpush.msra.mxu0 %v205
  %2348 = vmatpush.msra.mxu0 %v203
  %2349 = vmatpush.msra.mxu0 %v201
  %2350 = vmatpush.msra.mxu0 %v199
  %2351 = vmatpush.msra.mxu0 %v197
  %2352 = vmatpush.msra.mxu0 %v195
  %2353 = vmatpush.msra.mxu0 %v193
  %2354 = vmatmul.f32.gmra.mxu0 %v2336
  %v2355 = vpop.f32.mrf.mxu0
  %v2356 = vadd.f32 %v2332, %v2355
  %2357 = vdwg.mxu0
  %2358 = vmatpush.msra.mxu0 0.0
  %2359 = vmatpush.msra.mxu0 0.0
  %2360 = vmatpush.msra.mxu0 0.0
  %2361 = vmatpush.msra.mxu0 0.0
  %2362 = vmatpush.msra.mxu0 0.0
  %2363 = vmatpush.msra.mxu0 0.0
  %2364 = vmatpush.msra.mxu0 0.0
  %2365 = vmatpush.msra.mxu0 0.0
  %2366 = vmatpush.msra.mxu0 %v208
  %2367 = vmatpush.msra.mxu0 %v206
  %2368 = vmatpush.msra.mxu0 %v204
  %2369 = vmatpush.msra.mxu0 %v202
  %2370 = vmatpush.msra.mxu0 %v200
  %2371 = vmatpush.msra.mxu0 %v198
  %2372 = vmatpush.msra.mxu0 %v196
  %2373 = vmatpush.msra.mxu0 %v194
  %2374 = vmatmul.f32.gmra.mxu0 %v2336
  %v2375 = vpop.f32.mrf.mxu0
  %v2376 = vadd.f32 %v2333, %v2375
  %2377 = vdwg.mxu0
  %v2378 = vxor.u32 %v2356, 2147483648
  %v2379 = vxor.u32 %v2376, 2147483648
  %v2380 = vmul.f32 %v2378, 1.442695
  %v2381 = vpow.pop %v2380
  %v2382 = vmul.f32 %v2379, 1.442695
  %v2383 = vpow.pop %v2382
  %v2384 = vadd.f32 %v2381, 1.0
  %v2385 = vadd.f32 %v2383, 1.0
  %v2386 = vrcp.pop %v2384
  %v2387 = vmul.f32 %v2384, %v2386
  %v2388 = vsub.f32 1.0, %v2387
  %v2389 = vmul.f32 %v2386, %v2388
  %v2390 = vadd.f32 %v2386, %v2389
  %vm2391 = vweird.f32 %v2384
  %vm2392 = vweird.f32 %v2386
  %vm2393 = vmor %vm2391, %vm2392
  %v2394 = vsel %vm2393, %v2386, %v2390
  %v2395 = vand.u32 2147483647, %v2384
  %vm2396 = vcmp.eq.f32.partialorder %v2395, 8.507059e+37
  %v2397 = vand.u32 %v2384, 2147483648
  %v2398 = vor.u32 1.1754944e-38, %v2397
  %v2399 = vsel %vm2396, %v2398, %v2394
  %v2400 = vmul.f32 1.0, %v2399
  %v2401 = vrcp.pop %v2385
  %v2402 = vmul.f32 %v2385, %v2401
  %v2403 = vsub.f32 1.0, %v2402
  %v2404 = vmul.f32 %v2401, %v2403
  %v2405 = vadd.f32 %v2401, %v2404
  %vm2406 = vweird.f32 %v2385
  %vm2407 = vweird.f32 %v2401
  %vm2408 = vmor %vm2406, %vm2407
  %v2409 = vsel %vm2408, %v2401, %v2405
  %v2410 = vand.u32 2147483647, %v2385
  %vm2411 = vcmp.eq.f32.partialorder %v2410, 8.507059e+37
  %v2412 = vand.u32 %v2385, 2147483648
  %v2413 = vor.u32 1.1754944e-38, %v2412
  %v2414 = vsel %vm2411, %v2413, %v2409
  %v2415 = vmul.f32 1.0, %v2414
  %v2416 = vtanh.pop %v2376
  %v2417 = vmul.f32 %v2400, %v2314
  %v2418 = vmul.f32 %v2400, %v2416
  %2420 = vrot.lane.b32.xlu0 %v2418, 64
  %v2421 = vpop.permute.xlu0 %2420
  %v2423 = vadd.f32 %v2417, %v2421
  %v2424 = vtanh.pop %v2423
  %v2425 = vmul.f32 %v2415, %v2424
  %v2426 = vmax.f32 %v2317, %v2425
  %v2427 = vmin.f32 %v2318, %v2425
  %vm2428 = vcmp.ge.f32.partialorder %v32, 0.0
  %2430 = vrot.lane.b32.xlu0 %v2426, 64
  %v2431 = vpop.permute.xlu0 %2430
  %v2433 = vmul.f32 %v32, %v2431
  %v2434 = vadd.f32 %v2433, %v33
  %2436 = vrot.lane.b32.xlu0 %v2427, 64
  %v2437 = vpop.permute.xlu0 %2436
  %v2439 = vmul.f32 %v32, %v2437
  %v2440 = vadd.f32 %v2439, %v33
  %v2441 = vsel %vm2428, 1, 0
  %vm2442 = vcmp.eq.s32.totalorder %v2441, 1
  %v2443 = vsel %vm2442, %v2434, %v2440
  %v2444 = vld [vmem:[%s6] sm:$0xff]
  %v2445 = vld [vmem:[%s6 + $0x8] sm:$0xff]
  %v2446 = vld [vmem:[%s6 + $0x10] sm:$0xff]
  %v2447 = vld [vmem:[%s6 + $0x18] sm:$0xff]
  %v2448 = vld [vmem:[%s6 + $0x20] sm:$0xff]
  %v2449 = vld [vmem:[%s6 + $0x28] sm:$0xff]
  %v2450 = vld [vmem:[%s6 + $0x30] sm:$0xff]
  %v2451 = vld [vmem:[%s6 + $0x38] sm:$0xff]
  %v2452 = vld [vmem:[%s6 + $0x40] sm:$0xff]
  %v2453 = vld [vmem:[%s6 + $0x48] sm:$0xff]
  %v2454 = vld [vmem:[%s6 + $0x50] sm:$0xff]
  %v2455 = vld [vmem:[%s6 + $0x58] sm:$0xff]
  %v2456 = vld [vmem:[%s6 + $0x60] sm:$0xff]
  %v2457 = vld [vmem:[%s6 + $0x68] sm:$0xff]
  %v2458 = vld [vmem:[%s6 + $0x70] sm:$0xff]
  %v2459 = vld [vmem:[%s6 + $0x78] sm:$0xff]
  %v2460 = vld [vmem:[%s6 + $0x80] sm:$0xff]
  %v2461 = vld [vmem:[%s6 + $0x88] sm:$0xff]
  %v2462 = vld [vmem:[%s6 + $0x90] sm:$0xff]
  %v2463 = vld [vmem:[%s6 + $0x98] sm:$0xff]
  %v2464 = vld [vmem:[%s6 + $0xa0] sm:$0xff]
  %v2465 = vld [vmem:[%s6 + $0xa8] sm:$0xff]
  %v2466 = vld [vmem:[%s6 + $0xb0] sm:$0xff]
  %v2467 = vld [vmem:[%s6 + $0xb8] sm:$0xff]
  %v2468 = vld [vmem:[%s6 + $0xc0] sm:$0xff]
  %v2469 = vld [vmem:[%s6 + $0xc8] sm:$0xff]
  %v2470 = vld [vmem:[%s6 + $0xd0] sm:$0xff]
  %v2471 = vld [vmem:[%s6 + $0xd8] sm:$0xff]
  %v2472 = vld [vmem:[%s6 + $0xe0] sm:$0xff]
  %v2473 = vld [vmem:[%s6 + $0xe8] sm:$0xff]
  %v2474 = vld [vmem:[%s6 + $0xf0] sm:$0xff]
  %v2475 = vld [vmem:[%s6 + $0xf8] sm:$0xff]
  %v2476 = vld [vmem:[%s6 + $0x100] sm:$0xff]
  %v2477 = vld [vmem:[%s6 + $0x108] sm:$0xff]
  %v2478 = vld [vmem:[%s6 + $0x110] sm:$0xff]
  %v2479 = vld [vmem:[%s6 + $0x118] sm:$0xff]
  %v2480 = vld [vmem:[%s6 + $0x120] sm:$0xff]
  %v2481 = vld [vmem:[%s6 + $0x128] sm:$0xff]
  %v2482 = vld [vmem:[%s6 + $0x130] sm:$0xff]
  %v2483 = vld [vmem:[%s6 + $0x138] sm:$0xff]
  %v2484 = vld [vmem:[%s6 + $0x140] sm:$0xff]
  %v2485 = vld [vmem:[%s6 + $0x148] sm:$0xff]
  %v2486 = vld [vmem:[%s6 + $0x150] sm:$0xff]
  %v2487 = vld [vmem:[%s6 + $0x158] sm:$0xff]
  %v2488 = vld [vmem:[%s6 + $0x160] sm:$0xff]
  %v2489 = vld [vmem:[%s6 + $0x168] sm:$0xff]
  %v2490 = vld [vmem:[%s6 + $0x170] sm:$0xff]
  %v2491 = vld [vmem:[%s6 + $0x178] sm:$0xff]
  %v2492 = vld [vmem:[%s6 + $0x180] sm:$0xff]
  %v2493 = vld [vmem:[%s6 + $0x188] sm:$0xff]
  %v2494 = vld [vmem:[%s6 + $0x190] sm:$0xff]
  %v2495 = vld [vmem:[%s6 + $0x198] sm:$0xff]
  %v2496 = vld [vmem:[%s6 + $0x1a0] sm:$0xff]
  %v2497 = vld [vmem:[%s6 + $0x1a8] sm:$0xff]
  %v2498 = vld [vmem:[%s6 + $0x1b0] sm:$0xff]
  %v2499 = vld [vmem:[%s6 + $0x1b8] sm:$0xff]
  %v2501 = vsel %vm80, %v2443, 0
  %2503 = vmatpush.msra.mxu0 0.0
  %2504 = vmatpush.msra.mxu0 0.0
  %2505 = vmatpush.msra.mxu0 0.0
  %2506 = vmatpush.msra.mxu0 0.0
  %2507 = vmatpush.msra.mxu0 0.0
  %2508 = vmatpush.msra.mxu0 0.0
  %2509 = vmatpush.msra.mxu0 0.0
  %2510 = vmatpush.msra.mxu0 0.0
  %2511 = vmatpush.msra.mxu0 %v2451
  %2512 = vmatpush.msra.mxu0 %v2450
  %2513 = vmatpush.msra.mxu0 %v2449
  %2514 = vmatpush.msra.mxu0 %v2448
  %2515 = vmatpush.msra.mxu0 %v2447
  %2516 = vmatpush.msra.mxu0 %v2446
  %2517 = vmatpush.msra.mxu0 %v2445
  %2518 = vmatpush.msra.mxu0 %v2444
  %2519 = vmatmul.f32.gmra.mxu0 %v2501
  %v2520 = vpop.f32.mrf.mxu0
  %v2521 = vadd.f32 %v34, %v2520
  %2522 = vdwg.mxu0
  %v2523 = vmax.f32 %v2521, 0.0
  %v2524 = vld [vmem:[%s2] sm:$0x3]
  %2526 = vst [vmem:[#allocation1] ss:$4 sm:$0xff] %v2524
  %v2527 = vld.sshfl [vmem:[#allocation1] sm:$0xff pattern:$0x73625140]
  %2528 = vrot.lane.b32.xlu0 %v2527, 64
  %v2529 = vpop.permute.xlu0 %2528
  %2531 = vrot.lane.b32.xlu0 %v34, 64
  %v2532 = vpop.permute.xlu0 %2531
  %v2534 = vsel %vm80, %v2529, 0
  %2536 = vmatpush.msra.mxu0 0.0
  %2537 = vmatpush.msra.mxu0 0.0
  %2538 = vmatpush.msra.mxu0 0.0
  %2539 = vmatpush.msra.mxu0 0.0
  %2540 = vmatpush.msra.mxu0 0.0
  %2541 = vmatpush.msra.mxu0 0.0
  %2542 = vmatpush.msra.mxu0 0.0
  %2543 = vmatpush.msra.mxu0 0.0
  %2544 = vmatpush.msra.mxu0 %v2459
  %2545 = vmatpush.msra.mxu0 %v2458
  %2546 = vmatpush.msra.mxu0 %v2457
  %2547 = vmatpush.msra.mxu0 %v2456
  %2548 = vmatpush.msra.mxu0 %v2455
  %2549 = vmatpush.msra.mxu0 %v2454
  %2550 = vmatpush.msra.mxu0 %v2453
  %2551 = vmatpush.msra.mxu0 %v2452
  %2552 = vmatmul.f32.gmra.mxu0 %v2534
  %v2553 = vpop.f32.mrf.mxu0
  %v2554 = vadd.f32 %v2532, %v2553
  %2555 = vdwg.mxu0
  %v2556 = vmax.f32 %v2554, 0.0
  %v2557 = vld [vmem:[%s2 + $0x2] sm:$0xff]
  %v2558 = vld [vmem:[%s2 + $0xa] sm:$0xf]
  %2561 = vst [vmem:[#allocation1] ss:$4 sm:$0xff] %v2557
  %s2562 = scalar_lea.vmem [#allocation1], 32
  %2563 = vst [vmem:[%s2562] ss:$4 sm:$0xff] %v2558
  %v2564 = vld.sshfl [vmem:[#allocation1] sm:$0xff pattern:$0x73625140]
  %v2565 = vld.sshfl [vmem:[#allocation1 + $0x8] sm:$0xff pattern:$0x73625140]
  %v2566 = vld.sshfl [vmem:[#allocation1 + $0x10] sm:$0xff pattern:$0x73625140]
  %v2567 = vld.sshfl [vmem:[#allocation1 + $0x18] sm:$0xff pattern:$0x73625140]
  %v2568 = vld.sshfl [vmem:[#allocation1 + $0x20] sm:$0xff pattern:$0x73625140]
  %v2569 = vld.sshfl [vmem:[#allocation1 + $0x28] sm:$0xff pattern:$0x73625140]
  %v2576 = vpack.c.bf16 %v2564, %v2564
  %v2577 = vpack.c.bf16 %v2565, %v2565
  %v2578 = vpack.c.bf16 %v2566, %v2566
  %v2579 = vpack.c.bf16 %v2567, %v2567
  %v2580 = vpack.c.bf16 %v2568, %v2568
  %v2581 = vpack.c.bf16 %v2569, %v2569
  %v2582 = vld [vmem:[%s5] sm:$0xff]
  %v2583 = vld [vmem:[%s5 + $0x8] sm:$0xff]
  %v2584 = vld [vmem:[%s5 + $0x10] sm:$0xff]
  %v2585 = vld [vmem:[%s5 + $0x18] sm:$0xff]
  %v2586 = vld [vmem:[%s5 + $0x20] sm:$0xff]
  %v2587 = vld [vmem:[%s5 + $0x28] sm:$0xff]
  %v2588 = vld [vmem:[%s5 + $0x30] sm:$0xff]
  %v2589 = vld [vmem:[%s5 + $0x38] sm:$0xff]
  %v2590 = vld [vmem:[%s5 + $0x40] sm:$0xff]
  %v2591 = vld [vmem:[%s5 + $0x48] sm:$0xff]
  %v2592 = vld [vmem:[%s5 + $0x50] sm:$0xff]
  %v2593 = vld [vmem:[%s5 + $0x58] sm:$0xff]
  %v2594 = vld [vmem:[%s5 + $0x60] sm:$0xff]
  %v2595 = vld [vmem:[%s5 + $0x68] sm:$0xff]
  %v2596 = vld [vmem:[%s5 + $0x70] sm:$0xff]
  %v2597 = vld [vmem:[%s5 + $0x78] sm:$0xff]
  %v2598 = vld [vmem:[%s5 + $0x80] sm:$0xff]
  %v2599 = vld [vmem:[%s5 + $0x88] sm:$0xff]
  %v2600 = vld [vmem:[%s5 + $0x90] sm:$0xff]
  %v2601 = vld [vmem:[%s5 + $0x98] sm:$0xff]
  %v2602 = vld [vmem:[%s5 + $0xa0] sm:$0xff]
  %v2603 = vld [vmem:[%s5 + $0xa8] sm:$0xff]
  %v2604 = vld [vmem:[%s5 + $0xb0] sm:$0xff]
  %v2605 = vld [vmem:[%s5 + $0xb8] sm:$0xff]
  %v2606 = vld [vmem:[%s5 + $0xc0] sm:$0xff]
  %v2607 = vld [vmem:[%s5 + $0xc8] sm:$0xff]
  %v2608 = vld [vmem:[%s5 + $0xd0] sm:$0xff]
  %v2609 = vld [vmem:[%s5 + $0xd8] sm:$0xff]
  %v2610 = vld [vmem:[%s5 + $0xe0] sm:$0xff]
  %v2611 = vld [vmem:[%s5 + $0xe8] sm:$0xff]
  %v2612 = vld [vmem:[%s5 + $0xf0] sm:$0xff]
  %v2613 = vld [vmem:[%s5 + $0xf8] sm:$0xff]
  %v2614 = vld [vmem:[%s5 + $0x100] sm:$0xff]
  %v2615 = vld [vmem:[%s5 + $0x108] sm:$0xff]
  %v2616 = vld [vmem:[%s5 + $0x110] sm:$0xff]
  %v2617 = vld [vmem:[%s5 + $0x118] sm:$0xff]
  %v2618 = vld [vmem:[%s5 + $0x120] sm:$0xff]
  %v2619 = vld [vmem:[%s5 + $0x128] sm:$0xff]
  %v2620 = vld [vmem:[%s5 + $0x130] sm:$0xff]
  %v2621 = vld [vmem:[%s5 + $0x138] sm:$0xff]
  %v2622 = vld [vmem:[%s5 + $0x140] sm:$0xff]
  %v2623 = vld [vmem:[%s5 + $0x148] sm:$0xff]
  %v2624 = vld [vmem:[%s5 + $0x150] sm:$0xff]
  %v2625 = vld [vmem:[%s5 + $0x158] sm:$0xff]
  %v2626 = vld [vmem:[%s5 + $0x160] sm:$0xff]
  %v2627 = vld [vmem:[%s5 + $0x168] sm:$0xff]
  %v2628 = vld [vmem:[%s5 + $0x170] sm:$0xff]
  %v2629 = vld [vmem:[%s5 + $0x178] sm:$0xff]
  %v2630 = vld [vmem:[%s5 + $0x180] sm:$0xff]
  %v2631 = vld [vmem:[%s5 + $0x188] sm:$0xff]
  %v2632 = vld [vmem:[%s5 + $0x190] sm:$0xff]
  %v2633 = vld [vmem:[%s5 + $0x198] sm:$0xff]
  %v2634 = vld [vmem:[%s5 + $0x1a0] sm:$0xff]
  %v2635 = vld [vmem:[%s5 + $0x1a8] sm:$0xff]
  %v2636 = vld [vmem:[%s5 + $0x1b0] sm:$0xff]
  %v2637 = vld [vmem:[%s5 + $0x1b8] sm:$0xff]
  %v2638 = vld [vmem:[%s5 + $0x1c0] sm:$0xff]
  %v2639 = vld [vmem:[%s5 + $0x1c8] sm:$0xff]
  %v2640 = vld [vmem:[%s5 + $0x1d0] sm:$0xff]
  %v2641 = vld [vmem:[%s5 + $0x1d8] sm:$0xff]
  %v2642 = vld [vmem:[%s5 + $0x1e0] sm:$0xff]
  %v2643 = vld [vmem:[%s5 + $0x1e8] sm:$0xff]
  %v2644 = vld [vmem:[%s5 + $0x1f0] sm:$0xff]
  %v2645 = vld [vmem:[%s5 + $0x1f8] sm:$0xff]
  %v2646 = vld [vmem:[%s5 + $0x200] sm:$0xff]
  %v2647 = vld [vmem:[%s5 + $0x208] sm:$0xff]
  %v2648 = vld [vmem:[%s5 + $0x210] sm:$0xff]
  %v2649 = vld [vmem:[%s5 + $0x218] sm:$0xff]
  %v2650 = vld [vmem:[%s5 + $0x220] sm:$0xff]
  %v2651 = vld [vmem:[%s5 + $0x228] sm:$0xff]
  %v2652 = vld [vmem:[%s5 + $0x230] sm:$0xff]
  %v2653 = vld [vmem:[%s5 + $0x238] sm:$0xff]
  %v2654 = vld [vmem:[%s5 + $0x240] sm:$0xff]
  %v2655 = vld [vmem:[%s5 + $0x248] sm:$0xff]
  %v2656 = vld [vmem:[%s5 + $0x250] sm:$0xff]
  %v2657 = vld [vmem:[%s5 + $0x258] sm:$0xff]
  %v2658 = vld [vmem:[%s5 + $0x260] sm:$0xff]
  %v2659 = vld [vmem:[%s5 + $0x268] sm:$0xff]
  %v2660 = vld [vmem:[%s5 + $0x270] sm:$0xff]
  %v2661 = vld [vmem:[%s5 + $0x278] sm:$0xff]
  %v2662 = vld [vmem:[%s5 + $0x280] sm:$0xff]
  %v2663 = vld [vmem:[%s5 + $0x288] sm:$0xff]
  %v2664 = vld [vmem:[%s5 + $0x290] sm:$0xff]
  %v2665 = vld [vmem:[%s5 + $0x298] sm:$0xff]
  %v2666 = vld [vmem:[%s5 + $0x2a0] sm:$0xff]
  %v2667 = vld [vmem:[%s5 + $0x2a8] sm:$0xff]
  %v2668 = vld [vmem:[%s5 + $0x2b0] sm:$0xff]
  %v2669 = vld [vmem:[%s5 + $0x2b8] sm:$0xff]
  %v2670 = vld [vmem:[%s5 + $0x2c0] sm:$0xff]
  %v2671 = vld [vmem:[%s5 + $0x2c8] sm:$0xff]
  %v2672 = vld [vmem:[%s5 + $0x2d0] sm:$0xff]
  %v2673 = vld [vmem:[%s5 + $0x2d8] sm:$0xff]
  %v2674 = vld [vmem:[%s5 + $0x2e0] sm:$0xff]
  %v2675 = vld [vmem:[%s5 + $0x2e8] sm:$0xff]
  %v2676 = vld [vmem:[%s5 + $0x2f0] sm:$0xff]
  %v2677 = vld [vmem:[%s5 + $0x2f8] sm:$0xff]
  %v2679 = vperm.slane %v37, 0
  %v2680 = vperm.slane %v37, 1
  %v2779 = vunpack.c.l.b16 %v2582
  %v2780 = vunpack.c.h.b16 %v2582
  %v2781 = vunpack.c.l.b16 %v2583
  %v2782 = vunpack.c.h.b16 %v2583
  %v2783 = vunpack.c.l.b16 %v2584
  %v2784 = vunpack.c.h.b16 %v2584
  %v2785 = vunpack.c.l.b16 %v2585
  %v2786 = vunpack.c.h.b16 %v2585
  %v2787 = vunpack.c.l.b16 %v2586
  %v2788 = vunpack.c.h.b16 %v2586
  %v2789 = vunpack.c.l.b16 %v2587
  %v2790 = vunpack.c.h.b16 %v2587
  %v2791 = vunpack.c.l.b16 %v2588
  %v2792 = vunpack.c.h.b16 %v2588
  %v2793 = vunpack.c.l.b16 %v2589
  %v2794 = vunpack.c.h.b16 %v2589
  %v2795 = vunpack.c.l.b16 %v2590
  %v2796 = vunpack.c.h.b16 %v2590
  %v2797 = vunpack.c.l.b16 %v2591
  %v2798 = vunpack.c.h.b16 %v2591
  %v2799 = vunpack.c.l.b16 %v2592
  %v2800 = vunpack.c.h.b16 %v2592
  %v2801 = vunpack.c.l.b16 %v2593
  %v2802 = vunpack.c.h.b16 %v2593
  %v2803 = vunpack.c.l.b16 %v2594
  %v2804 = vunpack.c.h.b16 %v2594
  %v2805 = vunpack.c.l.b16 %v2595
  %v2806 = vunpack.c.h.b16 %v2595
  %v2807 = vunpack.c.l.b16 %v2596
  %v2808 = vunpack.c.h.b16 %v2596
  %v2809 = vunpack.c.l.b16 %v2597
  %v2810 = vunpack.c.h.b16 %v2597
  %v2811 = vunpack.c.l.b16 %v2598
  %v2812 = vunpack.c.h.b16 %v2598
  %v2813 = vunpack.c.l.b16 %v2599
  %v2814 = vunpack.c.h.b16 %v2599
  %v2815 = vunpack.c.l.b16 %v2600
  %v2816 = vunpack.c.h.b16 %v2600
  %v2817 = vunpack.c.l.b16 %v2601
  %v2818 = vunpack.c.h.b16 %v2601
  %v2819 = vunpack.c.l.b16 %v2602
  %v2820 = vunpack.c.h.b16 %v2602
  %v2821 = vunpack.c.l.b16 %v2603
  %v2822 = vunpack.c.h.b16 %v2603
  %v2823 = vunpack.c.l.b16 %v2604
  %v2824 = vunpack.c.h.b16 %v2604
  %v2825 = vunpack.c.l.b16 %v2605
  %v2826 = vunpack.c.h.b16 %v2605
  %v2827 = vunpack.c.l.b16 %v2606
  %v2828 = vunpack.c.h.b16 %v2606
  %v2829 = vunpack.c.l.b16 %v2607
  %v2830 = vunpack.c.h.b16 %v2607
  %v2831 = vunpack.c.l.b16 %v2608
  %v2832 = vunpack.c.h.b16 %v2608
  %v2833 = vunpack.c.l.b16 %v2609
  %v2834 = vunpack.c.h.b16 %v2609
  %v2835 = vunpack.c.l.b16 %v2610
  %v2836 = vunpack.c.h.b16 %v2610
  %v2837 = vunpack.c.l.b16 %v2611
  %v2838 = vunpack.c.h.b16 %v2611
  %v2839 = vunpack.c.l.b16 %v2612
  %v2840 = vunpack.c.h.b16 %v2612
  %v2841 = vunpack.c.l.b16 %v2613
  %v2842 = vunpack.c.h.b16 %v2613
  %v2843 = vunpack.c.l.b16 %v2614
  %v2844 = vunpack.c.h.b16 %v2614
  %v2845 = vunpack.c.l.b16 %v2615
  %v2846 = vunpack.c.h.b16 %v2615
  %v2847 = vunpack.c.l.b16 %v2616
  %v2848 = vunpack.c.h.b16 %v2616
  %v2849 = vunpack.c.l.b16 %v2617
  %v2850 = vunpack.c.h.b16 %v2617
  %v2851 = vunpack.c.l.b16 %v2618
  %v2852 = vunpack.c.h.b16 %v2618
  %v2853 = vunpack.c.l.b16 %v2619
  %v2854 = vunpack.c.h.b16 %v2619
  %v2855 = vunpack.c.l.b16 %v2620
  %v2856 = vunpack.c.h.b16 %v2620
  %v2857 = vunpack.c.l.b16 %v2621
  %v2858 = vunpack.c.h.b16 %v2621
  %v2859 = vunpack.c.l.b16 %v2622
  %v2860 = vunpack.c.h.b16 %v2622
  %v2861 = vunpack.c.l.b16 %v2623
  %v2862 = vunpack.c.h.b16 %v2623
  %v2863 = vunpack.c.l.b16 %v2624
  %v2864 = vunpack.c.h.b16 %v2624
  %v2865 = vunpack.c.l.b16 %v2625
  %v2866 = vunpack.c.h.b16 %v2625
  %v2867 = vunpack.c.l.b16 %v2626
  %v2868 = vunpack.c.h.b16 %v2626
  %v2869 = vunpack.c.l.b16 %v2627
  %v2870 = vunpack.c.h.b16 %v2627
  %v2871 = vunpack.c.l.b16 %v2628
  %v2872 = vunpack.c.h.b16 %v2628
  %v2873 = vunpack.c.l.b16 %v2629
  %v2874 = vunpack.c.h.b16 %v2629
  %v2875 = vunpack.c.l.b16 %v2630
  %v2876 = vunpack.c.h.b16 %v2630
  %v2877 = vunpack.c.l.b16 %v2631
  %v2878 = vunpack.c.h.b16 %v2631
  %v2879 = vunpack.c.l.b16 %v2632
  %v2880 = vunpack.c.h.b16 %v2632
  %v2881 = vunpack.c.l.b16 %v2633
  %v2882 = vunpack.c.h.b16 %v2633
  %v2883 = vunpack.c.l.b16 %v2634
  %v2884 = vunpack.c.h.b16 %v2634
  %v2885 = vunpack.c.l.b16 %v2635
  %v2886 = vunpack.c.h.b16 %v2635
  %v2887 = vunpack.c.l.b16 %v2636
  %v2888 = vunpack.c.h.b16 %v2636
  %v2889 = vunpack.c.l.b16 %v2637
  %v2890 = vunpack.c.h.b16 %v2637
  %v2891 = vunpack.c.l.b16 %v2638
  %v2892 = vunpack.c.h.b16 %v2638
  %v2893 = vunpack.c.l.b16 %v2639
  %v2894 = vunpack.c.h.b16 %v2639
  %v2895 = vunpack.c.l.b16 %v2640
  %v2896 = vunpack.c.h.b16 %v2640
  %v2897 = vunpack.c.l.b16 %v2641
  %v2898 = vunpack.c.h.b16 %v2641
  %v2899 = vunpack.c.l.b16 %v2642
  %v2900 = vunpack.c.h.b16 %v2642
  %v2901 = vunpack.c.l.b16 %v2643
  %v2902 = vunpack.c.h.b16 %v2643
  %v2903 = vunpack.c.l.b16 %v2644
  %v2904 = vunpack.c.h.b16 %v2644
  %v2905 = vunpack.c.l.b16 %v2645
  %v2906 = vunpack.c.h.b16 %v2645
  %v2907 = vunpack.c.l.b16 %v2646
  %v2908 = vunpack.c.h.b16 %v2646
  %v2909 = vunpack.c.l.b16 %v2647
  %v2910 = vunpack.c.h.b16 %v2647
  %v2911 = vunpack.c.l.b16 %v2648
  %v2912 = vunpack.c.h.b16 %v2648
  %v2913 = vunpack.c.l.b16 %v2649
  %v2914 = vunpack.c.h.b16 %v2649
  %v2915 = vunpack.c.l.b16 %v2650
  %v2916 = vunpack.c.h.b16 %v2650
  %v2917 = vunpack.c.l.b16 %v2651
  %v2918 = vunpack.c.h.b16 %v2651
  %v2919 = vunpack.c.l.b16 %v2652
  %v2920 = vunpack.c.h.b16 %v2652
  %v2921 = vunpack.c.l.b16 %v2653
  %v2922 = vunpack.c.h.b16 %v2653
  %v2923 = vunpack.c.l.b16 %v2654
  %v2924 = vunpack.c.h.b16 %v2654
  %v2925 = vunpack.c.l.b16 %v2655
  %v2926 = vunpack.c.h.b16 %v2655
  %v2927 = vunpack.c.l.b16 %v2656
  %v2928 = vunpack.c.h.b16 %v2656
  %v2929 = vunpack.c.l.b16 %v2657
  %v2930 = vunpack.c.h.b16 %v2657
  %v2931 = vunpack.c.l.b16 %v2658
  %v2932 = vunpack.c.h.b16 %v2658
  %v2933 = vunpack.c.l.b16 %v2659
  %v2934 = vunpack.c.h.b16 %v2659
  %v2935 = vunpack.c.l.b16 %v2660
  %v2936 = vunpack.c.h.b16 %v2660
  %v2937 = vunpack.c.l.b16 %v2661
  %v2938 = vunpack.c.h.b16 %v2661
  %v2939 = vunpack.c.l.b16 %v2662
  %v2940 = vunpack.c.h.b16 %v2662
  %v2941 = vunpack.c.l.b16 %v2663
  %v2942 = vunpack.c.h.b16 %v2663
  %v2943 = vunpack.c.l.b16 %v2664
  %v2944 = vunpack.c.h.b16 %v2664
  %v2945 = vunpack.c.l.b16 %v2665
  %v2946 = vunpack.c.h.b16 %v2665
  %v2947 = vunpack.c.l.b16 %v2666
  %v2948 = vunpack.c.h.b16 %v2666
  %v2949 = vunpack.c.l.b16 %v2667
  %v2950 = vunpack.c.h.b16 %v2667
  %v2951 = vunpack.c.l.b16 %v2668
  %v2952 = vunpack.c.h.b16 %v2668
  %v2953 = vunpack.c.l.b16 %v2669
  %v2954 = vunpack.c.h.b16 %v2669
  %v2955 = vunpack.c.l.b16 %v2670
  %v2956 = vunpack.c.h.b16 %v2670
  %v2957 = vunpack.c.l.b16 %v2671
  %v2958 = vunpack.c.h.b16 %v2671
  %v2959 = vunpack.c.l.b16 %v2672
  %v2960 = vunpack.c.h.b16 %v2672
  %v2961 = vunpack.c.l.b16 %v2673
  %v2962 = vunpack.c.h.b16 %v2673
  %v2963 = vunpack.c.l.b16 %v2674
  %v2964 = vunpack.c.h.b16 %v2674
  %v2965 = vunpack.c.l.b16 %v2675
  %v2966 = vunpack.c.h.b16 %v2675
  %v2967 = vunpack.c.l.b16 %v2676
  %v2968 = vunpack.c.h.b16 %v2676
  %v2969 = vunpack.c.l.b16 %v2677
  %v2970 = vunpack.c.h.b16 %v2677
  %v2971 = vpack.c.b16 %v2781, %v2779
  %v2972 = vpack.c.b16 %v2782, %v2780
  %v2973 = vpack.c.b16 %v2785, %v2783
  %v2974 = vpack.c.b16 %v2786, %v2784
  %v2975 = vpack.c.b16 %v2789, %v2787
  %v2976 = vpack.c.b16 %v2790, %v2788
  %v2977 = vpack.c.b16 %v2793, %v2791
  %v2978 = vpack.c.b16 %v2794, %v2792
  %v2979 = vpack.c.b16 %v2797, %v2795
  %v2980 = vpack.c.b16 %v2798, %v2796
  %v2981 = vpack.c.b16 %v2801, %v2799
  %v2982 = vpack.c.b16 %v2802, %v2800
  %v2983 = vpack.c.b16 %v2805, %v2803
  %v2984 = vpack.c.b16 %v2806, %v2804
  %v2985 = vpack.c.b16 %v2809, %v2807
  %v2986 = vpack.c.b16 %v2810, %v2808
  %v2987 = vpack.c.b16 %v2813, %v2811
  %v2988 = vpack.c.b16 %v2814, %v2812
  %v2989 = vpack.c.b16 %v2817, %v2815
  %v2990 = vpack.c.b16 %v2818, %v2816
  %v2991 = vpack.c.b16 %v2821, %v2819
  %v2992 = vpack.c.b16 %v2822, %v2820
  %v2993 = vpack.c.b16 %v2825, %v2823
  %v2994 = vpack.c.b16 %v2826, %v2824
  %v2995 = vpack.c.b16 %v2829, %v2827
  %v2996 = vpack.c.b16 %v2830, %v2828
  %v2997 = vpack.c.b16 %v2833, %v2831
  %v2998 = vpack.c.b16 %v2834, %v2832
  %v2999 = vpack.c.b16 %v2837, %v2835
  %v3000 = vpack.c.b16 %v2838, %v2836
  %v3001 = vpack.c.b16 %v2841, %v2839
  %v3002 = vpack.c.b16 %v2842, %v2840
  %v3003 = vpack.c.b16 %v2845, %v2843
  %v3004 = vpack.c.b16 %v2846, %v2844
  %v3005 = vpack.c.b16 %v2849, %v2847
  %v3006 = vpack.c.b16 %v2850, %v2848
  %v3007 = vpack.c.b16 %v2853, %v2851
  %v3008 = vpack.c.b16 %v2854, %v2852
  %v3009 = vpack.c.b16 %v2857, %v2855
  %v3010 = vpack.c.b16 %v2858, %v2856
  %v3011 = vpack.c.b16 %v2861, %v2859
  %v3012 = vpack.c.b16 %v2862, %v2860
  %v3013 = vpack.c.b16 %v2865, %v2863
  %v3014 = vpack.c.b16 %v2866, %v2864
  %v3015 = vpack.c.b16 %v2869, %v2867
  %v3016 = vpack.c.b16 %v2870, %v2868
  %v3017 = vpack.c.b16 %v2873, %v2871
  %v3018 = vpack.c.b16 %v2874, %v2872
  %v3019 = vpack.c.b16 %v2877, %v2875
  %v3020 = vpack.c.b16 %v2878, %v2876
  %v3021 = vpack.c.b16 %v2881, %v2879
  %v3022 = vpack.c.b16 %v2882, %v2880
  %v3023 = vpack.c.b16 %v2885, %v2883
  %v3024 = vpack.c.b16 %v2886, %v2884
  %v3025 = vpack.c.b16 %v2889, %v2887
  %v3026 = vpack.c.b16 %v2890, %v2888
  %v3027 = vpack.c.b16 %v2893, %v2891
  %v3028 = vpack.c.b16 %v2894, %v2892
  %v3029 = vpack.c.b16 %v2897, %v2895
  %v3030 = vpack.c.b16 %v2898, %v2896
  %v3031 = vpack.c.b16 %v2901, %v2899
  %v3032 = vpack.c.b16 %v2902, %v2900
  %v3033 = vpack.c.b16 %v2905, %v2903
  %v3034 = vpack.c.b16 %v2906, %v2904
  %v3035 = vpack.c.b16 %v2909, %v2907
  %v3036 = vpack.c.b16 %v2910, %v2908
  %v3037 = vpack.c.b16 %v2913, %v2911
  %v3038 = vpack.c.b16 %v2914, %v2912
  %v3039 = vpack.c.b16 %v2917, %v2915
  %v3040 = vpack.c.b16 %v2918, %v2916
  %v3041 = vpack.c.b16 %v2921, %v2919
  %v3042 = vpack.c.b16 %v2922, %v2920
  %v3043 = vpack.c.b16 %v2925, %v2923
  %v3044 = vpack.c.b16 %v2926, %v2924
  %v3045 = vpack.c.b16 %v2929, %v2927
  %v3046 = vpack.c.b16 %v2930, %v2928
  %v3047 = vpack.c.b16 %v2933, %v2931
  %v3048 = vpack.c.b16 %v2934, %v2932
  %v3049 = vpack.c.b16 %v2937, %v2935
  %v3050 = vpack.c.b16 %v2938, %v2936
  %v3051 = vpack.c.b16 %v2941, %v2939
  %v3052 = vpack.c.b16 %v2942, %v2940
  %v3053 = vpack.c.b16 %v2945, %v2943
  %v3054 = vpack.c.b16 %v2946, %v2944
  %v3055 = vpack.c.b16 %v2949, %v2947
  %v3056 = vpack.c.b16 %v2950, %v2948
  %v3057 = vpack.c.b16 %v2953, %v2951
  %v3058 = vpack.c.b16 %v2954, %v2952
  %v3059 = vpack.c.b16 %v2957, %v2955
  %v3060 = vpack.c.b16 %v2958, %v2956
  %v3061 = vpack.c.b16 %v2961, %v2959
  %v3062 = vpack.c.b16 %v2962, %v2960
  %v3063 = vpack.c.b16 %v2965, %v2963
  %v3064 = vpack.c.b16 %v2966, %v2964
  %v3065 = vpack.c.b16 %v2969, %v2967
  %v3066 = vpack.c.b16 %v2970, %v2968
  %3163 = vmatpush.bf16.msra.mxu0 %v2985
  %3164 = vmatpush.bf16.msra.mxu0 %v2983
  %3165 = vmatpush.bf16.msra.mxu0 %v2981
  %3166 = vmatpush.bf16.msra.mxu0 %v2979
  %3167 = vmatpush.bf16.msra.mxu0 %v2977
  %3168 = vmatpush.bf16.msra.mxu0 %v2975
  %3169 = vmatpush.bf16.msra.mxu0 %v2973
  %3170 = vmatpush.bf16.msra.mxu0 %v2971
  %3171 = vmatmul.bf16.gmra.mxu0 %v2576
  %v3172 = vpop.f32.mrf.mxu0
  %v3173 = vadd.f32 %v2679, %v3172
  %v3174 = vpop.f32.mrf.mxu0
  %3175 = vdwg.mxu0
  %3176 = vmatpush.bf16.msra.mxu0 %v3001
  %3177 = vmatpush.bf16.msra.mxu0 %v2999
  %3178 = vmatpush.bf16.msra.mxu0 %v2997
  %3179 = vmatpush.bf16.msra.mxu0 %v2995
  %3180 = vmatpush.bf16.msra.mxu0 %v2993
  %3181 = vmatpush.bf16.msra.mxu0 %v2991
  %3182 = vmatpush.bf16.msra.mxu0 %v2989
  %3183 = vmatpush.bf16.msra.mxu0 %v2987
  %3184 = vmatmul.bf16.gmra.mxu0 %v2577
  %v3185 = vpop.f32.mrf.mxu0
  %v3186 = vadd.f32 %v3173, %v3185
  %v3187 = vpop.f32.mrf.mxu0
  %3188 = vdwg.mxu0
  %3189 = vmatpush.bf16.msra.mxu0 %v3017
  %3190 = vmatpush.bf16.msra.mxu0 %v3015
  %3191 = vmatpush.bf16.msra.mxu0 %v3013
  %3192 = vmatpush.bf16.msra.mxu0 %v3011
  %3193 = vmatpush.bf16.msra.mxu0 %v3009
  %3194 = vmatpush.bf16.msra.mxu0 %v3007
  %3195 = vmatpush.bf16.msra.mxu0 %v3005
  %3196 = vmatpush.bf16.msra.mxu0 %v3003
  %3197 = vmatmul.bf16.gmra.mxu0 %v2578
  %v3198 = vpop.f32.mrf.mxu0
  %v3199 = vadd.f32 %v3186, %v3198
  %v3200 = vpop.f32.mrf.mxu0
  %3201 = vdwg.mxu0
  %3202 = vmatpush.bf16.msra.mxu0 %v3033
  %3203 = vmatpush.bf16.msra.mxu0 %v3031
  %3204 = vmatpush.bf16.msra.mxu0 %v3029
  %3205 = vmatpush.bf16.msra.mxu0 %v3027
  %3206 = vmatpush.bf16.msra.mxu0 %v3025
  %3207 = vmatpush.bf16.msra.mxu0 %v3023
  %3208 = vmatpush.bf16.msra.mxu0 %v3021
  %3209 = vmatpush.bf16.msra.mxu0 %v3019
  %3210 = vmatmul.bf16.gmra.mxu0 %v2579
  %v3211 = vpop.f32.mrf.mxu0
  %v3212 = vadd.f32 %v3199, %v3211
  %v3213 = vpop.f32.mrf.mxu0
  %3214 = vdwg.mxu0
  %3215 = vmatpush.bf16.msra.mxu0 %v3049
  %3216 = vmatpush.bf16.msra.mxu0 %v3047
  %3217 = vmatpush.bf16.msra.mxu0 %v3045
  %3218 = vmatpush.bf16.msra.mxu0 %v3043
  %3219 = vmatpush.bf16.msra.mxu0 %v3041
  %3220 = vmatpush.bf16.msra.mxu0 %v3039
  %3221 = vmatpush.bf16.msra.mxu0 %v3037
  %3222 = vmatpush.bf16.msra.mxu0 %v3035
  %3223 = vmatmul.bf16.gmra.mxu0 %v2580
  %v3224 = vpop.f32.mrf.mxu0
  %v3225 = vadd.f32 %v3212, %v3224
  %v3226 = vpop.f32.mrf.mxu0
  %3227 = vdwg.mxu0
  %3228 = vmatpush.bf16.msra.mxu0 %v3065
  %3229 = vmatpush.bf16.msra.mxu0 %v3063
  %3230 = vmatpush.bf16.msra.mxu0 %v3061
  %3231 = vmatpush.bf16.msra.mxu0 %v3059
  %3232 = vmatpush.bf16.msra.mxu0 %v3057
  %3233 = vmatpush.bf16.msra.mxu0 %v3055
  %3234 = vmatpush.bf16.msra.mxu0 %v3053
  %3235 = vmatpush.bf16.msra.mxu0 %v3051
  %3236 = vmatmul.bf16.gmra.mxu0 %v2581
  %v3237 = vpop.f32.mrf.mxu0
  %v3238 = vadd.f32 %v3225, %v3237
  %v3239 = vpop.f32.mrf.mxu0
  %3240 = vdwg.mxu0
  %3241 = vmatpush.bf16.msra.mxu0 %v2986
  %3242 = vmatpush.bf16.msra.mxu0 %v2984
  %3243 = vmatpush.bf16.msra.mxu0 %v2982
  %3244 = vmatpush.bf16.msra.mxu0 %v2980
  %3245 = vmatpush.bf16.msra.mxu0 %v2978
  %3246 = vmatpush.bf16.msra.mxu0 %v2976
  %3247 = vmatpush.bf16.msra.mxu0 %v2974
  %3248 = vmatpush.bf16.msra.mxu0 %v2972
  %3249 = vmatmul.bf16.gmra.mxu0 %v2576
  %v3250 = vpop.f32.mrf.mxu0
  %v3251 = vadd.f32 %v2680, %v3250
  %v3252 = vpop.f32.mrf.mxu0
  %3253 = vdwg.mxu0
  %3254 = vmatpush.bf16.msra.mxu0 %v3002
  %3255 = vmatpush.bf16.msra.mxu0 %v3000
  %3256 = vmatpush.bf16.msra.mxu0 %v2998
  %3257 = vmatpush.bf16.msra.mxu0 %v2996
  %3258 = vmatpush.bf16.msra.mxu0 %v2994
  %3259 = vmatpush.bf16.msra.mxu0 %v2992
  %3260 = vmatpush.bf16.msra.mxu0 %v2990
  %3261 = vmatpush.bf16.msra.mxu0 %v2988
  %3262 = vmatmul.bf16.gmra.mxu0 %v2577
  %v3263 = vpop.f32.mrf.mxu0
  %v3264 = vadd.f32 %v3251, %v3263
  %v3265 = vpop.f32.mrf.mxu0
  %3266 = vdwg.mxu0
  %3267 = vmatpush.bf16.msra.mxu0 %v3018
  %3268 = vmatpush.bf16.msra.mxu0 %v3016
  %3269 = vmatpush.bf16.msra.mxu0 %v3014
  %3270 = vmatpush.bf16.msra.mxu0 %v3012
  %3271 = vmatpush.bf16.msra.mxu0 %v3010
  %3272 = vmatpush.bf16.msra.mxu0 %v3008
  %3273 = vmatpush.bf16.msra.mxu0 %v3006
  %3274 = vmatpush.bf16.msra.mxu0 %v3004
  %3275 = vmatmul.bf16.gmra.mxu0 %v2578
  %v3276 = vpop.f32.mrf.mxu0
  %v3277 = vadd.f32 %v3264, %v3276
  %v3278 = vpop.f32.mrf.mxu0
  %3279 = vdwg.mxu0
  %3280 = vmatpush.bf16.msra.mxu0 %v3034
  %3281 = vmatpush.bf16.msra.mxu0 %v3032
  %3282 = vmatpush.bf16.msra.mxu0 %v3030
  %3283 = vmatpush.bf16.msra.mxu0 %v3028
  %3284 = vmatpush.bf16.msra.mxu0 %v3026
  %3285 = vmatpush.bf16.msra.mxu0 %v3024
  %3286 = vmatpush.bf16.msra.mxu0 %v3022
  %3287 = vmatpush.bf16.msra.mxu0 %v3020
  %3288 = vmatmul.bf16.gmra.mxu0 %v2579
  %v3289 = vpop.f32.mrf.mxu0
  %v3290 = vadd.f32 %v3277, %v3289
  %v3291 = vpop.f32.mrf.mxu0
  %3292 = vdwg.mxu0
  %3293 = vmatpush.bf16.msra.mxu0 %v3050
  %3294 = vmatpush.bf16.msra.mxu0 %v3048
  %3295 = vmatpush.bf16.msra.mxu0 %v3046
  %3296 = vmatpush.bf16.msra.mxu0 %v3044
  %3297 = vmatpush.bf16.msra.mxu0 %v3042
  %3298 = vmatpush.bf16.msra.mxu0 %v3040
  %3299 = vmatpush.bf16.msra.mxu0 %v3038
  %3300 = vmatpush.bf16.msra.mxu0 %v3036
  %3301 = vmatmul.bf16.gmra.mxu0 %v2580
  %v3302 = vpop.f32.mrf.mxu0
  %v3303 = vadd.f32 %v3290, %v3302
  %v3304 = vpop.f32.mrf.mxu0
  %3305 = vdwg.mxu0
  %3306 = vmatpush.bf16.msra.mxu0 %v3066
  %3307 = vmatpush.bf16.msra.mxu0 %v3064
  %3308 = vmatpush.bf16.msra.mxu0 %v3062
  %3309 = vmatpush.bf16.msra.mxu0 %v3060
  %3310 = vmatpush.bf16.msra.mxu0 %v3058
  %3311 = vmatpush.bf16.msra.mxu0 %v3056
  %3312 = vmatpush.bf16.msra.mxu0 %v3054
  %3313 = vmatpush.bf16.msra.mxu0 %v3052
  %3314 = vmatmul.bf16.gmra.mxu0 %v2581
  %v3315 = vpop.f32.mrf.mxu0
  %v3316 = vadd.f32 %v3303, %v3315
  %v3317 = vpop.f32.mrf.mxu0
  %3318 = vdwg.mxu0
  %v3319 = vmax.f32 %v3238, 0.0
  %v3320 = vmax.f32 %v3316, 0.0
  %v3322 = vsel %vm80, %v3320, 0
  %3324 = vmatpush.msra.mxu0 %v2475
  %3325 = vmatpush.msra.mxu0 %v2474
  %3326 = vmatpush.msra.mxu0 %v2473
  %3327 = vmatpush.msra.mxu0 %v2472
  %3328 = vmatpush.msra.mxu0 %v2471
  %3329 = vmatpush.msra.mxu0 %v2470
  %3330 = vmatpush.msra.mxu0 %v2469
  %3331 = vmatpush.msra.mxu0 %v2468
  %3332 = vmatpush.msra.mxu0 %v2467
  %3333 = vmatpush.msra.mxu0 %v2466
  %3334 = vmatpush.msra.mxu0 %v2465
  %3335 = vmatpush.msra.mxu0 %v2464
  %3336 = vmatpush.msra.mxu0 %v2463
  %3337 = vmatpush.msra.mxu0 %v2462
  %3338 = vmatpush.msra.mxu0 %v2461
  %3339 = vmatpush.msra.mxu0 %v2460
  %3340 = vmatmul.f32.gmra.mxu0 %v3319
  %v3341 = vpop.f32.mrf.mxu0
  %v3342 = vadd.f32 %v35, %v3341
  %3343 = vdwg.mxu0
  %3344 = vmatpush.msra.mxu0 0.0
  %3345 = vmatpush.msra.mxu0 0.0
  %3346 = vmatpush.msra.mxu0 0.0
  %3347 = vmatpush.msra.mxu0 0.0
  %3348 = vmatpush.msra.mxu0 0.0
  %3349 = vmatpush.msra.mxu0 0.0
  %3350 = vmatpush.msra.mxu0 0.0
  %3351 = vmatpush.msra.mxu0 0.0
  %3352 = vmatpush.msra.mxu0 %v2483
  %3353 = vmatpush.msra.mxu0 %v2482
  %3354 = vmatpush.msra.mxu0 %v2481
  %3355 = vmatpush.msra.mxu0 %v2480
  %3356 = vmatpush.msra.mxu0 %v2479
  %3357 = vmatpush.msra.mxu0 %v2478
  %3358 = vmatpush.msra.mxu0 %v2477
  %3359 = vmatpush.msra.mxu0 %v2476
  %3360 = vmatmul.f32.gmra.mxu0 %v3322
  %v3361 = vpop.f32.mrf.mxu0
  %v3362 = vadd.f32 %v3342, %v3361
  %3363 = vdwg.mxu0
  %v3364 = vmax.f32 %v3362, 0.0
  %s3365 = scalar_lea.vmem [#allocation1], 1
  %3366 = vst [vmem:[%s3365] ss:$4 sm:$0xff] %v2524
  %v3367 = vld.sshfl [vmem:[#allocation1] sm:$0xff pattern:$0x73625140]
  %v3370 = vrot.slane %v2556, 4
  %v3373 = vrot.slane %v3364, 2
  %vm3375 = vcmask 1041408
  %v3376 = vsel %vm3375, %v2523, %v3367
  %vm3377 = vcmask 1043456
  %v3378 = vsel %vm3377, %v3376, %v3370
  %vm3379 = vcmask 1045504
  %v3380 = vsel %vm3379, %v3378, %v3373
  %3382 = vrot.lane.b32.xlu0 %v35, 64
  %v3383 = vpop.permute.xlu0 %3382
  %v3386 = vsel %vm80, %v3380, 0
  %3388 = vmatpush.msra.mxu0 0.0
  %3389 = vmatpush.msra.mxu0 0.0
  %3390 = vmatpush.msra.mxu0 0.0
  %3391 = vmatpush.msra.mxu0 0.0
  %3392 = vmatpush.msra.mxu0 0.0
  %3393 = vmatpush.msra.mxu0 0.0
  %3394 = vmatpush.msra.mxu0 0.0
  %3395 = vmatpush.msra.mxu0 0.0
  %3396 = vmatpush.msra.mxu0 %v2491
  %3397 = vmatpush.msra.mxu0 %v2490
  %3398 = vmatpush.msra.mxu0 %v2489
  %3399 = vmatpush.msra.mxu0 %v2488
  %3400 = vmatpush.msra.mxu0 %v2487
  %3401 = vmatpush.msra.mxu0 %v2486
  %3402 = vmatpush.msra.mxu0 %v2485
  %3403 = vmatpush.msra.mxu0 %v2484
  %3404 = vmatmul.f32.gmra.mxu0 %v3386
  %v3405 = vpop.f32.mrf.mxu0
  %v3406 = vadd.f32 %v3383, %v3405
  %3407 = vdwg.mxu0
  %v3408 = vmax.f32 %v3406, 0.0
  %v3409 = vtanh.pop %v3408
  %v3410 = vmul.f32 %v3409, %v38
  %v3411 = vsel %vm80, %v3410, 0.0
  %3412 = vadd.xlane.f32.xlu0 %v3411
  %v3413 = vpop.xlane.xlu0 %3412
  %v3415 = vrot.slane %v3413, 2
  %v3417 = vrot.slane %v3413, 4
  %v3419 = vrot.slane %v3413, 6
  %vm3421 = vcmask 7168
  %v3422 = vsel %vm3421, %v3413, %v3415
  %vm3423 = vcmask 15360
  %v3424 = vsel %vm3423, %v3422, %v3417
  %vm3425 = vcmask 23552
  %v3426 = vsel %vm3425, %v3424, %v3419
  %vm3427 = vcmask 25600
  %v3428 = vsel %vm3427, %v3426, -inf
  %3429 = vmax.xlane.f32.xlu0 %v3428
  %v3430 = vpop.xlane.xlu0 %3429
  %v3431 = vsub.f32 %v3426, %v3430
  %v3432 = vmul.f32 %v3431, 1.442695
  %v3433 = vpow.pop %v3432
  %v3434 = vsel %vm3427, %v3433, 0.0
  %3435 = vadd.xlane.f32.xlu0 %v3434
  %v3436 = vpop.xlane.xlu0 %3435
  %v3437 = vrcp.pop %v3436
  %v3438 = vmul.f32 %v3436, %v3437
  %v3439 = vsub.f32 1.0, %v3438
  %v3440 = vmul.f32 %v3437, %v3439
  %v3441 = vadd.f32 %v3437, %v3440
  %vm3442 = vweird.f32 %v3436
  %vm3443 = vweird.f32 %v3437
  %vm3444 = vmor %vm3442, %vm3443
  %v3445 = vsel %vm3444, %v3437, %v3441
  %v3446 = vand.u32 2147483647, %v3436
  %vm3447 = vcmp.eq.f32.partialorder %v3446, 8.507059e+37
  %v3448 = vand.u32 %v3436, 2147483648
  %v3449 = vor.u32 1.1754944e-38, %v3448
  %v3450 = vsel %vm3447, %v3449, %v3445
  %v3451 = vmul.f32 %v3433, %v3450
  %3453 = vset.pattern.permute.xlu0 0
  %3454 = vperm.xlu0 %3453, %v3451
  %v3455 = vpop.permute.xlu0 %3454
  %v3457 = vmul.f32 %v3455, %v3408
  %v3458 = vadd.f32 %v3457, 0.0
  %3459 = vset.pattern.permute.xlu0 1
  %3460 = vperm.xlu0 %3459, %v3451
  %v3461 = vpop.permute.xlu0 %3460
  %v3464 = vrot.slane %v3408, 2
  %v3466 = vmul.f32 %v3461, %v3464
  %v3467 = vadd.f32 %v3458, %v3466
  %3468 = vset.pattern.permute.xlu0 2
  %3469 = vperm.xlu0 %3468, %v3451
  %v3470 = vpop.permute.xlu0 %3469
  %v3472 = vrot.slane %v3408, 4
  %v3474 = vmul.f32 %v3470, %v3472
  %v3475 = vadd.f32 %v3467, %v3474
  %3476 = vset.pattern.permute.xlu0 3
  %3477 = vperm.xlu0 %3476, %v3451
  %v3478 = vpop.permute.xlu0 %3477
  %v3480 = vrot.slane %v3408, 6
  %v3482 = vmul.f32 %v3478, %v3480
  %v3483 = vadd.f32 %v3475, %v3482
  %v3484 = vmax.f32 %v3483, 0.0
  %v3486 = vsel %vm80, %v3484, 0
  %3488 = vmatpush.msra.mxu0 0.0
  %3489 = vmatpush.msra.mxu0 0.0
  %3490 = vmatpush.msra.mxu0 0.0
  %3491 = vmatpush.msra.mxu0 0.0
  %3492 = vmatpush.msra.mxu0 0.0
  %3493 = vmatpush.msra.mxu0 0.0
  %3494 = vmatpush.msra.mxu0 0.0
  %3495 = vmatpush.msra.mxu0 0.0
  %3496 = vmatpush.msra.mxu0 %v2499
  %3497 = vmatpush.msra.mxu0 %v2498
  %3498 = vmatpush.msra.mxu0 %v2497
  %3499 = vmatpush.msra.mxu0 %v2496
  %3500 = vmatpush.msra.mxu0 %v2495
  %3501 = vmatpush.msra.mxu0 %v2494
  %3502 = vmatpush.msra.mxu0 %v2493
  %3503 = vmatpush.msra.mxu0 %v2492
  %3504 = vmatmul.f32.gmra.mxu0 %v3486
  %v3505 = vpop.f32.mrf.mxu0
  %v3506 = vadd.f32 %v39, %v3505
  %3507 = vdwg.mxu0
  %vm3508 = vcmask 517120
  %3509 = vst.msk [vmem:[%s8] sm:$0x3] %vm3508, %v3506
  // Predicated region
  $region34: #{la_model_forward.1} parent=0 // pred_check
    _
  $region35: #{la_model_forward.1} parent=0 // pred_check_branch
    %3511 = sbr.rel (0) target = $region37
  $region36: #{la_model_forward.1} parent=0 // pred_region
    _
  $region37: #{la_model_forward.1} parent=0 // pred_fallthru
    _
  // Predicated region
  $region38: #{la_model_forward.1} parent=0 // pred_check
    _
  $region39: #{la_model_forward.1} parent=0 // pred_check_branch
    %3513 = sbr.rel (0) target = $region41
  $region40: #{la_model_forward.1} parent=0 // pred_region
    _
  $region41: #{la_model_forward.1} parent=0 // pred_fallthru
    _

</llo_original>
